<compile_context>
chip_gen: v7x
topology: tpu7x:2x2x1
jax: 0.10.0
libtpu: 0.0.40
codegen_flags: <defaults>
</compile_context>

<pallas_src>
import jax
import jax.numpy as jnp
from jax.experimental import pallas as pl
from jax.experimental.pallas import tpu as pltpu

# ---- model dimensions (small, consistent with the module's forward) ---------
B = 8        # batch (fills the 8 vreg sublanes)
SEQ = 8      # sequence length
T = 8        # mkaarma.num_trajectories
C = 4        # mkaarma.num_cells
S = 8        # kaarma state dimension (pred = state[:, -1])
H = 16       # controller.hidden_size (decoder eats H-1, switch uses last col)
DEC_H = 64   # linear_decoder hidden width (64 in the module)
F = C * S + T  # fused mkaarma output width (= 40)

# TODO(synk): the NTM controller branch (create_new_state / memory.reset) has
# no definition available; a synthetic tanh-RNN controller is used instead.


def discmaker2_kernel(
    x_ref, y_ref, kstate0_ref, gate0_ref, err0_ref,
    Wbig_ref, bbig_ref, Wxe_ref, Wxr_ref, Wh_ref, bh_ref,
    Wd1_ref, bd1_ref, Wd2_ref, bd2_ref,
    o_ref, p_ref,
):
    # Hoisted loads (each read once; everything stays resident in vregs).
    x_all = x_ref[...]          # (B, SEQ) batch-major -> static lane slices
    y_all = y_ref[...]          # (B, SEQ)
    Wbig = Wbig_ref[...]        # (S, F)   fused [A_0 | ... | A_{C-1} | Wsim]
    bbig = bbig_ref[...]        # (1, F)   fused [b_0 | ... | b_{C-1} | vsim]
    Wxe = Wxe_ref[...]          # (T, H)   controller input weight (encoded part)
    Wxr = Wxr_ref[...]          # (1, H)   controller input weight (error row)
    Wh = Wh_ref[...]            # (H, H)
    bh = bh_ref[...]            # (1, H)
    Wd1 = Wd1_ref[...]          # (H, DEC_H)  zero-padded row H-1 (see wrapper)
    bd1 = bd1_ref[...]          # (1, DEC_H)
    Wd2 = Wd2_ref[...]          # (DEC_H, C)
    bd2 = bd2_ref[...]          # (1, C)

    kstate = kstate0_ref[...]   # (B, S)
    gate_state = gate0_ref[...] # (B, C)
    error = err0_ref[...]       # (B, 1)
    h = None                    # controller hidden (zero -> Wh term peeled)

    preds = []
    thetas = []
    e2s = []
    for i in range(SEQ):                       # static, fully unrolled
        x_t = x_all[:, i:i + 1]                # (B, 1) static lane slice
        y_t = y_all[:, i:i + 1]                # (B, 1)

        # ---- mkaarma: fused per-cell state update + similarities (1 dot) ----
        fused = jnp.tanh(
            jnp.dot(kstate, Wbig, preferred_element_type=jnp.float32)
            + x_t * bbig)                      # (B, F) = [new_state_0..C-1 | encoded]
        encoded = fused[:, C * S:]             # (B, T)

        # ---- controller (no concat: split input weight) ----------------------
        pre = (jnp.dot(encoded, Wxe, preferred_element_type=jnp.float32)
               + error * Wxr + bh)             # (B, H)
        if i > 0:                              # h == 0 on step 0 (peeled)
            pre = pre + jnp.dot(h, Wh, preferred_element_type=jnp.float32)
        h = jnp.tanh(pre)                      # (B, H) == controller_output

        # ---- linear_decoder(controller_output[:, :-1]) + softmax gate --------
        # Wd1 row H-1 is zero, so feeding the full h is equivalent to h[:, :-1]
        # and avoids a per-step lane slice.
        hid = jnp.maximum(
            jnp.dot(h, Wd1, preferred_element_type=jnp.float32) + bd1,
            0.0)                               # (B, DEC_H)
        logits = jnp.dot(hid, Wd2, preferred_element_type=jnp.float32) + bd2
        z = logits - jnp.max(logits, axis=1, keepdims=True)
        ez = jnp.exp(z)
        gate = ez * pl.reciprocal(jnp.sum(ez, axis=1, keepdims=True),
                                  approx=True)  # (B, C)

        # ---- switch theta = sigmoid(last column), convex blend ---------------
        theta = jax.nn.sigmoid(h[:, H - 1:H])   # (B, 1)
        gate = gate * theta + gate_state * (1.0 - theta)

        # ---- kaarma_state = bmm(gate.unsqueeze(1), new_state)[:, 0, :] -------
        kstate = sum(gate[:, c:c + 1] * fused[:, c * S:(c + 1) * S]
                     for c in range(C))         # (B, S)

        # ---- prediction, clamp to [0, 1] via relu(x) - relu(x - 1) -----------
        pred = kstate[:, S - 1:S]               # (B, 1) (kstate stays unclamped)
        pred = jnp.maximum(pred, 0.0) - jnp.maximum(pred - 1.0, 0.0)
        error = pred - y_t                      # (B, 1)

        gate_state = gate
        preds.append(pred)
        thetas.append(theta)
        e2s.append(1.0 - error * error)         # (B, 1)

    # Exactly one store per output (dense, no per-step masked stores).
    o_ref[...] = jnp.concatenate(preds, axis=1)   # (B, SEQ)

    # penalty reproduces the torch broadcast (B,) * (B,1) -> (B, B):
    #   penalty[i, s, j] = theta_s[i] * (1 - error_s[j]**2)
    # One batched transpose instead of SEQ tiny (B,1)->(1,B) reshapes.
    theta_all = jnp.concatenate(thetas, axis=1)   # (B, SEQ)
    e2T = jnp.concatenate(e2s, axis=1).T          # (SEQ, B)
    pens = [theta_all[:, s:s + 1] * e2T[s:s + 1, :] for s in range(SEQ)]
    p_ref[...] = jnp.concatenate(pens, axis=1)    # (B, SEQ*B)


def make_params(key):
    ks = jax.random.split(key, 8)
    sc = 0.1
    A    = (jax.random.normal(ks[0], (C, S, S)) * sc).astype(jnp.float32)
    b    = (jax.random.normal(ks[1], (C, 1, S)) * sc).astype(jnp.float32)
    Wsim = (jax.random.normal(ks[2], (S, T)) * sc).astype(jnp.float32)
    vsim = (jax.random.normal(ks[3], (1, T)) * sc).astype(jnp.float32)
    Wx   = (jax.random.normal(ks[4], (T + 1, H)) * sc).astype(jnp.float32)
    Wh   = (jax.random.normal(ks[5], (H, H)) * sc).astype(jnp.float32)
    bh   = jnp.zeros((1, H), jnp.float32)
    Wd1  = (jax.random.normal(ks[6], (H - 1, DEC_H)) * sc).astype(jnp.float32)
    bd1  = jnp.zeros((1, DEC_H), jnp.float32)
    Wd2  = (jax.random.normal(ks[7], (DEC_H, C)) * sc).astype(jnp.float32)
    bd2  = jnp.zeros((1, C), jnp.float32)
    return (A, b, Wsim, vsim, Wx, Wh, bh, Wd1, bd1, Wd2, bd2)


@jax.jit
def discmaker2_forward(x, y, kstate0, gate0, err0, params):
    # x, y: (B, SEQ) float32 (PyTorch batch-major convention, no transposes)
    (A, b, Wsim, vsim, Wx, Wh, bh, Wd1, bd1, Wd2, bd2) = params

    # Fuse mkaarma weights: one (S, C*S+T) matmul per step instead of C+1.
    W_big = jnp.concatenate([A[c] for c in range(C)] + [Wsim], axis=1)  # (S, F)
    b_big = jnp.concatenate([b[c] for c in range(C)] + [vsim], axis=1)  # (1, F)
    Wx_enc = Wx[:T]          # (T, H)
    Wx_err = Wx[T:T + 1]     # (1, H)
    # Zero-pad the decoder's first weight so the kernel can use the full hidden
    # state: h @ Wd1_pad == h[:, :H-1] @ Wd1 (row H-1 contributes nothing).
    Wd1_pad = jnp.concatenate([Wd1, jnp.zeros((1, DEC_H), jnp.float32)], axis=0)

    inputs = (x, y, kstate0, gate0, err0,
              W_big, b_big, Wx_enc, Wx_err, Wh, bh, Wd1_pad, bd1, Wd2, bd2)
    vmem = pl.BlockSpec(memory_space=pltpu.MemorySpace.VMEM)
    o, p_flat = pl.pallas_call(
        discmaker2_kernel,
        out_shape=(jax.ShapeDtypeStruct((B, SEQ), jnp.float32),
                   jax.ShapeDtypeStruct((B, SEQ * B), jnp.float32)),
        in_specs=[vmem] * len(inputs),
        out_specs=(vmem, vmem),
    )(*inputs)
    p = p_flat.reshape(B, SEQ, B)   # == torch.stack(p, dim=1)
    return o, p                     # o == torch.stack(o, dim=1)


def discmaker2_reference(x, y, kstate0, gate0, err0, params):
    """Pure-JAX reference with identical math (for a correctness check)."""
    (A, b, Wsim, vsim, Wx, Wh, bh, Wd1, bd1, Wd2, bd2) = params
    kstate, gate_state, error = kstate0, gate0, err0
    h = jnp.zeros((B, H), jnp.float32)
    o_list, p_list = [], []
    for i in range(SEQ):
        x_t = x[:, i:i + 1]
        y_t = y[:, i:i + 1]
        new_state = [jnp.tanh(kstate @ A[c] + x_t * b[c]) for c in range(C)]
        encoded = jnp.tanh(kstate @ Wsim + x_t * vsim)
        inp = jnp.concatenate([encoded, error], axis=1)
        h = jnp.tanh(inp @ Wx + h @ Wh + bh)
        hid = jnp.maximum(h[:, :H - 1] @ Wd1 + bd1, 0.0)
        gate = jax.nn.softmax(hid @ Wd2 + bd2, axis=1)
        theta = jax.nn.sigmoid(h[:, H - 1:H])
        gate = gate * theta + gate_state * (1.0 - theta)
        kstate = sum(gate[:, c:c + 1] * new_state[c] for c in range(C))
        pred = kstate[:, S - 1:S]
        pred = jnp.maximum(pred, 0.0) - jnp.maximum(pred - 1.0, 0.0)
        error = pred - y_t
        penalty = theta * (1.0 - error ** 2).reshape(1, B)
        gate_state = gate
        o_list.append(pred[:, 0])
        p_list.append(penalty)
    return jnp.stack(o_list, axis=1), jnp.stack(p_list, axis=1)


if __name__ == "__main__":
    key = jax.random.PRNGKey(0)
    k_x, k_y, k_st, k_err, k_gate, k_par = jax.random.split(key, 6)

    x = jax.random.uniform(k_x, (B, SEQ), jnp.float32)
    y = jax.random.uniform(k_y, (B, SEQ), jnp.float32)

    # rand_state().unsqueeze(0).repeat(batch, 1)
    kstate0 = jnp.tile(jax.random.uniform(k_st, (1, S), jnp.float32), (B, 1))
    # error = torch.rand(batch)
    err0 = jax.random.uniform(k_err, (B, 1), jnp.float32)
    # gate_state = softmax(torch.rand(batch, num_cells), dim=1)
    gate0 = jax.nn.softmax(jax.random.uniform(k_gate, (B, C), jnp.float32), axis=1)

    params = make_params(k_par)

    o, p = discmaker2_forward(x, y, kstate0, gate0, err0, params)
    jax.block_until_ready((o, p))

    o_ref, p_ref = discmaker2_reference(x, y, kstate0, gate0, err0, params)
    assert o.shape == (B, SEQ) and p.shape == (B, SEQ, B)
    assert jnp.allclose(o, o_ref, atol=2e-3, rtol=2e-3)
    assert jnp.allclose(p, p_ref, atol=2e-3, rtol=2e-3)

    print("KERNEL_OK")
</pallas_src>

<mosaic_0001>
module attributes {stable_mosaic.version = 11 : i64} {
  func.func @discmaker2_kernel(%arg0: memref<8x8xf32, #tpu.memory_space<vmem>>, %arg1: memref<8x8xf32, #tpu.memory_space<vmem>>, %arg2: memref<8x8xf32, #tpu.memory_space<vmem>>, %arg3: memref<8x4xf32, #tpu.memory_space<vmem>>, %arg4: memref<8x1xf32, #tpu.memory_space<vmem>>, %arg5: memref<8x40xf32, #tpu.memory_space<vmem>>, %arg6: memref<1x40xf32, #tpu.memory_space<vmem>>, %arg7: memref<8x16xf32, #tpu.memory_space<vmem>>, %arg8: memref<1x16xf32, #tpu.memory_space<vmem>>, %arg9: memref<16x16xf32, #tpu.memory_space<vmem>>, %arg10: memref<1x16xf32, #tpu.memory_space<vmem>>, %arg11: memref<16x64xf32, #tpu.memory_space<vmem>>, %arg12: memref<1x64xf32, #tpu.memory_space<vmem>>, %arg13: memref<64x4xf32, #tpu.memory_space<vmem>>, %arg14: memref<1x4xf32, #tpu.memory_space<vmem>>, %arg15: memref<8x8xf32, #tpu.memory_space<vmem>>, %arg16: memref<8x64xf32, #tpu.memory_space<vmem>>) attributes {dimension_semantics = [], scalar_prefetch = 0 : i64, scratch_operands = 0 : i64, tpu.core_type = #tpu.core_type<tc>} {
    %c0 = arith.constant 0 : index
    %c0_0 = arith.constant 0 : index
    %0 = vector.load %arg0[%c0, %c0_0] : memref<8x8xf32, #tpu.memory_space<vmem>>, vector<8x8xf32>
    %c0_1 = arith.constant 0 : index
    %c0_2 = arith.constant 0 : index
    %1 = vector.load %arg1[%c0_1, %c0_2] : memref<8x8xf32, #tpu.memory_space<vmem>>, vector<8x8xf32>
    %c0_3 = arith.constant 0 : index
    %c0_4 = arith.constant 0 : index
    %2 = vector.load %arg5[%c0_3, %c0_4] : memref<8x40xf32, #tpu.memory_space<vmem>>, vector<8x40xf32>
    %c0_5 = arith.constant 0 : index
    %c0_6 = arith.constant 0 : index
    %3 = vector.load %arg6[%c0_5, %c0_6] : memref<1x40xf32, #tpu.memory_space<vmem>>, vector<1x40xf32>
    %c0_7 = arith.constant 0 : index
    %c0_8 = arith.constant 0 : index
    %4 = vector.load %arg7[%c0_7, %c0_8] : memref<8x16xf32, #tpu.memory_space<vmem>>, vector<8x16xf32>
    %c0_9 = arith.constant 0 : index
    %c0_10 = arith.constant 0 : index
    %5 = vector.load %arg8[%c0_9, %c0_10] : memref<1x16xf32, #tpu.memory_space<vmem>>, vector<1x16xf32>
    %c0_11 = arith.constant 0 : index
    %c0_12 = arith.constant 0 : index
    %6 = vector.load %arg9[%c0_11, %c0_12] : memref<16x16xf32, #tpu.memory_space<vmem>>, vector<16x16xf32>
    %c0_13 = arith.constant 0 : index
    %c0_14 = arith.constant 0 : index
    %7 = vector.load %arg10[%c0_13, %c0_14] : memref<1x16xf32, #tpu.memory_space<vmem>>, vector<1x16xf32>
    %c0_15 = arith.constant 0 : index
    %c0_16 = arith.constant 0 : index
    %8 = vector.load %arg11[%c0_15, %c0_16] : memref<16x64xf32, #tpu.memory_space<vmem>>, vector<16x64xf32>
    %c0_17 = arith.constant 0 : index
    %c0_18 = arith.constant 0 : index
    %9 = vector.load %arg12[%c0_17, %c0_18] : memref<1x64xf32, #tpu.memory_space<vmem>>, vector<1x64xf32>
    %c0_19 = arith.constant 0 : index
    %c0_20 = arith.constant 0 : index
    %10 = vector.load %arg13[%c0_19, %c0_20] : memref<64x4xf32, #tpu.memory_space<vmem>>, vector<64x4xf32>
    %c0_21 = arith.constant 0 : index
    %c0_22 = arith.constant 0 : index
    %11 = vector.load %arg14[%c0_21, %c0_22] : memref<1x4xf32, #tpu.memory_space<vmem>>, vector<1x4xf32>
    %c0_23 = arith.constant 0 : index
    %c0_24 = arith.constant 0 : index
    %12 = vector.load %arg2[%c0_23, %c0_24] : memref<8x8xf32, #tpu.memory_space<vmem>>, vector<8x8xf32>
    %c0_25 = arith.constant 0 : index
    %c0_26 = arith.constant 0 : index
    %13 = vector.load %arg3[%c0_25, %c0_26] : memref<8x4xf32, #tpu.memory_space<vmem>>, vector<8x4xf32>
    %c0_27 = arith.constant 0 : index
    %c0_28 = arith.constant 0 : index
    %14 = vector.load %arg4[%c0_27, %c0_28] : memref<8x1xf32, #tpu.memory_space<vmem>>, vector<8x1xf32>
    %15 = vector.extract_strided_slice %0 {offsets = [0, 0], sizes = [8, 1], strides = [1, 1]} : vector<8x8xf32> to vector<8x1xf32>
    %16 = vector.extract_strided_slice %1 {offsets = [0, 0], sizes = [8, 1], strides = [1, 1]} : vector<8x8xf32> to vector<8x1xf32>
    %cst = arith.constant dense<0.000000e+00> : vector<8x40xf32>
    %17 = tpu.matmul %12, %2, %cst {dimension_numbers = #tpu.dot_dimension_numbers<[1], [0], [0], [1], [0, 0, 1, 1], [], []>} : vector<8x8xf32>, vector<8x40xf32>, vector<8x40xf32> -> vector<8x40xf32>
    %18 = vector.broadcast %15 : vector<8x1xf32> to vector<8x40xf32>
    %19 = vector.broadcast %3 : vector<1x40xf32> to vector<8x40xf32>
    %20 = arith.mulf %18, %19 : vector<8x40xf32>
    %21 = arith.addf %17, %20 : vector<8x40xf32>
    %22 = math.tanh %21 : vector<8x40xf32>
    %23 = vector.extract_strided_slice %22 {offsets = [0, 32], sizes = [8, 8], strides = [1, 1]} : vector<8x40xf32> to vector<8x8xf32>
    %cst_29 = arith.constant dense<0.000000e+00> : vector<8x16xf32>
    %24 = tpu.matmul %23, %4, %cst_29 {dimension_numbers = #tpu.dot_dimension_numbers<[1], [0], [0], [1], [0, 0, 1, 1], [], []>} : vector<8x8xf32>, vector<8x16xf32>, vector<8x16xf32> -> vector<8x16xf32>
    %25 = vector.broadcast %14 : vector<8x1xf32> to vector<8x16xf32>
    %26 = vector.broadcast %5 : vector<1x16xf32> to vector<8x16xf32>
    %27 = arith.mulf %25, %26 : vector<8x16xf32>
    %28 = arith.addf %24, %27 : vector<8x16xf32>
    %29 = vector.broadcast %7 : vector<1x16xf32> to vector<8x16xf32>
    %30 = arith.addf %28, %29 : vector<8x16xf32>
    %31 = math.tanh %30 : vector<8x16xf32>
    %cst_30 = arith.constant dense<0.000000e+00> : vector<8x64xf32>
    %32 = tpu.matmul %31, %8, %cst_30 {dimension_numbers = #tpu.dot_dimension_numbers<[1], [0], [0], [1], [0, 0, 1, 1], [], []>} : vector<8x16xf32>, vector<16x64xf32>, vector<8x64xf32> -> vector<8x64xf32>
    %33 = vector.broadcast %9 : vector<1x64xf32> to vector<8x64xf32>
    %34 = arith.addf %32, %33 : vector<8x64xf32>
    %cst_31 = arith.constant 0.000000e+00 : f32
    %35 = vector.broadcast %cst_31 : f32 to vector<8x64xf32>
    %36 = arith.maximumf %34, %35 : vector<8x64xf32>
    %cst_32 = arith.constant dense<0.000000e+00> : vector<8x4xf32>
    %37 = tpu.matmul %36, %10, %cst_32 {dimension_numbers = #tpu.dot_dimension_numbers<[1], [0], [0], [1], [0, 0, 1, 1], [], []>} : vector<8x64xf32>, vector<64x4xf32>, vector<8x4xf32> -> vector<8x4xf32>
    %38 = vector.broadcast %11 : vector<1x4xf32> to vector<8x4xf32>
    %39 = arith.addf %37, %38 : vector<8x4xf32>
    %cst_33 = arith.constant dense<0xFF800000> : vector<8xf32>
    %40 = vector.multi_reduction <maximumf>, %39, %cst_33 [1] : vector<8x4xf32> to vector<8xf32>
    %41 = vector.shape_cast %40 : vector<8xf32> to vector<8x1xf32>
    %42 = vector.broadcast %41 : vector<8x1xf32> to vector<8x4xf32>
    %43 = arith.subf %39, %42 : vector<8x4xf32>
    %44 = math.exp %43 : vector<8x4xf32>
    %cst_34 = arith.constant dense<0.000000e+00> : vector<8xf32>
    %45 = vector.multi_reduction <add>, %44, %cst_34 [1] : vector<8x4xf32> to vector<8xf32>
    %46 = vector.shape_cast %45 : vector<8xf32> to vector<8x1xf32>
    %47 = tpu.reciprocal %46 {approx = true} : vector<8x1xf32> -> vector<8x1xf32>
    %48 = vector.broadcast %47 : vector<8x1xf32> to vector<8x4xf32>
    %49 = arith.mulf %44, %48 : vector<8x4xf32>
    %50 = vector.extract_strided_slice %31 {offsets = [0, 15], sizes = [8, 1], strides = [1, 1]} : vector<8x16xf32> to vector<8x1xf32>
    %51 = arith.negf %50 : vector<8x1xf32>
    %52 = math.exp %51 : vector<8x1xf32>
    %cst_35 = arith.constant 1.000000e+00 : f32
    %53 = vector.broadcast %cst_35 : f32 to vector<8x1xf32>
    %54 = arith.addf %53, %52 : vector<8x1xf32>
    %55 = arith.divf %53, %54 : vector<8x1xf32>
    %56 = vector.broadcast %55 : vector<8x1xf32> to vector<8x4xf32>
    %57 = arith.mulf %49, %56 : vector<8x4xf32>
    %cst_36 = arith.constant 1.000000e+00 : f32
    %58 = vector.broadcast %cst_36 : f32 to vector<8x1xf32>
    %59 = arith.subf %58, %55 : vector<8x1xf32>
    %60 = vector.broadcast %59 : vector<8x1xf32> to vector<8x4xf32>
    %61 = arith.mulf %13, %60 : vector<8x4xf32>
    %62 = arith.addf %57, %61 : vector<8x4xf32>
    %63 = vector.extract_strided_slice %62 {offsets = [0, 0], sizes = [8, 1], strides = [1, 1]} : vector<8x4xf32> to vector<8x1xf32>
    %64 = vector.extract_strided_slice %22 {offsets = [0, 0], sizes = [8, 8], strides = [1, 1]} : vector<8x40xf32> to vector<8x8xf32>
    %65 = vector.broadcast %63 : vector<8x1xf32> to vector<8x8xf32>
    %66 = arith.mulf %65, %64 : vector<8x8xf32>
    %cst_37 = arith.constant 0.000000e+00 : f32
    %67 = vector.broadcast %cst_37 : f32 to vector<8x8xf32>
    %68 = arith.addf %67, %66 : vector<8x8xf32>
    %69 = vector.extract_strided_slice %62 {offsets = [0, 1], sizes = [8, 1], strides = [1, 1]} : vector<8x4xf32> to vector<8x1xf32>
    %70 = vector.extract_strided_slice %22 {offsets = [0, 8], sizes = [8, 8], strides = [1, 1]} : vector<8x40xf32> to vector<8x8xf32>
    %71 = vector.broadcast %69 : vector<8x1xf32> to vector<8x8xf32>
    %72 = arith.mulf %71, %70 : vector<8x8xf32>
    %73 = arith.addf %68, %72 : vector<8x8xf32>
    %74 = vector.extract_strided_slice %62 {offsets = [0, 2], sizes = [8, 1], strides = [1, 1]} : vector<8x4xf32> to vector<8x1xf32>
    %75 = vector.extract_strided_slice %22 {offsets = [0, 16], sizes = [8, 8], strides = [1, 1]} : vector<8x40xf32> to vector<8x8xf32>
    %76 = vector.broadcast %74 : vector<8x1xf32> to vector<8x8xf32>
    %77 = arith.mulf %76, %75 : vector<8x8xf32>
    %78 = arith.addf %73, %77 : vector<8x8xf32>
    %79 = vector.extract_strided_slice %62 {offsets = [0, 3], sizes = [8, 1], strides = [1, 1]} : vector<8x4xf32> to vector<8x1xf32>
    %80 = vector.extract_strided_slice %22 {offsets = [0, 24], sizes = [8, 8], strides = [1, 1]} : vector<8x40xf32> to vector<8x8xf32>
    %81 = vector.broadcast %79 : vector<8x1xf32> to vector<8x8xf32>
    %82 = arith.mulf %81, %80 : vector<8x8xf32>
    %83 = arith.addf %78, %82 : vector<8x8xf32>
    %84 = vector.extract_strided_slice %83 {offsets = [0, 7], sizes = [8, 1], strides = [1, 1]} : vector<8x8xf32> to vector<8x1xf32>
    %cst_38 = arith.constant 0.000000e+00 : f32
    %85 = vector.broadcast %cst_38 : f32 to vector<8x1xf32>
    %86 = arith.maximumf %84, %85 : vector<8x1xf32>
    %cst_39 = arith.constant 1.000000e+00 : f32
    %87 = vector.broadcast %cst_39 : f32 to vector<8x1xf32>
    %88 = arith.subf %84, %87 : vector<8x1xf32>
    %cst_40 = arith.constant 0.000000e+00 : f32
    %89 = vector.broadcast %cst_40 : f32 to vector<8x1xf32>
    %90 = arith.maximumf %88, %89 : vector<8x1xf32>
    %91 = arith.subf %86, %90 : vector<8x1xf32>
    %92 = arith.subf %91, %16 : vector<8x1xf32>
    %93 = arith.mulf %92, %92 : vector<8x1xf32>
    %cst_41 = arith.constant 1.000000e+00 : f32
    %94 = vector.broadcast %cst_41 : f32 to vector<8x1xf32>
    %95 = arith.subf %94, %93 : vector<8x1xf32>
    %96 = vector.extract_strided_slice %0 {offsets = [0, 1], sizes = [8, 1], strides = [1, 1]} : vector<8x8xf32> to vector<8x1xf32>
    %97 = vector.extract_strided_slice %1 {offsets = [0, 1], sizes = [8, 1], strides = [1, 1]} : vector<8x8xf32> to vector<8x1xf32>
    %cst_42 = arith.constant dense<0.000000e+00> : vector<8x40xf32>
    %98 = tpu.matmul %83, %2, %cst_42 {dimension_numbers = #tpu.dot_dimension_numbers<[1], [0], [0], [1], [0, 0, 1, 1], [], []>} : vector<8x8xf32>, vector<8x40xf32>, vector<8x40xf32> -> vector<8x40xf32>
    %99 = vector.broadcast %96 : vector<8x1xf32> to vector<8x40xf32>
    %100 = vector.broadcast %3 : vector<1x40xf32> to vector<8x40xf32>
    %101 = arith.mulf %99, %100 : vector<8x40xf32>
    %102 = arith.addf %98, %101 : vector<8x40xf32>
    %103 = math.tanh %102 : vector<8x40xf32>
    %104 = vector.extract_strided_slice %103 {offsets = [0, 32], sizes = [8, 8], strides = [1, 1]} : vector<8x40xf32> to vector<8x8xf32>
    %cst_43 = arith.constant dense<0.000000e+00> : vector<8x16xf32>
    %105 = tpu.matmul %104, %4, %cst_43 {dimension_numbers = #tpu.dot_dimension_numbers<[1], [0], [0], [1], [0, 0, 1, 1], [], []>} : vector<8x8xf32>, vector<8x16xf32>, vector<8x16xf32> -> vector<8x16xf32>
    %106 = vector.broadcast %92 : vector<8x1xf32> to vector<8x16xf32>
    %107 = vector.broadcast %5 : vector<1x16xf32> to vector<8x16xf32>
    %108 = arith.mulf %106, %107 : vector<8x16xf32>
    %109 = arith.addf %105, %108 : vector<8x16xf32>
    %110 = vector.broadcast %7 : vector<1x16xf32> to vector<8x16xf32>
    %111 = arith.addf %109, %110 : vector<8x16xf32>
    %cst_44 = arith.constant dense<0.000000e+00> : vector<8x16xf32>
    %112 = tpu.matmul %31, %6, %cst_44 {dimension_numbers = #tpu.dot_dimension_numbers<[1], [0], [0], [1], [0, 0, 1, 1], [], []>} : vector<8x16xf32>, vector<16x16xf32>, vector<8x16xf32> -> vector<8x16xf32>
    %113 = arith.addf %111, %112 : vector<8x16xf32>
    %114 = math.tanh %113 : vector<8x16xf32>
    %cst_45 = arith.constant dense<0.000000e+00> : vector<8x64xf32>
    %115 = tpu.matmul %114, %8, %cst_45 {dimension_numbers = #tpu.dot_dimension_numbers<[1], [0], [0], [1], [0, 0, 1, 1], [], []>} : vector<8x16xf32>, vector<16x64xf32>, vector<8x64xf32> -> vector<8x64xf32>
    %116 = vector.broadcast %9 : vector<1x64xf32> to vector<8x64xf32>
    %117 = arith.addf %115, %116 : vector<8x64xf32>
    %cst_46 = arith.constant 0.000000e+00 : f32
    %118 = vector.broadcast %cst_46 : f32 to vector<8x64xf32>
    %119 = arith.maximumf %117, %118 : vector<8x64xf32>
    %cst_47 = arith.constant dense<0.000000e+00> : vector<8x4xf32>
    %120 = tpu.matmul %119, %10, %cst_47 {dimension_numbers = #tpu.dot_dimension_numbers<[1], [0], [0], [1], [0, 0, 1, 1], [], []>} : vector<8x64xf32>, vector<64x4xf32>, vector<8x4xf32> -> vector<8x4xf32>
    %121 = vector.broadcast %11 : vector<1x4xf32> to vector<8x4xf32>
    %122 = arith.addf %120, %121 : vector<8x4xf32>
    %cst_48 = arith.constant dense<0xFF800000> : vector<8xf32>
    %123 = vector.multi_reduction <maximumf>, %122, %cst_48 [1] : vector<8x4xf32> to vector<8xf32>
    %124 = vector.shape_cast %123 : vector<8xf32> to vector<8x1xf32>
    %125 = vector.broadcast %124 : vector<8x1xf32> to vector<8x4xf32>
    %126 = arith.subf %122, %125 : vector<8x4xf32>
    %127 = math.exp %126 : vector<8x4xf32>
    %cst_49 = arith.constant dense<0.000000e+00> : vector<8xf32>
    %128 = vector.multi_reduction <add>, %127, %cst_49 [1] : vector<8x4xf32> to vector<8xf32>
    %129 = vector.shape_cast %128 : vector<8xf32> to vector<8x1xf32>
    %130 = tpu.reciprocal %129 {approx = true} : vector<8x1xf32> -> vector<8x1xf32>
    %131 = vector.broadcast %130 : vector<8x1xf32> to vector<8x4xf32>
    %132 = arith.mulf %127, %131 : vector<8x4xf32>
    %133 = vector.extract_strided_slice %114 {offsets = [0, 15], sizes = [8, 1], strides = [1, 1]} : vector<8x16xf32> to vector<8x1xf32>
    %134 = arith.negf %133 : vector<8x1xf32>
    %135 = math.exp %134 : vector<8x1xf32>
    %cst_50 = arith.constant 1.000000e+00 : f32
    %136 = vector.broadcast %cst_50 : f32 to vector<8x1xf32>
    %137 = arith.addf %136, %135 : vector<8x1xf32>
    %138 = arith.divf %136, %137 : vector<8x1xf32>
    %139 = vector.broadcast %138 : vector<8x1xf32> to vector<8x4xf32>
    %140 = arith.mulf %132, %139 : vector<8x4xf32>
    %cst_51 = arith.constant 1.000000e+00 : f32
    %141 = vector.broadcast %cst_51 : f32 to vector<8x1xf32>
    %142 = arith.subf %141, %138 : vector<8x1xf32>
    %143 = vector.broadcast %142 : vector<8x1xf32> to vector<8x4xf32>
    %144 = arith.mulf %62, %143 : vector<8x4xf32>
    %145 = arith.addf %140, %144 : vector<8x4xf32>
    %146 = vector.extract_strided_slice %145 {offsets = [0, 0], sizes = [8, 1], strides = [1, 1]} : vector<8x4xf32> to vector<8x1xf32>
    %147 = vector.extract_strided_slice %103 {offsets = [0, 0], sizes = [8, 8], strides = [1, 1]} : vector<8x40xf32> to vector<8x8xf32>
    %148 = vector.broadcast %146 : vector<8x1xf32> to vector<8x8xf32>
    %149 = arith.mulf %148, %147 : vector<8x8xf32>
    %cst_52 = arith.constant 0.000000e+00 : f32
    %150 = vector.broadcast %cst_52 : f32 to vector<8x8xf32>
    %151 = arith.addf %150, %149 : vector<8x8xf32>
    %152 = vector.extract_strided_slice %145 {offsets = [0, 1], sizes = [8, 1], strides = [1, 1]} : vector<8x4xf32> to vector<8x1xf32>
    %153 = vector.extract_strided_slice %103 {offsets = [0, 8], sizes = [8, 8], strides = [1, 1]} : vector<8x40xf32> to vector<8x8xf32>
    %154 = vector.broadcast %152 : vector<8x1xf32> to vector<8x8xf32>
    %155 = arith.mulf %154, %153 : vector<8x8xf32>
    %156 = arith.addf %151, %155 : vector<8x8xf32>
    %157 = vector.extract_strided_slice %145 {offsets = [0, 2], sizes = [8, 1], strides = [1, 1]} : vector<8x4xf32> to vector<8x1xf32>
    %158 = vector.extract_strided_slice %103 {offsets = [0, 16], sizes = [8, 8], strides = [1, 1]} : vector<8x40xf32> to vector<8x8xf32>
    %159 = vector.broadcast %157 : vector<8x1xf32> to vector<8x8xf32>
    %160 = arith.mulf %159, %158 : vector<8x8xf32>
    %161 = arith.addf %156, %160 : vector<8x8xf32>
    %162 = vector.extract_strided_slice %145 {offsets = [0, 3], sizes = [8, 1], strides = [1, 1]} : vector<8x4xf32> to vector<8x1xf32>
    %163 = vector.extract_strided_slice %103 {offsets = [0, 24], sizes = [8, 8], strides = [1, 1]} : vector<8x40xf32> to vector<8x8xf32>
    %164 = vector.broadcast %162 : vector<8x1xf32> to vector<8x8xf32>
    %165 = arith.mulf %164, %163 : vector<8x8xf32>
    %166 = arith.addf %161, %165 : vector<8x8xf32>
    %167 = vector.extract_strided_slice %166 {offsets = [0, 7], sizes = [8, 1], strides = [1, 1]} : vector<8x8xf32> to vector<8x1xf32>
    %cst_53 = arith.constant 0.000000e+00 : f32
    %168 = vector.broadcast %cst_53 : f32 to vector<8x1xf32>
    %169 = arith.maximumf %167, %168 : vector<8x1xf32>
    %cst_54 = arith.constant 1.000000e+00 : f32
    %170 = vector.broadcast %cst_54 : f32 to vector<8x1xf32>
    %171 = arith.subf %167, %170 : vector<8x1xf32>
    %cst_55 = arith.constant 0.000000e+00 : f32
    %172 = vector.broadcast %cst_55 : f32 to vector<8x1xf32>
    %173 = arith.maximumf %171, %172 : vector<8x1xf32>
    %174 = arith.subf %169, %173 : vector<8x1xf32>
    %175 = arith.subf %174, %97 : vector<8x1xf32>
    %176 = arith.mulf %175, %175 : vector<8x1xf32>
    %cst_56 = arith.constant 1.000000e+00 : f32
    %177 = vector.broadcast %cst_56 : f32 to vector<8x1xf32>
    %178 = arith.subf %177, %176 : vector<8x1xf32>
    %179 = vector.extract_strided_slice %0 {offsets = [0, 2], sizes = [8, 1], strides = [1, 1]} : vector<8x8xf32> to vector<8x1xf32>
    %180 = vector.extract_strided_slice %1 {offsets = [0, 2], sizes = [8, 1], strides = [1, 1]} : vector<8x8xf32> to vector<8x1xf32>
    %cst_57 = arith.constant dense<0.000000e+00> : vector<8x40xf32>
    %181 = tpu.matmul %166, %2, %cst_57 {dimension_numbers = #tpu.dot_dimension_numbers<[1], [0], [0], [1], [0, 0, 1, 1], [], []>} : vector<8x8xf32>, vector<8x40xf32>, vector<8x40xf32> -> vector<8x40xf32>
    %182 = vector.broadcast %179 : vector<8x1xf32> to vector<8x40xf32>
    %183 = vector.broadcast %3 : vector<1x40xf32> to vector<8x40xf32>
    %184 = arith.mulf %182, %183 : vector<8x40xf32>
    %185 = arith.addf %181, %184 : vector<8x40xf32>
    %186 = math.tanh %185 : vector<8x40xf32>
    %187 = vector.extract_strided_slice %186 {offsets = [0, 32], sizes = [8, 8], strides = [1, 1]} : vector<8x40xf32> to vector<8x8xf32>
    %cst_58 = arith.constant dense<0.000000e+00> : vector<8x16xf32>
    %188 = tpu.matmul %187, %4, %cst_58 {dimension_numbers = #tpu.dot_dimension_numbers<[1], [0], [0], [1], [0, 0, 1, 1], [], []>} : vector<8x8xf32>, vector<8x16xf32>, vector<8x16xf32> -> vector<8x16xf32>
    %189 = vector.broadcast %175 : vector<8x1xf32> to vector<8x16xf32>
    %190 = vector.broadcast %5 : vector<1x16xf32> to vector<8x16xf32>
    %191 = arith.mulf %189, %190 : vector<8x16xf32>
    %192 = arith.addf %188, %191 : vector<8x16xf32>
    %193 = vector.broadcast %7 : vector<1x16xf32> to vector<8x16xf32>
    %194 = arith.addf %192, %193 : vector<8x16xf32>
    %cst_59 = arith.constant dense<0.000000e+00> : vector<8x16xf32>
    %195 = tpu.matmul %114, %6, %cst_59 {dimension_numbers = #tpu.dot_dimension_numbers<[1], [0], [0], [1], [0, 0, 1, 1], [], []>} : vector<8x16xf32>, vector<16x16xf32>, vector<8x16xf32> -> vector<8x16xf32>
    %196 = arith.addf %194, %195 : vector<8x16xf32>
    %197 = math.tanh %196 : vector<8x16xf32>
    %cst_60 = arith.constant dense<0.000000e+00> : vector<8x64xf32>
    %198 = tpu.matmul %197, %8, %cst_60 {dimension_numbers = #tpu.dot_dimension_numbers<[1], [0], [0], [1], [0, 0, 1, 1], [], []>} : vector<8x16xf32>, vector<16x64xf32>, vector<8x64xf32> -> vector<8x64xf32>
    %199 = vector.broadcast %9 : vector<1x64xf32> to vector<8x64xf32>
    %200 = arith.addf %198, %199 : vector<8x64xf32>
    %cst_61 = arith.constant 0.000000e+00 : f32
    %201 = vector.broadcast %cst_61 : f32 to vector<8x64xf32>
    %202 = arith.maximumf %200, %201 : vector<8x64xf32>
    %cst_62 = arith.constant dense<0.000000e+00> : vector<8x4xf32>
    %203 = tpu.matmul %202, %10, %cst_62 {dimension_numbers = #tpu.dot_dimension_numbers<[1], [0], [0], [1], [0, 0, 1, 1], [], []>} : vector<8x64xf32>, vector<64x4xf32>, vector<8x4xf32> -> vector<8x4xf32>
    %204 = vector.broadcast %11 : vector<1x4xf32> to vector<8x4xf32>
    %205 = arith.addf %203, %204 : vector<8x4xf32>
    %cst_63 = arith.constant dense<0xFF800000> : vector<8xf32>
    %206 = vector.multi_reduction <maximumf>, %205, %cst_63 [1] : vector<8x4xf32> to vector<8xf32>
    %207 = vector.shape_cast %206 : vector<8xf32> to vector<8x1xf32>
    %208 = vector.broadcast %207 : vector<8x1xf32> to vector<8x4xf32>
    %209 = arith.subf %205, %208 : vector<8x4xf32>
    %210 = math.exp %209 : vector<8x4xf32>
    %cst_64 = arith.constant dense<0.000000e+00> : vector<8xf32>
    %211 = vector.multi_reduction <add>, %210, %cst_64 [1] : vector<8x4xf32> to vector<8xf32>
    %212 = vector.shape_cast %211 : vector<8xf32> to vector<8x1xf32>
    %213 = tpu.reciprocal %212 {approx = true} : vector<8x1xf32> -> vector<8x1xf32>
    %214 = vector.broadcast %213 : vector<8x1xf32> to vector<8x4xf32>
    %215 = arith.mulf %210, %214 : vector<8x4xf32>
    %216 = vector.extract_strided_slice %197 {offsets = [0, 15], sizes = [8, 1], strides = [1, 1]} : vector<8x16xf32> to vector<8x1xf32>
    %217 = arith.negf %216 : vector<8x1xf32>
    %218 = math.exp %217 : vector<8x1xf32>
    %cst_65 = arith.constant 1.000000e+00 : f32
    %219 = vector.broadcast %cst_65 : f32 to vector<8x1xf32>
    %220 = arith.addf %219, %218 : vector<8x1xf32>
    %221 = arith.divf %219, %220 : vector<8x1xf32>
    %222 = vector.broadcast %221 : vector<8x1xf32> to vector<8x4xf32>
    %223 = arith.mulf %215, %222 : vector<8x4xf32>
    %cst_66 = arith.constant 1.000000e+00 : f32
    %224 = vector.broadcast %cst_66 : f32 to vector<8x1xf32>
    %225 = arith.subf %224, %221 : vector<8x1xf32>
    %226 = vector.broadcast %225 : vector<8x1xf32> to vector<8x4xf32>
    %227 = arith.mulf %145, %226 : vector<8x4xf32>
    %228 = arith.addf %223, %227 : vector<8x4xf32>
    %229 = vector.extract_strided_slice %228 {offsets = [0, 0], sizes = [8, 1], strides = [1, 1]} : vector<8x4xf32> to vector<8x1xf32>
    %230 = vector.extract_strided_slice %186 {offsets = [0, 0], sizes = [8, 8], strides = [1, 1]} : vector<8x40xf32> to vector<8x8xf32>
    %231 = vector.broadcast %229 : vector<8x1xf32> to vector<8x8xf32>
    %232 = arith.mulf %231, %230 : vector<8x8xf32>
    %cst_67 = arith.constant 0.000000e+00 : f32
    %233 = vector.broadcast %cst_67 : f32 to vector<8x8xf32>
    %234 = arith.addf %233, %232 : vector<8x8xf32>
    %235 = vector.extract_strided_slice %228 {offsets = [0, 1], sizes = [8, 1], strides = [1, 1]} : vector<8x4xf32> to vector<8x1xf32>
    %236 = vector.extract_strided_slice %186 {offsets = [0, 8], sizes = [8, 8], strides = [1, 1]} : vector<8x40xf32> to vector<8x8xf32>
    %237 = vector.broadcast %235 : vector<8x1xf32> to vector<8x8xf32>
    %238 = arith.mulf %237, %236 : vector<8x8xf32>
    %239 = arith.addf %234, %238 : vector<8x8xf32>
    %240 = vector.extract_strided_slice %228 {offsets = [0, 2], sizes = [8, 1], strides = [1, 1]} : vector<8x4xf32> to vector<8x1xf32>
    %241 = vector.extract_strided_slice %186 {offsets = [0, 16], sizes = [8, 8], strides = [1, 1]} : vector<8x40xf32> to vector<8x8xf32>
    %242 = vector.broadcast %240 : vector<8x1xf32> to vector<8x8xf32>
    %243 = arith.mulf %242, %241 : vector<8x8xf32>
    %244 = arith.addf %239, %243 : vector<8x8xf32>
    %245 = vector.extract_strided_slice %228 {offsets = [0, 3], sizes = [8, 1], strides = [1, 1]} : vector<8x4xf32> to vector<8x1xf32>
    %246 = vector.extract_strided_slice %186 {offsets = [0, 24], sizes = [8, 8], strides = [1, 1]} : vector<8x40xf32> to vector<8x8xf32>
    %247 = vector.broadcast %245 : vector<8x1xf32> to vector<8x8xf32>
    %248 = arith.mulf %247, %246 : vector<8x8xf32>
    %249 = arith.addf %244, %248 : vector<8x8xf32>
    %250 = vector.extract_strided_slice %249 {offsets = [0, 7], sizes = [8, 1], strides = [1, 1]} : vector<8x8xf32> to vector<8x1xf32>
    %cst_68 = arith.constant 0.000000e+00 : f32
    %251 = vector.broadcast %cst_68 : f32 to vector<8x1xf32>
    %252 = arith.maximumf %250, %251 : vector<8x1xf32>
    %cst_69 = arith.constant 1.000000e+00 : f32
    %253 = vector.broadcast %cst_69 : f32 to vector<8x1xf32>
    %254 = arith.subf %250, %253 : vector<8x1xf32>
    %cst_70 = arith.constant 0.000000e+00 : f32
    %255 = vector.broadcast %cst_70 : f32 to vector<8x1xf32>
    %256 = arith.maximumf %254, %255 : vector<8x1xf32>
    %257 = arith.subf %252, %256 : vector<8x1xf32>
    %258 = arith.subf %257, %180 : vector<8x1xf32>
    %259 = arith.mulf %258, %258 : vector<8x1xf32>
    %cst_71 = arith.constant 1.000000e+00 : f32
    %260 = vector.broadcast %cst_71 : f32 to vector<8x1xf32>
    %261 = arith.subf %260, %259 : vector<8x1xf32>
    %262 = vector.extract_strided_slice %0 {offsets = [0, 3], sizes = [8, 1], strides = [1, 1]} : vector<8x8xf32> to vector<8x1xf32>
    %263 = vector.extract_strided_slice %1 {offsets = [0, 3], sizes = [8, 1], strides = [1, 1]} : vector<8x8xf32> to vector<8x1xf32>
    %cst_72 = arith.constant dense<0.000000e+00> : vector<8x40xf32>
    %264 = tpu.matmul %249, %2, %cst_72 {dimension_numbers = #tpu.dot_dimension_numbers<[1], [0], [0], [1], [0, 0, 1, 1], [], []>} : vector<8x8xf32>, vector<8x40xf32>, vector<8x40xf32> -> vector<8x40xf32>
    %265 = vector.broadcast %262 : vector<8x1xf32> to vector<8x40xf32>
    %266 = vector.broadcast %3 : vector<1x40xf32> to vector<8x40xf32>
    %267 = arith.mulf %265, %266 : vector<8x40xf32>
    %268 = arith.addf %264, %267 : vector<8x40xf32>
    %269 = math.tanh %268 : vector<8x40xf32>
    %270 = vector.extract_strided_slice %269 {offsets = [0, 32], sizes = [8, 8], strides = [1, 1]} : vector<8x40xf32> to vector<8x8xf32>
    %cst_73 = arith.constant dense<0.000000e+00> : vector<8x16xf32>
    %271 = tpu.matmul %270, %4, %cst_73 {dimension_numbers = #tpu.dot_dimension_numbers<[1], [0], [0], [1], [0, 0, 1, 1], [], []>} : vector<8x8xf32>, vector<8x16xf32>, vector<8x16xf32> -> vector<8x16xf32>
    %272 = vector.broadcast %258 : vector<8x1xf32> to vector<8x16xf32>
    %273 = vector.broadcast %5 : vector<1x16xf32> to vector<8x16xf32>
    %274 = arith.mulf %272, %273 : vector<8x16xf32>
    %275 = arith.addf %271, %274 : vector<8x16xf32>
    %276 = vector.broadcast %7 : vector<1x16xf32> to vector<8x16xf32>
    %277 = arith.addf %275, %276 : vector<8x16xf32>
    %cst_74 = arith.constant dense<0.000000e+00> : vector<8x16xf32>
    %278 = tpu.matmul %197, %6, %cst_74 {dimension_numbers = #tpu.dot_dimension_numbers<[1], [0], [0], [1], [0, 0, 1, 1], [], []>} : vector<8x16xf32>, vector<16x16xf32>, vector<8x16xf32> -> vector<8x16xf32>
    %279 = arith.addf %277, %278 : vector<8x16xf32>
    %280 = math.tanh %279 : vector<8x16xf32>
    %cst_75 = arith.constant dense<0.000000e+00> : vector<8x64xf32>
    %281 = tpu.matmul %280, %8, %cst_75 {dimension_numbers = #tpu.dot_dimension_numbers<[1], [0], [0], [1], [0, 0, 1, 1], [], []>} : vector<8x16xf32>, vector<16x64xf32>, vector<8x64xf32> -> vector<8x64xf32>
    %282 = vector.broadcast %9 : vector<1x64xf32> to vector<8x64xf32>
    %283 = arith.addf %281, %282 : vector<8x64xf32>
    %cst_76 = arith.constant 0.000000e+00 : f32
    %284 = vector.broadcast %cst_76 : f32 to vector<8x64xf32>
    %285 = arith.maximumf %283, %284 : vector<8x64xf32>
    %cst_77 = arith.constant dense<0.000000e+00> : vector<8x4xf32>
    %286 = tpu.matmul %285, %10, %cst_77 {dimension_numbers = #tpu.dot_dimension_numbers<[1], [0], [0], [1], [0, 0, 1, 1], [], []>} : vector<8x64xf32>, vector<64x4xf32>, vector<8x4xf32> -> vector<8x4xf32>
    %287 = vector.broadcast %11 : vector<1x4xf32> to vector<8x4xf32>
    %288 = arith.addf %286, %287 : vector<8x4xf32>
    %cst_78 = arith.constant dense<0xFF800000> : vector<8xf32>
    %289 = vector.multi_reduction <maximumf>, %288, %cst_78 [1] : vector<8x4xf32> to vector<8xf32>
    %290 = vector.shape_cast %289 : vector<8xf32> to vector<8x1xf32>
    %291 = vector.broadcast %290 : vector<8x1xf32> to vector<8x4xf32>
    %292 = arith.subf %288, %291 : vector<8x4xf32>
    %293 = math.exp %292 : vector<8x4xf32>
    %cst_79 = arith.constant dense<0.000000e+00> : vector<8xf32>
    %294 = vector.multi_reduction <add>, %293, %cst_79 [1] : vector<8x4xf32> to vector<8xf32>
    %295 = vector.shape_cast %294 : vector<8xf32> to vector<8x1xf32>
    %296 = tpu.reciprocal %295 {approx = true} : vector<8x1xf32> -> vector<8x1xf32>
    %297 = vector.broadcast %296 : vector<8x1xf32> to vector<8x4xf32>
    %298 = arith.mulf %293, %297 : vector<8x4xf32>
    %299 = vector.extract_strided_slice %280 {offsets = [0, 15], sizes = [8, 1], strides = [1, 1]} : vector<8x16xf32> to vector<8x1xf32>
    %300 = arith.negf %299 : vector<8x1xf32>
    %301 = math.exp %300 : vector<8x1xf32>
    %cst_80 = arith.constant 1.000000e+00 : f32
    %302 = vector.broadcast %cst_80 : f32 to vector<8x1xf32>
    %303 = arith.addf %302, %301 : vector<8x1xf32>
    %304 = arith.divf %302, %303 : vector<8x1xf32>
    %305 = vector.broadcast %304 : vector<8x1xf32> to vector<8x4xf32>
    %306 = arith.mulf %298, %305 : vector<8x4xf32>
    %cst_81 = arith.constant 1.000000e+00 : f32
    %307 = vector.broadcast %cst_81 : f32 to vector<8x1xf32>
    %308 = arith.subf %307, %304 : vector<8x1xf32>
    %309 = vector.broadcast %308 : vector<8x1xf32> to vector<8x4xf32>
    %310 = arith.mulf %228, %309 : vector<8x4xf32>
    %311 = arith.addf %306, %310 : vector<8x4xf32>
    %312 = vector.extract_strided_slice %311 {offsets = [0, 0], sizes = [8, 1], strides = [1, 1]} : vector<8x4xf32> to vector<8x1xf32>
    %313 = vector.extract_strided_slice %269 {offsets = [0, 0], sizes = [8, 8], strides = [1, 1]} : vector<8x40xf32> to vector<8x8xf32>
    %314 = vector.broadcast %312 : vector<8x1xf32> to vector<8x8xf32>
    %315 = arith.mulf %314, %313 : vector<8x8xf32>
    %cst_82 = arith.constant 0.000000e+00 : f32
    %316 = vector.broadcast %cst_82 : f32 to vector<8x8xf32>
    %317 = arith.addf %316, %315 : vector<8x8xf32>
    %318 = vector.extract_strided_slice %311 {offsets = [0, 1], sizes = [8, 1], strides = [1, 1]} : vector<8x4xf32> to vector<8x1xf32>
    %319 = vector.extract_strided_slice %269 {offsets = [0, 8], sizes = [8, 8], strides = [1, 1]} : vector<8x40xf32> to vector<8x8xf32>
    %320 = vector.broadcast %318 : vector<8x1xf32> to vector<8x8xf32>
    %321 = arith.mulf %320, %319 : vector<8x8xf32>
    %322 = arith.addf %317, %321 : vector<8x8xf32>
    %323 = vector.extract_strided_slice %311 {offsets = [0, 2], sizes = [8, 1], strides = [1, 1]} : vector<8x4xf32> to vector<8x1xf32>
    %324 = vector.extract_strided_slice %269 {offsets = [0, 16], sizes = [8, 8], strides = [1, 1]} : vector<8x40xf32> to vector<8x8xf32>
    %325 = vector.broadcast %323 : vector<8x1xf32> to vector<8x8xf32>
    %326 = arith.mulf %325, %324 : vector<8x8xf32>
    %327 = arith.addf %322, %326 : vector<8x8xf32>
    %328 = vector.extract_strided_slice %311 {offsets = [0, 3], sizes = [8, 1], strides = [1, 1]} : vector<8x4xf32> to vector<8x1xf32>
    %329 = vector.extract_strided_slice %269 {offsets = [0, 24], sizes = [8, 8], strides = [1, 1]} : vector<8x40xf32> to vector<8x8xf32>
    %330 = vector.broadcast %328 : vector<8x1xf32> to vector<8x8xf32>
    %331 = arith.mulf %330, %329 : vector<8x8xf32>
    %332 = arith.addf %327, %331 : vector<8x8xf32>
    %333 = vector.extract_strided_slice %332 {offsets = [0, 7], sizes = [8, 1], strides = [1, 1]} : vector<8x8xf32> to vector<8x1xf32>
    %cst_83 = arith.constant 0.000000e+00 : f32
    %334 = vector.broadcast %cst_83 : f32 to vector<8x1xf32>
    %335 = arith.maximumf %333, %334 : vector<8x1xf32>
    %cst_84 = arith.constant 1.000000e+00 : f32
    %336 = vector.broadcast %cst_84 : f32 to vector<8x1xf32>
    %337 = arith.subf %333, %336 : vector<8x1xf32>
    %cst_85 = arith.constant 0.000000e+00 : f32
    %338 = vector.broadcast %cst_85 : f32 to vector<8x1xf32>
    %339 = arith.maximumf %337, %338 : vector<8x1xf32>
    %340 = arith.subf %335, %339 : vector<8x1xf32>
    %341 = arith.subf %340, %263 : vector<8x1xf32>
    %342 = arith.mulf %341, %341 : vector<8x1xf32>
    %cst_86 = arith.constant 1.000000e+00 : f32
    %343 = vector.broadcast %cst_86 : f32 to vector<8x1xf32>
    %344 = arith.subf %343, %342 : vector<8x1xf32>
    %345 = vector.extract_strided_slice %0 {offsets = [0, 4], sizes = [8, 1], strides = [1, 1]} : vector<8x8xf32> to vector<8x1xf32>
    %346 = vector.extract_strided_slice %1 {offsets = [0, 4], sizes = [8, 1], strides = [1, 1]} : vector<8x8xf32> to vector<8x1xf32>
    %cst_87 = arith.constant dense<0.000000e+00> : vector<8x40xf32>
    %347 = tpu.matmul %332, %2, %cst_87 {dimension_numbers = #tpu.dot_dimension_numbers<[1], [0], [0], [1], [0, 0, 1, 1], [], []>} : vector<8x8xf32>, vector<8x40xf32>, vector<8x40xf32> -> vector<8x40xf32>
    %348 = vector.broadcast %345 : vector<8x1xf32> to vector<8x40xf32>
    %349 = vector.broadcast %3 : vector<1x40xf32> to vector<8x40xf32>
    %350 = arith.mulf %348, %349 : vector<8x40xf32>
    %351 = arith.addf %347, %350 : vector<8x40xf32>
    %352 = math.tanh %351 : vector<8x40xf32>
    %353 = vector.extract_strided_slice %352 {offsets = [0, 32], sizes = [8, 8], strides = [1, 1]} : vector<8x40xf32> to vector<8x8xf32>
    %cst_88 = arith.constant dense<0.000000e+00> : vector<8x16xf32>
    %354 = tpu.matmul %353, %4, %cst_88 {dimension_numbers = #tpu.dot_dimension_numbers<[1], [0], [0], [1], [0, 0, 1, 1], [], []>} : vector<8x8xf32>, vector<8x16xf32>, vector<8x16xf32> -> vector<8x16xf32>
    %355 = vector.broadcast %341 : vector<8x1xf32> to vector<8x16xf32>
    %356 = vector.broadcast %5 : vector<1x16xf32> to vector<8x16xf32>
    %357 = arith.mulf %355, %356 : vector<8x16xf32>
    %358 = arith.addf %354, %357 : vector<8x16xf32>
    %359 = vector.broadcast %7 : vector<1x16xf32> to vector<8x16xf32>
    %360 = arith.addf %358, %359 : vector<8x16xf32>
    %cst_89 = arith.constant dense<0.000000e+00> : vector<8x16xf32>
    %361 = tpu.matmul %280, %6, %cst_89 {dimension_numbers = #tpu.dot_dimension_numbers<[1], [0], [0], [1], [0, 0, 1, 1], [], []>} : vector<8x16xf32>, vector<16x16xf32>, vector<8x16xf32> -> vector<8x16xf32>
    %362 = arith.addf %360, %361 : vector<8x16xf32>
    %363 = math.tanh %362 : vector<8x16xf32>
    %cst_90 = arith.constant dense<0.000000e+00> : vector<8x64xf32>
    %364 = tpu.matmul %363, %8, %cst_90 {dimension_numbers = #tpu.dot_dimension_numbers<[1], [0], [0], [1], [0, 0, 1, 1], [], []>} : vector<8x16xf32>, vector<16x64xf32>, vector<8x64xf32> -> vector<8x64xf32>
    %365 = vector.broadcast %9 : vector<1x64xf32> to vector<8x64xf32>
    %366 = arith.addf %364, %365 : vector<8x64xf32>
    %cst_91 = arith.constant 0.000000e+00 : f32
    %367 = vector.broadcast %cst_91 : f32 to vector<8x64xf32>
    %368 = arith.maximumf %366, %367 : vector<8x64xf32>
    %cst_92 = arith.constant dense<0.000000e+00> : vector<8x4xf32>
    %369 = tpu.matmul %368, %10, %cst_92 {dimension_numbers = #tpu.dot_dimension_numbers<[1], [0], [0], [1], [0, 0, 1, 1], [], []>} : vector<8x64xf32>, vector<64x4xf32>, vector<8x4xf32> -> vector<8x4xf32>
    %370 = vector.broadcast %11 : vector<1x4xf32> to vector<8x4xf32>
    %371 = arith.addf %369, %370 : vector<8x4xf32>
    %cst_93 = arith.constant dense<0xFF800000> : vector<8xf32>
    %372 = vector.multi_reduction <maximumf>, %371, %cst_93 [1] : vector<8x4xf32> to vector<8xf32>
    %373 = vector.shape_cast %372 : vector<8xf32> to vector<8x1xf32>
    %374 = vector.broadcast %373 : vector<8x1xf32> to vector<8x4xf32>
    %375 = arith.subf %371, %374 : vector<8x4xf32>
    %376 = math.exp %375 : vector<8x4xf32>
    %cst_94 = arith.constant dense<0.000000e+00> : vector<8xf32>
    %377 = vector.multi_reduction <add>, %376, %cst_94 [1] : vector<8x4xf32> to vector<8xf32>
    %378 = vector.shape_cast %377 : vector<8xf32> to vector<8x1xf32>
    %379 = tpu.reciprocal %378 {approx = true} : vector<8x1xf32> -> vector<8x1xf32>
    %380 = vector.broadcast %379 : vector<8x1xf32> to vector<8x4xf32>
    %381 = arith.mulf %376, %380 : vector<8x4xf32>
    %382 = vector.extract_strided_slice %363 {offsets = [0, 15], sizes = [8, 1], strides = [1, 1]} : vector<8x16xf32> to vector<8x1xf32>
    %383 = arith.negf %382 : vector<8x1xf32>
    %384 = math.exp %383 : vector<8x1xf32>
    %cst_95 = arith.constant 1.000000e+00 : f32
    %385 = vector.broadcast %cst_95 : f32 to vector<8x1xf32>
    %386 = arith.addf %385, %384 : vector<8x1xf32>
    %387 = arith.divf %385, %386 : vector<8x1xf32>
    %388 = vector.broadcast %387 : vector<8x1xf32> to vector<8x4xf32>
    %389 = arith.mulf %381, %388 : vector<8x4xf32>
    %cst_96 = arith.constant 1.000000e+00 : f32
    %390 = vector.broadcast %cst_96 : f32 to vector<8x1xf32>
    %391 = arith.subf %390, %387 : vector<8x1xf32>
    %392 = vector.broadcast %391 : vector<8x1xf32> to vector<8x4xf32>
    %393 = arith.mulf %311, %392 : vector<8x4xf32>
    %394 = arith.addf %389, %393 : vector<8x4xf32>
    %395 = vector.extract_strided_slice %394 {offsets = [0, 0], sizes = [8, 1], strides = [1, 1]} : vector<8x4xf32> to vector<8x1xf32>
    %396 = vector.extract_strided_slice %352 {offsets = [0, 0], sizes = [8, 8], strides = [1, 1]} : vector<8x40xf32> to vector<8x8xf32>
    %397 = vector.broadcast %395 : vector<8x1xf32> to vector<8x8xf32>
    %398 = arith.mulf %397, %396 : vector<8x8xf32>
    %cst_97 = arith.constant 0.000000e+00 : f32
    %399 = vector.broadcast %cst_97 : f32 to vector<8x8xf32>
    %400 = arith.addf %399, %398 : vector<8x8xf32>
    %401 = vector.extract_strided_slice %394 {offsets = [0, 1], sizes = [8, 1], strides = [1, 1]} : vector<8x4xf32> to vector<8x1xf32>
    %402 = vector.extract_strided_slice %352 {offsets = [0, 8], sizes = [8, 8], strides = [1, 1]} : vector<8x40xf32> to vector<8x8xf32>
    %403 = vector.broadcast %401 : vector<8x1xf32> to vector<8x8xf32>
    %404 = arith.mulf %403, %402 : vector<8x8xf32>
    %405 = arith.addf %400, %404 : vector<8x8xf32>
    %406 = vector.extract_strided_slice %394 {offsets = [0, 2], sizes = [8, 1], strides = [1, 1]} : vector<8x4xf32> to vector<8x1xf32>
    %407 = vector.extract_strided_slice %352 {offsets = [0, 16], sizes = [8, 8], strides = [1, 1]} : vector<8x40xf32> to vector<8x8xf32>
    %408 = vector.broadcast %406 : vector<8x1xf32> to vector<8x8xf32>
    %409 = arith.mulf %408, %407 : vector<8x8xf32>
    %410 = arith.addf %405, %409 : vector<8x8xf32>
    %411 = vector.extract_strided_slice %394 {offsets = [0, 3], sizes = [8, 1], strides = [1, 1]} : vector<8x4xf32> to vector<8x1xf32>
    %412 = vector.extract_strided_slice %352 {offsets = [0, 24], sizes = [8, 8], strides = [1, 1]} : vector<8x40xf32> to vector<8x8xf32>
    %413 = vector.broadcast %411 : vector<8x1xf32> to vector<8x8xf32>
    %414 = arith.mulf %413, %412 : vector<8x8xf32>
    %415 = arith.addf %410, %414 : vector<8x8xf32>
    %416 = vector.extract_strided_slice %415 {offsets = [0, 7], sizes = [8, 1], strides = [1, 1]} : vector<8x8xf32> to vector<8x1xf32>
    %cst_98 = arith.constant 0.000000e+00 : f32
    %417 = vector.broadcast %cst_98 : f32 to vector<8x1xf32>
    %418 = arith.maximumf %416, %417 : vector<8x1xf32>
    %cst_99 = arith.constant 1.000000e+00 : f32
    %419 = vector.broadcast %cst_99 : f32 to vector<8x1xf32>
    %420 = arith.subf %416, %419 : vector<8x1xf32>
    %cst_100 = arith.constant 0.000000e+00 : f32
    %421 = vector.broadcast %cst_100 : f32 to vector<8x1xf32>
    %422 = arith.maximumf %420, %421 : vector<8x1xf32>
    %423 = arith.subf %418, %422 : vector<8x1xf32>
    %424 = arith.subf %423, %346 : vector<8x1xf32>
    %425 = arith.mulf %424, %424 : vector<8x1xf32>
    %cst_101 = arith.constant 1.000000e+00 : f32
    %426 = vector.broadcast %cst_101 : f32 to vector<8x1xf32>
    %427 = arith.subf %426, %425 : vector<8x1xf32>
    %428 = vector.extract_strided_slice %0 {offsets = [0, 5], sizes = [8, 1], strides = [1, 1]} : vector<8x8xf32> to vector<8x1xf32>
    %429 = vector.extract_strided_slice %1 {offsets = [0, 5], sizes = [8, 1], strides = [1, 1]} : vector<8x8xf32> to vector<8x1xf32>
    %cst_102 = arith.constant dense<0.000000e+00> : vector<8x40xf32>
    %430 = tpu.matmul %415, %2, %cst_102 {dimension_numbers = #tpu.dot_dimension_numbers<[1], [0], [0], [1], [0, 0, 1, 1], [], []>} : vector<8x8xf32>, vector<8x40xf32>, vector<8x40xf32> -> vector<8x40xf32>
    %431 = vector.broadcast %428 : vector<8x1xf32> to vector<8x40xf32>
    %432 = vector.broadcast %3 : vector<1x40xf32> to vector<8x40xf32>
    %433 = arith.mulf %431, %432 : vector<8x40xf32>
    %434 = arith.addf %430, %433 : vector<8x40xf32>
    %435 = math.tanh %434 : vector<8x40xf32>
    %436 = vector.extract_strided_slice %435 {offsets = [0, 32], sizes = [8, 8], strides = [1, 1]} : vector<8x40xf32> to vector<8x8xf32>
    %cst_103 = arith.constant dense<0.000000e+00> : vector<8x16xf32>
    %437 = tpu.matmul %436, %4, %cst_103 {dimension_numbers = #tpu.dot_dimension_numbers<[1], [0], [0], [1], [0, 0, 1, 1], [], []>} : vector<8x8xf32>, vector<8x16xf32>, vector<8x16xf32> -> vector<8x16xf32>
    %438 = vector.broadcast %424 : vector<8x1xf32> to vector<8x16xf32>
    %439 = vector.broadcast %5 : vector<1x16xf32> to vector<8x16xf32>
    %440 = arith.mulf %438, %439 : vector<8x16xf32>
    %441 = arith.addf %437, %440 : vector<8x16xf32>
    %442 = vector.broadcast %7 : vector<1x16xf32> to vector<8x16xf32>
    %443 = arith.addf %441, %442 : vector<8x16xf32>
    %cst_104 = arith.constant dense<0.000000e+00> : vector<8x16xf32>
    %444 = tpu.matmul %363, %6, %cst_104 {dimension_numbers = #tpu.dot_dimension_numbers<[1], [0], [0], [1], [0, 0, 1, 1], [], []>} : vector<8x16xf32>, vector<16x16xf32>, vector<8x16xf32> -> vector<8x16xf32>
    %445 = arith.addf %443, %444 : vector<8x16xf32>
    %446 = math.tanh %445 : vector<8x16xf32>
    %cst_105 = arith.constant dense<0.000000e+00> : vector<8x64xf32>
    %447 = tpu.matmul %446, %8, %cst_105 {dimension_numbers = #tpu.dot_dimension_numbers<[1], [0], [0], [1], [0, 0, 1, 1], [], []>} : vector<8x16xf32>, vector<16x64xf32>, vector<8x64xf32> -> vector<8x64xf32>
    %448 = vector.broadcast %9 : vector<1x64xf32> to vector<8x64xf32>
    %449 = arith.addf %447, %448 : vector<8x64xf32>
    %cst_106 = arith.constant 0.000000e+00 : f32
    %450 = vector.broadcast %cst_106 : f32 to vector<8x64xf32>
    %451 = arith.maximumf %449, %450 : vector<8x64xf32>
    %cst_107 = arith.constant dense<0.000000e+00> : vector<8x4xf32>
    %452 = tpu.matmul %451, %10, %cst_107 {dimension_numbers = #tpu.dot_dimension_numbers<[1], [0], [0], [1], [0, 0, 1, 1], [], []>} : vector<8x64xf32>, vector<64x4xf32>, vector<8x4xf32> -> vector<8x4xf32>
    %453 = vector.broadcast %11 : vector<1x4xf32> to vector<8x4xf32>
    %454 = arith.addf %452, %453 : vector<8x4xf32>
    %cst_108 = arith.constant dense<0xFF800000> : vector<8xf32>
    %455 = vector.multi_reduction <maximumf>, %454, %cst_108 [1] : vector<8x4xf32> to vector<8xf32>
    %456 = vector.shape_cast %455 : vector<8xf32> to vector<8x1xf32>
    %457 = vector.broadcast %456 : vector<8x1xf32> to vector<8x4xf32>
    %458 = arith.subf %454, %457 : vector<8x4xf32>
    %459 = math.exp %458 : vector<8x4xf32>
    %cst_109 = arith.constant dense<0.000000e+00> : vector<8xf32>
    %460 = vector.multi_reduction <add>, %459, %cst_109 [1] : vector<8x4xf32> to vector<8xf32>
    %461 = vector.shape_cast %460 : vector<8xf32> to vector<8x1xf32>
    %462 = tpu.reciprocal %461 {approx = true} : vector<8x1xf32> -> vector<8x1xf32>
    %463 = vector.broadcast %462 : vector<8x1xf32> to vector<8x4xf32>
    %464 = arith.mulf %459, %463 : vector<8x4xf32>
    %465 = vector.extract_strided_slice %446 {offsets = [0, 15], sizes = [8, 1], strides = [1, 1]} : vector<8x16xf32> to vector<8x1xf32>
    %466 = arith.negf %465 : vector<8x1xf32>
    %467 = math.exp %466 : vector<8x1xf32>
    %cst_110 = arith.constant 1.000000e+00 : f32
    %468 = vector.broadcast %cst_110 : f32 to vector<8x1xf32>
    %469 = arith.addf %468, %467 : vector<8x1xf32>
    %470 = arith.divf %468, %469 : vector<8x1xf32>
    %471 = vector.broadcast %470 : vector<8x1xf32> to vector<8x4xf32>
    %472 = arith.mulf %464, %471 : vector<8x4xf32>
    %cst_111 = arith.constant 1.000000e+00 : f32
    %473 = vector.broadcast %cst_111 : f32 to vector<8x1xf32>
    %474 = arith.subf %473, %470 : vector<8x1xf32>
    %475 = vector.broadcast %474 : vector<8x1xf32> to vector<8x4xf32>
    %476 = arith.mulf %394, %475 : vector<8x4xf32>
    %477 = arith.addf %472, %476 : vector<8x4xf32>
    %478 = vector.extract_strided_slice %477 {offsets = [0, 0], sizes = [8, 1], strides = [1, 1]} : vector<8x4xf32> to vector<8x1xf32>
    %479 = vector.extract_strided_slice %435 {offsets = [0, 0], sizes = [8, 8], strides = [1, 1]} : vector<8x40xf32> to vector<8x8xf32>
    %480 = vector.broadcast %478 : vector<8x1xf32> to vector<8x8xf32>
    %481 = arith.mulf %480, %479 : vector<8x8xf32>
    %cst_112 = arith.constant 0.000000e+00 : f32
    %482 = vector.broadcast %cst_112 : f32 to vector<8x8xf32>
    %483 = arith.addf %482, %481 : vector<8x8xf32>
    %484 = vector.extract_strided_slice %477 {offsets = [0, 1], sizes = [8, 1], strides = [1, 1]} : vector<8x4xf32> to vector<8x1xf32>
    %485 = vector.extract_strided_slice %435 {offsets = [0, 8], sizes = [8, 8], strides = [1, 1]} : vector<8x40xf32> to vector<8x8xf32>
    %486 = vector.broadcast %484 : vector<8x1xf32> to vector<8x8xf32>
    %487 = arith.mulf %486, %485 : vector<8x8xf32>
    %488 = arith.addf %483, %487 : vector<8x8xf32>
    %489 = vector.extract_strided_slice %477 {offsets = [0, 2], sizes = [8, 1], strides = [1, 1]} : vector<8x4xf32> to vector<8x1xf32>
    %490 = vector.extract_strided_slice %435 {offsets = [0, 16], sizes = [8, 8], strides = [1, 1]} : vector<8x40xf32> to vector<8x8xf32>
    %491 = vector.broadcast %489 : vector<8x1xf32> to vector<8x8xf32>
    %492 = arith.mulf %491, %490 : vector<8x8xf32>
    %493 = arith.addf %488, %492 : vector<8x8xf32>
    %494 = vector.extract_strided_slice %477 {offsets = [0, 3], sizes = [8, 1], strides = [1, 1]} : vector<8x4xf32> to vector<8x1xf32>
    %495 = vector.extract_strided_slice %435 {offsets = [0, 24], sizes = [8, 8], strides = [1, 1]} : vector<8x40xf32> to vector<8x8xf32>
    %496 = vector.broadcast %494 : vector<8x1xf32> to vector<8x8xf32>
    %497 = arith.mulf %496, %495 : vector<8x8xf32>
    %498 = arith.addf %493, %497 : vector<8x8xf32>
    %499 = vector.extract_strided_slice %498 {offsets = [0, 7], sizes = [8, 1], strides = [1, 1]} : vector<8x8xf32> to vector<8x1xf32>
    %cst_113 = arith.constant 0.000000e+00 : f32
    %500 = vector.broadcast %cst_113 : f32 to vector<8x1xf32>
    %501 = arith.maximumf %499, %500 : vector<8x1xf32>
    %cst_114 = arith.constant 1.000000e+00 : f32
    %502 = vector.broadcast %cst_114 : f32 to vector<8x1xf32>
    %503 = arith.subf %499, %502 : vector<8x1xf32>
    %cst_115 = arith.constant 0.000000e+00 : f32
    %504 = vector.broadcast %cst_115 : f32 to vector<8x1xf32>
    %505 = arith.maximumf %503, %504 : vector<8x1xf32>
    %506 = arith.subf %501, %505 : vector<8x1xf32>
    %507 = arith.subf %506, %429 : vector<8x1xf32>
    %508 = arith.mulf %507, %507 : vector<8x1xf32>
    %cst_116 = arith.constant 1.000000e+00 : f32
    %509 = vector.broadcast %cst_116 : f32 to vector<8x1xf32>
    %510 = arith.subf %509, %508 : vector<8x1xf32>
    %511 = vector.extract_strided_slice %0 {offsets = [0, 6], sizes = [8, 1], strides = [1, 1]} : vector<8x8xf32> to vector<8x1xf32>
    %512 = vector.extract_strided_slice %1 {offsets = [0, 6], sizes = [8, 1], strides = [1, 1]} : vector<8x8xf32> to vector<8x1xf32>
    %cst_117 = arith.constant dense<0.000000e+00> : vector<8x40xf32>
    %513 = tpu.matmul %498, %2, %cst_117 {dimension_numbers = #tpu.dot_dimension_numbers<[1], [0], [0], [1], [0, 0, 1, 1], [], []>} : vector<8x8xf32>, vector<8x40xf32>, vector<8x40xf32> -> vector<8x40xf32>
    %514 = vector.broadcast %511 : vector<8x1xf32> to vector<8x40xf32>
    %515 = vector.broadcast %3 : vector<1x40xf32> to vector<8x40xf32>
    %516 = arith.mulf %514, %515 : vector<8x40xf32>
    %517 = arith.addf %513, %516 : vector<8x40xf32>
    %518 = math.tanh %517 : vector<8x40xf32>
    %519 = vector.extract_strided_slice %518 {offsets = [0, 32], sizes = [8, 8], strides = [1, 1]} : vector<8x40xf32> to vector<8x8xf32>
    %cst_118 = arith.constant dense<0.000000e+00> : vector<8x16xf32>
    %520 = tpu.matmul %519, %4, %cst_118 {dimension_numbers = #tpu.dot_dimension_numbers<[1], [0], [0], [1], [0, 0, 1, 1], [], []>} : vector<8x8xf32>, vector<8x16xf32>, vector<8x16xf32> -> vector<8x16xf32>
    %521 = vector.broadcast %507 : vector<8x1xf32> to vector<8x16xf32>
    %522 = vector.broadcast %5 : vector<1x16xf32> to vector<8x16xf32>
    %523 = arith.mulf %521, %522 : vector<8x16xf32>
    %524 = arith.addf %520, %523 : vector<8x16xf32>
    %525 = vector.broadcast %7 : vector<1x16xf32> to vector<8x16xf32>
    %526 = arith.addf %524, %525 : vector<8x16xf32>
    %cst_119 = arith.constant dense<0.000000e+00> : vector<8x16xf32>
    %527 = tpu.matmul %446, %6, %cst_119 {dimension_numbers = #tpu.dot_dimension_numbers<[1], [0], [0], [1], [0, 0, 1, 1], [], []>} : vector<8x16xf32>, vector<16x16xf32>, vector<8x16xf32> -> vector<8x16xf32>
    %528 = arith.addf %526, %527 : vector<8x16xf32>
    %529 = math.tanh %528 : vector<8x16xf32>
    %cst_120 = arith.constant dense<0.000000e+00> : vector<8x64xf32>
    %530 = tpu.matmul %529, %8, %cst_120 {dimension_numbers = #tpu.dot_dimension_numbers<[1], [0], [0], [1], [0, 0, 1, 1], [], []>} : vector<8x16xf32>, vector<16x64xf32>, vector<8x64xf32> -> vector<8x64xf32>
    %531 = vector.broadcast %9 : vector<1x64xf32> to vector<8x64xf32>
    %532 = arith.addf %530, %531 : vector<8x64xf32>
    %cst_121 = arith.constant 0.000000e+00 : f32
    %533 = vector.broadcast %cst_121 : f32 to vector<8x64xf32>
    %534 = arith.maximumf %532, %533 : vector<8x64xf32>
    %cst_122 = arith.constant dense<0.000000e+00> : vector<8x4xf32>
    %535 = tpu.matmul %534, %10, %cst_122 {dimension_numbers = #tpu.dot_dimension_numbers<[1], [0], [0], [1], [0, 0, 1, 1], [], []>} : vector<8x64xf32>, vector<64x4xf32>, vector<8x4xf32> -> vector<8x4xf32>
    %536 = vector.broadcast %11 : vector<1x4xf32> to vector<8x4xf32>
    %537 = arith.addf %535, %536 : vector<8x4xf32>
    %cst_123 = arith.constant dense<0xFF800000> : vector<8xf32>
    %538 = vector.multi_reduction <maximumf>, %537, %cst_123 [1] : vector<8x4xf32> to vector<8xf32>
    %539 = vector.shape_cast %538 : vector<8xf32> to vector<8x1xf32>
    %540 = vector.broadcast %539 : vector<8x1xf32> to vector<8x4xf32>
    %541 = arith.subf %537, %540 : vector<8x4xf32>
    %542 = math.exp %541 : vector<8x4xf32>
    %cst_124 = arith.constant dense<0.000000e+00> : vector<8xf32>
    %543 = vector.multi_reduction <add>, %542, %cst_124 [1] : vector<8x4xf32> to vector<8xf32>
    %544 = vector.shape_cast %543 : vector<8xf32> to vector<8x1xf32>
    %545 = tpu.reciprocal %544 {approx = true} : vector<8x1xf32> -> vector<8x1xf32>
    %546 = vector.broadcast %545 : vector<8x1xf32> to vector<8x4xf32>
    %547 = arith.mulf %542, %546 : vector<8x4xf32>
    %548 = vector.extract_strided_slice %529 {offsets = [0, 15], sizes = [8, 1], strides = [1, 1]} : vector<8x16xf32> to vector<8x1xf32>
    %549 = arith.negf %548 : vector<8x1xf32>
    %550 = math.exp %549 : vector<8x1xf32>
    %cst_125 = arith.constant 1.000000e+00 : f32
    %551 = vector.broadcast %cst_125 : f32 to vector<8x1xf32>
    %552 = arith.addf %551, %550 : vector<8x1xf32>
    %553 = arith.divf %551, %552 : vector<8x1xf32>
    %554 = vector.broadcast %553 : vector<8x1xf32> to vector<8x4xf32>
    %555 = arith.mulf %547, %554 : vector<8x4xf32>
    %cst_126 = arith.constant 1.000000e+00 : f32
    %556 = vector.broadcast %cst_126 : f32 to vector<8x1xf32>
    %557 = arith.subf %556, %553 : vector<8x1xf32>
    %558 = vector.broadcast %557 : vector<8x1xf32> to vector<8x4xf32>
    %559 = arith.mulf %477, %558 : vector<8x4xf32>
    %560 = arith.addf %555, %559 : vector<8x4xf32>
    %561 = vector.extract_strided_slice %560 {offsets = [0, 0], sizes = [8, 1], strides = [1, 1]} : vector<8x4xf32> to vector<8x1xf32>
    %562 = vector.extract_strided_slice %518 {offsets = [0, 0], sizes = [8, 8], strides = [1, 1]} : vector<8x40xf32> to vector<8x8xf32>
    %563 = vector.broadcast %561 : vector<8x1xf32> to vector<8x8xf32>
    %564 = arith.mulf %563, %562 : vector<8x8xf32>
    %cst_127 = arith.constant 0.000000e+00 : f32
    %565 = vector.broadcast %cst_127 : f32 to vector<8x8xf32>
    %566 = arith.addf %565, %564 : vector<8x8xf32>
    %567 = vector.extract_strided_slice %560 {offsets = [0, 1], sizes = [8, 1], strides = [1, 1]} : vector<8x4xf32> to vector<8x1xf32>
    %568 = vector.extract_strided_slice %518 {offsets = [0, 8], sizes = [8, 8], strides = [1, 1]} : vector<8x40xf32> to vector<8x8xf32>
    %569 = vector.broadcast %567 : vector<8x1xf32> to vector<8x8xf32>
    %570 = arith.mulf %569, %568 : vector<8x8xf32>
    %571 = arith.addf %566, %570 : vector<8x8xf32>
    %572 = vector.extract_strided_slice %560 {offsets = [0, 2], sizes = [8, 1], strides = [1, 1]} : vector<8x4xf32> to vector<8x1xf32>
    %573 = vector.extract_strided_slice %518 {offsets = [0, 16], sizes = [8, 8], strides = [1, 1]} : vector<8x40xf32> to vector<8x8xf32>
    %574 = vector.broadcast %572 : vector<8x1xf32> to vector<8x8xf32>
    %575 = arith.mulf %574, %573 : vector<8x8xf32>
    %576 = arith.addf %571, %575 : vector<8x8xf32>
    %577 = vector.extract_strided_slice %560 {offsets = [0, 3], sizes = [8, 1], strides = [1, 1]} : vector<8x4xf32> to vector<8x1xf32>
    %578 = vector.extract_strided_slice %518 {offsets = [0, 24], sizes = [8, 8], strides = [1, 1]} : vector<8x40xf32> to vector<8x8xf32>
    %579 = vector.broadcast %577 : vector<8x1xf32> to vector<8x8xf32>
    %580 = arith.mulf %579, %578 : vector<8x8xf32>
    %581 = arith.addf %576, %580 : vector<8x8xf32>
    %582 = vector.extract_strided_slice %581 {offsets = [0, 7], sizes = [8, 1], strides = [1, 1]} : vector<8x8xf32> to vector<8x1xf32>
    %cst_128 = arith.constant 0.000000e+00 : f32
    %583 = vector.broadcast %cst_128 : f32 to vector<8x1xf32>
    %584 = arith.maximumf %582, %583 : vector<8x1xf32>
    %cst_129 = arith.constant 1.000000e+00 : f32
    %585 = vector.broadcast %cst_129 : f32 to vector<8x1xf32>
    %586 = arith.subf %582, %585 : vector<8x1xf32>
    %cst_130 = arith.constant 0.000000e+00 : f32
    %587 = vector.broadcast %cst_130 : f32 to vector<8x1xf32>
    %588 = arith.maximumf %586, %587 : vector<8x1xf32>
    %589 = arith.subf %584, %588 : vector<8x1xf32>
    %590 = arith.subf %589, %512 : vector<8x1xf32>
    %591 = arith.mulf %590, %590 : vector<8x1xf32>
    %cst_131 = arith.constant 1.000000e+00 : f32
    %592 = vector.broadcast %cst_131 : f32 to vector<8x1xf32>
    %593 = arith.subf %592, %591 : vector<8x1xf32>
    %594 = vector.extract_strided_slice %0 {offsets = [0, 7], sizes = [8, 1], strides = [1, 1]} : vector<8x8xf32> to vector<8x1xf32>
    %595 = vector.extract_strided_slice %1 {offsets = [0, 7], sizes = [8, 1], strides = [1, 1]} : vector<8x8xf32> to vector<8x1xf32>
    %cst_132 = arith.constant dense<0.000000e+00> : vector<8x40xf32>
    %596 = tpu.matmul %581, %2, %cst_132 {dimension_numbers = #tpu.dot_dimension_numbers<[1], [0], [0], [1], [0, 0, 1, 1], [], []>} : vector<8x8xf32>, vector<8x40xf32>, vector<8x40xf32> -> vector<8x40xf32>
    %597 = vector.broadcast %594 : vector<8x1xf32> to vector<8x40xf32>
    %598 = vector.broadcast %3 : vector<1x40xf32> to vector<8x40xf32>
    %599 = arith.mulf %597, %598 : vector<8x40xf32>
    %600 = arith.addf %596, %599 : vector<8x40xf32>
    %601 = math.tanh %600 : vector<8x40xf32>
    %602 = vector.extract_strided_slice %601 {offsets = [0, 32], sizes = [8, 8], strides = [1, 1]} : vector<8x40xf32> to vector<8x8xf32>
    %cst_133 = arith.constant dense<0.000000e+00> : vector<8x16xf32>
    %603 = tpu.matmul %602, %4, %cst_133 {dimension_numbers = #tpu.dot_dimension_numbers<[1], [0], [0], [1], [0, 0, 1, 1], [], []>} : vector<8x8xf32>, vector<8x16xf32>, vector<8x16xf32> -> vector<8x16xf32>
    %604 = vector.broadcast %590 : vector<8x1xf32> to vector<8x16xf32>
    %605 = vector.broadcast %5 : vector<1x16xf32> to vector<8x16xf32>
    %606 = arith.mulf %604, %605 : vector<8x16xf32>
    %607 = arith.addf %603, %606 : vector<8x16xf32>
    %608 = vector.broadcast %7 : vector<1x16xf32> to vector<8x16xf32>
    %609 = arith.addf %607, %608 : vector<8x16xf32>
    %cst_134 = arith.constant dense<0.000000e+00> : vector<8x16xf32>
    %610 = tpu.matmul %529, %6, %cst_134 {dimension_numbers = #tpu.dot_dimension_numbers<[1], [0], [0], [1], [0, 0, 1, 1], [], []>} : vector<8x16xf32>, vector<16x16xf32>, vector<8x16xf32> -> vector<8x16xf32>
    %611 = arith.addf %609, %610 : vector<8x16xf32>
    %612 = math.tanh %611 : vector<8x16xf32>
    %cst_135 = arith.constant dense<0.000000e+00> : vector<8x64xf32>
    %613 = tpu.matmul %612, %8, %cst_135 {dimension_numbers = #tpu.dot_dimension_numbers<[1], [0], [0], [1], [0, 0, 1, 1], [], []>} : vector<8x16xf32>, vector<16x64xf32>, vector<8x64xf32> -> vector<8x64xf32>
    %614 = vector.broadcast %9 : vector<1x64xf32> to vector<8x64xf32>
    %615 = arith.addf %613, %614 : vector<8x64xf32>
    %cst_136 = arith.constant 0.000000e+00 : f32
    %616 = vector.broadcast %cst_136 : f32 to vector<8x64xf32>
    %617 = arith.maximumf %615, %616 : vector<8x64xf32>
    %cst_137 = arith.constant dense<0.000000e+00> : vector<8x4xf32>
    %618 = tpu.matmul %617, %10, %cst_137 {dimension_numbers = #tpu.dot_dimension_numbers<[1], [0], [0], [1], [0, 0, 1, 1], [], []>} : vector<8x64xf32>, vector<64x4xf32>, vector<8x4xf32> -> vector<8x4xf32>
    %619 = vector.broadcast %11 : vector<1x4xf32> to vector<8x4xf32>
    %620 = arith.addf %618, %619 : vector<8x4xf32>
    %cst_138 = arith.constant dense<0xFF800000> : vector<8xf32>
    %621 = vector.multi_reduction <maximumf>, %620, %cst_138 [1] : vector<8x4xf32> to vector<8xf32>
    %622 = vector.shape_cast %621 : vector<8xf32> to vector<8x1xf32>
    %623 = vector.broadcast %622 : vector<8x1xf32> to vector<8x4xf32>
    %624 = arith.subf %620, %623 : vector<8x4xf32>
    %625 = math.exp %624 : vector<8x4xf32>
    %cst_139 = arith.constant dense<0.000000e+00> : vector<8xf32>
    %626 = vector.multi_reduction <add>, %625, %cst_139 [1] : vector<8x4xf32> to vector<8xf32>
    %627 = vector.shape_cast %626 : vector<8xf32> to vector<8x1xf32>
    %628 = tpu.reciprocal %627 {approx = true} : vector<8x1xf32> -> vector<8x1xf32>
    %629 = vector.broadcast %628 : vector<8x1xf32> to vector<8x4xf32>
    %630 = arith.mulf %625, %629 : vector<8x4xf32>
    %631 = vector.extract_strided_slice %612 {offsets = [0, 15], sizes = [8, 1], strides = [1, 1]} : vector<8x16xf32> to vector<8x1xf32>
    %632 = arith.negf %631 : vector<8x1xf32>
    %633 = math.exp %632 : vector<8x1xf32>
    %cst_140 = arith.constant 1.000000e+00 : f32
    %634 = vector.broadcast %cst_140 : f32 to vector<8x1xf32>
    %635 = arith.addf %634, %633 : vector<8x1xf32>
    %636 = arith.divf %634, %635 : vector<8x1xf32>
    %637 = vector.broadcast %636 : vector<8x1xf32> to vector<8x4xf32>
    %638 = arith.mulf %630, %637 : vector<8x4xf32>
    %cst_141 = arith.constant 1.000000e+00 : f32
    %639 = vector.broadcast %cst_141 : f32 to vector<8x1xf32>
    %640 = arith.subf %639, %636 : vector<8x1xf32>
    %641 = vector.broadcast %640 : vector<8x1xf32> to vector<8x4xf32>
    %642 = arith.mulf %560, %641 : vector<8x4xf32>
    %643 = arith.addf %638, %642 : vector<8x4xf32>
    %644 = vector.extract_strided_slice %643 {offsets = [0, 0], sizes = [8, 1], strides = [1, 1]} : vector<8x4xf32> to vector<8x1xf32>
    %645 = vector.extract_strided_slice %601 {offsets = [0, 0], sizes = [8, 8], strides = [1, 1]} : vector<8x40xf32> to vector<8x8xf32>
    %646 = vector.broadcast %644 : vector<8x1xf32> to vector<8x8xf32>
    %647 = arith.mulf %646, %645 : vector<8x8xf32>
    %cst_142 = arith.constant 0.000000e+00 : f32
    %648 = vector.broadcast %cst_142 : f32 to vector<8x8xf32>
    %649 = arith.addf %648, %647 : vector<8x8xf32>
    %650 = vector.extract_strided_slice %643 {offsets = [0, 1], sizes = [8, 1], strides = [1, 1]} : vector<8x4xf32> to vector<8x1xf32>
    %651 = vector.extract_strided_slice %601 {offsets = [0, 8], sizes = [8, 8], strides = [1, 1]} : vector<8x40xf32> to vector<8x8xf32>
    %652 = vector.broadcast %650 : vector<8x1xf32> to vector<8x8xf32>
    %653 = arith.mulf %652, %651 : vector<8x8xf32>
    %654 = arith.addf %649, %653 : vector<8x8xf32>
    %655 = vector.extract_strided_slice %643 {offsets = [0, 2], sizes = [8, 1], strides = [1, 1]} : vector<8x4xf32> to vector<8x1xf32>
    %656 = vector.extract_strided_slice %601 {offsets = [0, 16], sizes = [8, 8], strides = [1, 1]} : vector<8x40xf32> to vector<8x8xf32>
    %657 = vector.broadcast %655 : vector<8x1xf32> to vector<8x8xf32>
    %658 = arith.mulf %657, %656 : vector<8x8xf32>
    %659 = arith.addf %654, %658 : vector<8x8xf32>
    %660 = vector.extract_strided_slice %643 {offsets = [0, 3], sizes = [8, 1], strides = [1, 1]} : vector<8x4xf32> to vector<8x1xf32>
    %661 = vector.extract_strided_slice %601 {offsets = [0, 24], sizes = [8, 8], strides = [1, 1]} : vector<8x40xf32> to vector<8x8xf32>
    %662 = vector.broadcast %660 : vector<8x1xf32> to vector<8x8xf32>
    %663 = arith.mulf %662, %661 : vector<8x8xf32>
    %664 = arith.addf %659, %663 : vector<8x8xf32>
    %665 = vector.extract_strided_slice %664 {offsets = [0, 7], sizes = [8, 1], strides = [1, 1]} : vector<8x8xf32> to vector<8x1xf32>
    %cst_143 = arith.constant 0.000000e+00 : f32
    %666 = vector.broadcast %cst_143 : f32 to vector<8x1xf32>
    %667 = arith.maximumf %665, %666 : vector<8x1xf32>
    %cst_144 = arith.constant 1.000000e+00 : f32
    %668 = vector.broadcast %cst_144 : f32 to vector<8x1xf32>
    %669 = arith.subf %665, %668 : vector<8x1xf32>
    %cst_145 = arith.constant 0.000000e+00 : f32
    %670 = vector.broadcast %cst_145 : f32 to vector<8x1xf32>
    %671 = arith.maximumf %669, %670 : vector<8x1xf32>
    %672 = arith.subf %667, %671 : vector<8x1xf32>
    %673 = arith.subf %672, %595 : vector<8x1xf32>
    %674 = arith.mulf %673, %673 : vector<8x1xf32>
    %cst_146 = arith.constant 1.000000e+00 : f32
    %675 = vector.broadcast %cst_146 : f32 to vector<8x1xf32>
    %676 = arith.subf %675, %674 : vector<8x1xf32>
    %677 = tpu.concatenate %91, %174, %257, %340, %423, %506, %589, %672 in 1 : vector<8x1xf32>, vector<8x1xf32>, vector<8x1xf32>, vector<8x1xf32>, vector<8x1xf32>, vector<8x1xf32>, vector<8x1xf32>, vector<8x1xf32> -> vector<8x8xf32>
    %c0_147 = arith.constant 0 : index
    %c0_148 = arith.constant 0 : index
    %678 = vector.load %arg15[%c0_147, %c0_148] : memref<8x8xf32, #tpu.memory_space<vmem>>, vector<8x8xf32>
    tpu.vector_store %arg15[%c0_147, %c0_148], %677 {strides = array<i32>} : memref<8x8xf32, #tpu.memory_space<vmem>>, vector<8x8xf32>,
    %679 = tpu.concatenate %55, %138, %221, %304, %387, %470, %553, %636 in 1 : vector<8x1xf32>, vector<8x1xf32>, vector<8x1xf32>, vector<8x1xf32>, vector<8x1xf32>, vector<8x1xf32>, vector<8x1xf32>, vector<8x1xf32> -> vector<8x8xf32>
    %680 = tpu.concatenate %95, %178, %261, %344, %427, %510, %593, %676 in 1 : vector<8x1xf32>, vector<8x1xf32>, vector<8x1xf32>, vector<8x1xf32>, vector<8x1xf32>, vector<8x1xf32>, vector<8x1xf32>, vector<8x1xf32> -> vector<8x8xf32>
    %681 = tpu.transpose %680, [1, 0] : vector<8x8xf32> -> vector<8x8xf32>
    %682 = vector.extract_strided_slice %679 {offsets = [0, 0], sizes = [8, 1], strides = [1, 1]} : vector<8x8xf32> to vector<8x1xf32>
    %683 = vector.extract_strided_slice %681 {offsets = [0, 0], sizes = [1, 8], strides = [1, 1]} : vector<8x8xf32> to vector<1x8xf32>
    %684 = vector.broadcast %682 : vector<8x1xf32> to vector<8x8xf32>
    %685 = vector.broadcast %683 : vector<1x8xf32> to vector<8x8xf32>
    %686 = arith.mulf %684, %685 : vector<8x8xf32>
    %687 = vector.extract_strided_slice %679 {offsets = [0, 1], sizes = [8, 1], strides = [1, 1]} : vector<8x8xf32> to vector<8x1xf32>
    %688 = vector.extract_strided_slice %681 {offsets = [1, 0], sizes = [1, 8], strides = [1, 1]} : vector<8x8xf32> to vector<1x8xf32>
    %689 = vector.broadcast %687 : vector<8x1xf32> to vector<8x8xf32>
    %690 = vector.broadcast %688 : vector<1x8xf32> to vector<8x8xf32>
    %691 = arith.mulf %689, %690 : vector<8x8xf32>
    %692 = vector.extract_strided_slice %679 {offsets = [0, 2], sizes = [8, 1], strides = [1, 1]} : vector<8x8xf32> to vector<8x1xf32>
    %693 = vector.extract_strided_slice %681 {offsets = [2, 0], sizes = [1, 8], strides = [1, 1]} : vector<8x8xf32> to vector<1x8xf32>
    %694 = vector.broadcast %692 : vector<8x1xf32> to vector<8x8xf32>
    %695 = vector.broadcast %693 : vector<1x8xf32> to vector<8x8xf32>
    %696 = arith.mulf %694, %695 : vector<8x8xf32>
    %697 = vector.extract_strided_slice %679 {offsets = [0, 3], sizes = [8, 1], strides = [1, 1]} : vector<8x8xf32> to vector<8x1xf32>
    %698 = vector.extract_strided_slice %681 {offsets = [3, 0], sizes = [1, 8], strides = [1, 1]} : vector<8x8xf32> to vector<1x8xf32>
    %699 = vector.broadcast %697 : vector<8x1xf32> to vector<8x8xf32>
    %700 = vector.broadcast %698 : vector<1x8xf32> to vector<8x8xf32>
    %701 = arith.mulf %699, %700 : vector<8x8xf32>
    %702 = vector.extract_strided_slice %679 {offsets = [0, 4], sizes = [8, 1], strides = [1, 1]} : vector<8x8xf32> to vector<8x1xf32>
    %703 = vector.extract_strided_slice %681 {offsets = [4, 0], sizes = [1, 8], strides = [1, 1]} : vector<8x8xf32> to vector<1x8xf32>
    %704 = vector.broadcast %702 : vector<8x1xf32> to vector<8x8xf32>
    %705 = vector.broadcast %703 : vector<1x8xf32> to vector<8x8xf32>
    %706 = arith.mulf %704, %705 : vector<8x8xf32>
    %707 = vector.extract_strided_slice %679 {offsets = [0, 5], sizes = [8, 1], strides = [1, 1]} : vector<8x8xf32> to vector<8x1xf32>
    %708 = vector.extract_strided_slice %681 {offsets = [5, 0], sizes = [1, 8], strides = [1, 1]} : vector<8x8xf32> to vector<1x8xf32>
    %709 = vector.broadcast %707 : vector<8x1xf32> to vector<8x8xf32>
    %710 = vector.broadcast %708 : vector<1x8xf32> to vector<8x8xf32>
    %711 = arith.mulf %709, %710 : vector<8x8xf32>
    %712 = vector.extract_strided_slice %679 {offsets = [0, 6], sizes = [8, 1], strides = [1, 1]} : vector<8x8xf32> to vector<8x1xf32>
    %713 = vector.extract_strided_slice %681 {offsets = [6, 0], sizes = [1, 8], strides = [1, 1]} : vector<8x8xf32> to vector<1x8xf32>
    %714 = vector.broadcast %712 : vector<8x1xf32> to vector<8x8xf32>
    %715 = vector.broadcast %713 : vector<1x8xf32> to vector<8x8xf32>
    %716 = arith.mulf %714, %715 : vector<8x8xf32>
    %717 = vector.extract_strided_slice %679 {offsets = [0, 7], sizes = [8, 1], strides = [1, 1]} : vector<8x8xf32> to vector<8x1xf32>
    %718 = vector.extract_strided_slice %681 {offsets = [7, 0], sizes = [1, 8], strides = [1, 1]} : vector<8x8xf32> to vector<1x8xf32>
    %719 = vector.broadcast %717 : vector<8x1xf32> to vector<8x8xf32>
    %720 = vector.broadcast %718 : vector<1x8xf32> to vector<8x8xf32>
    %721 = arith.mulf %719, %720 : vector<8x8xf32>
    %722 = tpu.concatenate %686, %691, %696, %701, %706, %711, %716, %721 in 1 : vector<8x8xf32>, vector<8x8xf32>, vector<8x8xf32>, vector<8x8xf32>, vector<8x8xf32>, vector<8x8xf32>, vector<8x8xf32>, vector<8x8xf32> -> vector<8x64xf32>
    %c0_149 = arith.constant 0 : index
    %c0_150 = arith.constant 0 : index
    %723 = vector.load %arg16[%c0_149, %c0_150] : memref<8x64xf32, #tpu.memory_space<vmem>>, vector<8x64xf32>
    tpu.vector_store %arg16[%c0_149, %c0_150], %722 {strides = array<i32>} : memref<8x64xf32, #tpu.memory_space<vmem>>, vector<8x64xf32>,
    return
  }
}

</mosaic_0001>

<llo_original>
// kernel: discmaker2_forward.1
$region0: #{discmaker2_forward.1}
  #allocation0 [shape = 'u32[]', space=smem, size = 0x4, offset = 0x4, fixed_abs, tag = 'smem constant byte address 0x4 - core index']
  #allocation1 [shape = 'u32[144,128]{1,0:T(1,128)}', space=vmem, size = 0x12000, scoped, tag = 'internal scratch']
  %s0 = inlined_call_operand.vmem [shape: f32[8,8], index: 0, kind: input, shape index: {}]
  %s1 = inlined_call_operand.vmem [shape: f32[8,8], index: 1, kind: input, shape index: {}]
  %s2 = inlined_call_operand.vmem [shape: f32[8,8], index: 2, kind: input, shape index: {}]
  %s3 = inlined_call_operand.vmem [shape: f32[8,4], index: 3, kind: input, shape index: {}]
  %s4 = inlined_call_operand.vmem [shape: f32[8,1], index: 4, kind: input, shape index: {}]
  %s5 = inlined_call_operand.vmem [shape: f32[8,40], index: 5, kind: input, shape index: {}]
  %s6 = inlined_call_operand.vmem [shape: f32[1,40], index: 6, kind: input, shape index: {}]
  %s7 = inlined_call_operand.vmem [shape: f32[8,16], index: 7, kind: input, shape index: {}]
  %s8 = inlined_call_operand.vmem [shape: f32[1,16], index: 8, kind: input, shape index: {}]
  %s9 = inlined_call_operand.vmem [shape: f32[16,16], index: 9, kind: input, shape index: {}]
  %s10 = inlined_call_operand.vmem [shape: f32[1,16], index: 10, kind: input, shape index: {}]
  %s11 = inlined_call_operand.vmem [shape: f32[16,64], index: 11, kind: input, shape index: {}]
  %s12 = inlined_call_operand.vmem [shape: f32[1,64], index: 12, kind: input, shape index: {}]
  %s13 = inlined_call_operand.vmem [shape: f32[64,4], index: 13, kind: input, shape index: {}]
  %s14 = inlined_call_operand.vmem [shape: f32[1,4], index: 14, kind: input, shape index: {}]
  %s15 = inlined_call_operand.hbm [shape: f32[8,8], index: 15, kind: output, shape index: {0}]
  %s16 = inlined_call_operand.vmem [shape: f32[8,64], index: 16, kind: output, shape index: {1}]
  %17 = xla_tuple %s15, %s16
  %s18 = sld [smem:[#allocation0]]
  $region78: #{discmaker2_forward.1} parent=0
    _
  %s20 = ssub.s32 1, %s18
  %s21 = scalar_select 0, %s20, %s18
  $region1: #{discmaker2_forward.1} parent=0
    #allocation2 [shape = 'u8[4096]{0}', space=vmem, size = 0x1000, scoped, tag = 'output window, operand 0, single buffered']
    #allocation3 [shape = 's32[1]{0}', space=sflag, size = 0x4, scoped, tag = 'scoped memory for discmaker2_forward.1']
    %22 = vsyncpa [#allocation3], 0
    // Predicated region
    $region2: #{discmaker2_forward.1} parent=1 // pred_check
      _
    $region3: #{discmaker2_forward.1} parent=1 // pred_check_branch
      %24 = sbr.rel (0) target = $region5
    $region4: #{discmaker2_forward.1} parent=1 // pred_region
      _
    $region5: #{discmaker2_forward.1} parent=1 // pred_fallthru
      _
    // Predicated region
    $region6: #{discmaker2_forward.1} parent=1 // pred_check
      _
    $region7: #{discmaker2_forward.1} parent=1 // pred_check_branch
      %26 = sbr.rel (0) target = $region9
    $region8: #{discmaker2_forward.1} parent=1 // pred_region
      _
    $region9: #{discmaker2_forward.1} parent=1 // pred_fallthru
      _
    // Predicated region
    $region10: #{discmaker2_forward.1} parent=1 // pred_check
      _
    $region11: #{discmaker2_forward.1} parent=1 // pred_check_branch
      %28 = sbr.rel (0) target = $region13
    $region12: #{discmaker2_forward.1} parent=1 // pred_region
      _
    $region13: #{discmaker2_forward.1} parent=1 // pred_fallthru
      _
    // Predicated region
    $region14: #{discmaker2_forward.1} parent=1 // pred_check
      _
    $region15: #{discmaker2_forward.1} parent=1 // pred_check_branch
      %30 = sbr.rel (0) target = $region17
    $region16: #{discmaker2_forward.1} parent=1 // pred_region
      _
    $region17: #{discmaker2_forward.1} parent=1 // pred_fallthru
      _
    // Predicated region
    $region18: #{discmaker2_forward.1} parent=1 // pred_check
      _
    $region19: #{discmaker2_forward.1} parent=1 // pred_check_branch
      %32 = sbr.rel (0) target = $region21
    $region20: #{discmaker2_forward.1} parent=1 // pred_region
      _
    $region21: #{discmaker2_forward.1} parent=1 // pred_fallthru
      _
    // Predicated region
    $region22: #{discmaker2_forward.1} parent=1 // pred_check
      _
    $region23: #{discmaker2_forward.1} parent=1 // pred_check_branch
      %34 = sbr.rel (0) target = $region25
    $region24: #{discmaker2_forward.1} parent=1 // pred_region
      _
    $region25: #{discmaker2_forward.1} parent=1 // pred_fallthru
      _
    // Predicated region
    $region26: #{discmaker2_forward.1} parent=1 // pred_check
      _
    $region27: #{discmaker2_forward.1} parent=1 // pred_check_branch
      %36 = sbr.rel (0) target = $region29
    $region28: #{discmaker2_forward.1} parent=1 // pred_region
      _
    $region29: #{discmaker2_forward.1} parent=1 // pred_fallthru
      _
    // Predicated region
    $region30: #{discmaker2_forward.1} parent=1 // pred_check
      _
    $region31: #{discmaker2_forward.1} parent=1 // pred_check_branch
      %38 = sbr.rel (0) target = $region33
    $region32: #{discmaker2_forward.1} parent=1 // pred_region
      _
    $region33: #{discmaker2_forward.1} parent=1 // pred_fallthru
      _
    // Predicated region
    $region34: #{discmaker2_forward.1} parent=1 // pred_check
      _
    $region35: #{discmaker2_forward.1} parent=1 // pred_check_branch
      %40 = sbr.rel (0) target = $region37
    $region36: #{discmaker2_forward.1} parent=1 // pred_region
      _
    $region37: #{discmaker2_forward.1} parent=1 // pred_fallthru
      _
    // Predicated region
    $region38: #{discmaker2_forward.1} parent=1 // pred_check
      _
    $region39: #{discmaker2_forward.1} parent=1 // pred_check_branch
      %42 = sbr.rel (0) target = $region41
    $region40: #{discmaker2_forward.1} parent=1 // pred_region
      _
    $region41: #{discmaker2_forward.1} parent=1 // pred_fallthru
      _
    // Predicated region
    $region42: #{discmaker2_forward.1} parent=1 // pred_check
      _
    $region43: #{discmaker2_forward.1} parent=1 // pred_check_branch
      %44 = sbr.rel (0) target = $region45
    $region44: #{discmaker2_forward.1} parent=1 // pred_region
      _
    $region45: #{discmaker2_forward.1} parent=1 // pred_fallthru
      _
    // Predicated region
    $region46: #{discmaker2_forward.1} parent=1 // pred_check
      _
    $region47: #{discmaker2_forward.1} parent=1 // pred_check_branch
      %46 = sbr.rel (0) target = $region49
    $region48: #{discmaker2_forward.1} parent=1 // pred_region
      _
    $region49: #{discmaker2_forward.1} parent=1 // pred_fallthru
      _
    // Predicated region
    $region50: #{discmaker2_forward.1} parent=1 // pred_check
      _
    $region51: #{discmaker2_forward.1} parent=1 // pred_check_branch
      %48 = sbr.rel (0) target = $region53
    $region52: #{discmaker2_forward.1} parent=1 // pred_region
      _
    $region53: #{discmaker2_forward.1} parent=1 // pred_fallthru
      _
    // Predicated region
    $region54: #{discmaker2_forward.1} parent=1 // pred_check
      _
    $region55: #{discmaker2_forward.1} parent=1 // pred_check_branch
      %50 = sbr.rel (0) target = $region57
    $region56: #{discmaker2_forward.1} parent=1 // pred_region
      _
    $region57: #{discmaker2_forward.1} parent=1 // pred_fallthru
      _
    // Predicated region
    $region58: #{discmaker2_forward.1} parent=1 // pred_check
      _
    $region59: #{discmaker2_forward.1} parent=1 // pred_check_branch
      %52 = sbr.rel (0) target = $region61
    $region60: #{discmaker2_forward.1} parent=1 // pred_region
      _
    $region61: #{discmaker2_forward.1} parent=1 // pred_fallthru
      _
    %v53 = vld [vmem:[%s0] sm:$0xff]
    %v54 = vld [vmem:[%s1] sm:$0xff]
    %v55 = vld [vmem:[%s5] sm:$0xff]
    %v56 = vld [vmem:[%s6] sm:$0x1]
    %v57 = vld [vmem:[%s7] sm:$0xff]
    %v58 = vld [vmem:[%s8] sm:$0x1]
    %v59 = vld [vmem:[%s9] sm:$0xff]
    %v60 = vld [vmem:[%s9 + $0x8] sm:$0xff]
    %v61 = vld [vmem:[%s10] sm:$0x1]
    %v62 = vld [vmem:[%s11] sm:$0xff]
    %v63 = vld [vmem:[%s11 + $0x8] sm:$0xff]
    %v64 = vld [vmem:[%s12] sm:$0x1]
    %v65 = vld [vmem:[%s13] sm:$0xff]
    %v66 = vld [vmem:[%s13 + $0x8] sm:$0xff]
    %v67 = vld [vmem:[%s13 + $0x10] sm:$0xff]
    %v68 = vld [vmem:[%s13 + $0x18] sm:$0xff]
    %v69 = vld [vmem:[%s13 + $0x20] sm:$0xff]
    %v70 = vld [vmem:[%s13 + $0x28] sm:$0xff]
    %v71 = vld [vmem:[%s13 + $0x30] sm:$0xff]
    %v72 = vld [vmem:[%s13 + $0x38] sm:$0xff]
    %v73 = vld [vmem:[%s14] sm:$0x1]
    %v74 = vld [vmem:[%s2] sm:$0xff]
    %v75 = vld [vmem:[%s3] sm:$0xff]
    %v76 = vld [vmem:[%s4] sm:$0xff]
    %78 = vset.pattern.permute.xlu0 0
    %79 = vperm.xlu0 %78, %v53
    %v80 = vpop.permute.xlu0 %79
    %v83 = vlaneseq
    %v84 = vshrl.u32 %v83, 7
    %v85 = vsub.s32 0, %v84
    %v86 = vrot.slane %v56, %v85
    %v88 = vmul.f32 %v80, %v86
    %vm89 = vcmask 64512
    %v91 = vsel %vm89, %v74, 0
    %93 = vmatprep.subr.mxu0 0.0
    %94 = vmatpush1.msra.mxu0 %v55
    %95 = vmatprep.subr.mxu0 0.0
    %96 = vmatpush1.msra.mxu0 0.0
    %97 = vmatprep.subr.mxu0 0.0
    %98 = vmatpush1.msra.mxu0 0.0
    %99 = vmatprep.subr.mxu0 0.0
    %100 = vmatpush1.msra.mxu0 0.0
    %101 = vmatprep.subr.mxu0 0.0
    %102 = vmatpush1.msra.mxu0 0.0
    %103 = vmatprep.subr.mxu0 0.0
    %104 = vmatpush1.msra.mxu0 0.0
    %105 = vmatprep.subr.mxu0 0.0
    %106 = vmatpush1.msra.mxu0 0.0
    %107 = vmatprep.subr.mxu0 0.0
    %108 = vmatpush1.msra.mxu0 0.0
    %109 = vmatprep.subr.mxu0 0.0
    %110 = vmatpush1.msra.mxu0 0.0
    %111 = vmatprep.subr.mxu0 0.0
    %112 = vmatpush1.msra.mxu0 0.0
    %113 = vmatprep.subr.mxu0 0.0
    %114 = vmatpush1.msra.mxu0 0.0
    %115 = vmatprep.subr.mxu0 0.0
    %116 = vmatpush1.msra.mxu0 0.0
    %117 = vmatprep.subr.mxu0 0.0
    %118 = vmatpush1.msra.mxu0 0.0
    %119 = vmatprep.subr.mxu0 0.0
    %120 = vmatpush1.msra.mxu0 0.0
    %121 = vmatprep.subr.mxu0 0.0
    %122 = vmatpush1.msra.mxu0 0.0
    %123 = vmatprep.subr.mxu0 0.0
    %124 = vmatpush1.msra.mxu0 0.0
    %125 = vmatprep.subr.mxu0 0.0
    %126 = vmatpush1.msra.mxu0 0.0
    %127 = vmatprep.subr.mxu0 0.0
    %128 = vmatpush1.msra.mxu0 0.0
    %129 = vmatprep.subr.mxu0 0.0
    %130 = vmatpush1.msra.mxu0 0.0
    %131 = vmatprep.subr.mxu0 0.0
    %132 = vmatpush1.msra.mxu0 0.0
    %133 = vmatprep.subr.mxu0 0.0
    %134 = vmatpush1.msra.mxu0 0.0
    %135 = vmatprep.subr.mxu0 0.0
    %136 = vmatpush1.msra.mxu0 0.0
    %137 = vmatprep.subr.mxu0 0.0
    %138 = vmatpush1.msra.mxu0 0.0
    %139 = vmatprep.subr.mxu0 0.0
    %140 = vmatpush1.msra.mxu0 0.0
    %141 = vmatprep.subr.mxu0 0.0
    %142 = vmatpush1.msra.mxu0 0.0
    %143 = vmatprep.subr.mxu0 0.0
    %144 = vmatpush1.msra.mxu0 0.0
    %145 = vmatprep.subr.mxu0 0.0
    %146 = vmatpush1.msra.mxu0 0.0
    %147 = vmatprep.subr.mxu0 0.0
    %148 = vmatpush1.msra.mxu0 0.0
    %149 = vmatprep.subr.mxu0 0.0
    %150 = vmatpush1.msra.mxu0 0.0
    %151 = vmatprep.subr.mxu0 0.0
    %152 = vmatpush1.msra.mxu0 0.0
    %153 = vmatprep.subr.mxu0 0.0
    %154 = vmatpush1.msra.mxu0 0.0
    %155 = vmatprep.subr.mxu0 0.0
    %156 = vmatpush1.msra.mxu0 0.0
    %157 = vmatprep.mubr.f32.mxu0 0.0
    %158 = vmatmul.mubr.f32.gmra.mrb[0].mxu0 %v91
    %v159 = vpop.f32.mrb[0].mxu0
    %v160 = vadd.f32 %v88, %v159
    %v161 = vpop.f32.mrb[0].mxu0
    %162 = vdwg.mxu0
    %v163 = vtanh.pop %v160
    %165 = vset.pattern.permute.xlu0 0
    %166 = vperm.xlu0 %165, %v76
    %v167 = vpop.permute.xlu0 %166
    %v170 = vlaneseq
    %v171 = vshrl.u32 %v170, 7
    %v172 = vsub.s32 0, %v171
    %v173 = vrot.slane %v58, %v172
    %v175 = vmul.f32 %v167, %v173
    %177 = vrot.lane.b32.xlu0 %v163, 96
    %v178 = vpop.permute.xlu0 %177
    %v179 = vsel %vm89, %v178, 0
    %181 = vmatprep.subr.mxu0 0.0
    %182 = vmatpush1.msra.mxu0 %v57
    %183 = vmatprep.subr.mxu0 0.0
    %184 = vmatpush1.msra.mxu0 0.0
    %185 = vmatprep.subr.mxu0 0.0
    %186 = vmatpush1.msra.mxu0 0.0
    %187 = vmatprep.subr.mxu0 0.0
    %188 = vmatpush1.msra.mxu0 0.0
    %189 = vmatprep.subr.mxu0 0.0
    %190 = vmatpush1.msra.mxu0 0.0
    %191 = vmatprep.subr.mxu0 0.0
    %192 = vmatpush1.msra.mxu0 0.0
    %193 = vmatprep.subr.mxu0 0.0
    %194 = vmatpush1.msra.mxu0 0.0
    %195 = vmatprep.subr.mxu0 0.0
    %196 = vmatpush1.msra.mxu0 0.0
    %197 = vmatprep.subr.mxu0 0.0
    %198 = vmatpush1.msra.mxu0 0.0
    %199 = vmatprep.subr.mxu0 0.0
    %200 = vmatpush1.msra.mxu0 0.0
    %201 = vmatprep.subr.mxu0 0.0
    %202 = vmatpush1.msra.mxu0 0.0
    %203 = vmatprep.subr.mxu0 0.0
    %204 = vmatpush1.msra.mxu0 0.0
    %205 = vmatprep.subr.mxu0 0.0
    %206 = vmatpush1.msra.mxu0 0.0
    %207 = vmatprep.subr.mxu0 0.0
    %208 = vmatpush1.msra.mxu0 0.0
    %209 = vmatprep.subr.mxu0 0.0
    %210 = vmatpush1.msra.mxu0 0.0
    %211 = vmatprep.subr.mxu0 0.0
    %212 = vmatpush1.msra.mxu0 0.0
    %213 = vmatprep.subr.mxu0 0.0
    %214 = vmatpush1.msra.mxu0 0.0
    %215 = vmatprep.subr.mxu0 0.0
    %216 = vmatpush1.msra.mxu0 0.0
    %217 = vmatprep.subr.mxu0 0.0
    %218 = vmatpush1.msra.mxu0 0.0
    %219 = vmatprep.subr.mxu0 0.0
    %220 = vmatpush1.msra.mxu0 0.0
    %221 = vmatprep.subr.mxu0 0.0
    %222 = vmatpush1.msra.mxu0 0.0
    %223 = vmatprep.subr.mxu0 0.0
    %224 = vmatpush1.msra.mxu0 0.0
    %225 = vmatprep.subr.mxu0 0.0
    %226 = vmatpush1.msra.mxu0 0.0
    %227 = vmatprep.subr.mxu0 0.0
    %228 = vmatpush1.msra.mxu0 0.0
    %229 = vmatprep.subr.mxu0 0.0
    %230 = vmatpush1.msra.mxu0 0.0
    %231 = vmatprep.subr.mxu0 0.0
    %232 = vmatpush1.msra.mxu0 0.0
    %233 = vmatprep.subr.mxu0 0.0
    %234 = vmatpush1.msra.mxu0 0.0
    %235 = vmatprep.subr.mxu0 0.0
    %236 = vmatpush1.msra.mxu0 0.0
    %237 = vmatprep.subr.mxu0 0.0
    %238 = vmatpush1.msra.mxu0 0.0
    %239 = vmatprep.subr.mxu0 0.0
    %240 = vmatpush1.msra.mxu0 0.0
    %241 = vmatprep.subr.mxu0 0.0
    %242 = vmatpush1.msra.mxu0 0.0
    %243 = vmatprep.subr.mxu0 0.0
    %244 = vmatpush1.msra.mxu0 0.0
    %245 = vmatprep.mubr.f32.mxu0 0.0
    %246 = vmatmul.mubr.f32.gmra.mrb[0].mxu0 %v179
    %v247 = vpop.f32.mrb[0].mxu0
    %v248 = vadd.f32 %v175, %v247
    %v249 = vpop.f32.mrb[0].mxu0
    %250 = vdwg.mxu0
    %v252 = vlaneseq
    %v253 = vshrl.u32 %v252, 7
    %v254 = vsub.s32 0, %v253
    %v255 = vrot.slane %v61, %v254
    %v257 = vadd.f32 %v248, %v255
    %v258 = vtanh.pop %v257
    %v260 = vlaneseq
    %v261 = vshrl.u32 %v260, 7
    %v262 = vsub.s32 0, %v261
    %v263 = vrot.slane %v64, %v262
    %vm265 = vcmask 130048
    %v267 = vsel %vm265, %v258, 0
    %269 = vmatprep.subr.mxu0 0.0
    %270 = vmatpush1.msra.mxu0 %v62
    %271 = vmatprep.subr.mxu0 0.0
    %272 = vmatpush1.msra.mxu0 %v63
    %273 = vmatprep.subr.mxu0 0.0
    %274 = vmatpush1.msra.mxu0 0.0
    %275 = vmatprep.subr.mxu0 0.0
    %276 = vmatpush1.msra.mxu0 0.0
    %277 = vmatprep.subr.mxu0 0.0
    %278 = vmatpush1.msra.mxu0 0.0
    %279 = vmatprep.subr.mxu0 0.0
    %280 = vmatpush1.msra.mxu0 0.0
    %281 = vmatprep.subr.mxu0 0.0
    %282 = vmatpush1.msra.mxu0 0.0
    %283 = vmatprep.subr.mxu0 0.0
    %284 = vmatpush1.msra.mxu0 0.0
    %285 = vmatprep.subr.mxu0 0.0
    %286 = vmatpush1.msra.mxu0 0.0
    %287 = vmatprep.subr.mxu0 0.0
    %288 = vmatpush1.msra.mxu0 0.0
    %289 = vmatprep.subr.mxu0 0.0
    %290 = vmatpush1.msra.mxu0 0.0
    %291 = vmatprep.subr.mxu0 0.0
    %292 = vmatpush1.msra.mxu0 0.0
    %293 = vmatprep.subr.mxu0 0.0
    %294 = vmatpush1.msra.mxu0 0.0
    %295 = vmatprep.subr.mxu0 0.0
    %296 = vmatpush1.msra.mxu0 0.0
    %297 = vmatprep.subr.mxu0 0.0
    %298 = vmatpush1.msra.mxu0 0.0
    %299 = vmatprep.subr.mxu0 0.0
    %300 = vmatpush1.msra.mxu0 0.0
    %301 = vmatprep.subr.mxu0 0.0
    %302 = vmatpush1.msra.mxu0 0.0
    %303 = vmatprep.subr.mxu0 0.0
    %304 = vmatpush1.msra.mxu0 0.0
    %305 = vmatprep.subr.mxu0 0.0
    %306 = vmatpush1.msra.mxu0 0.0
    %307 = vmatprep.subr.mxu0 0.0
    %308 = vmatpush1.msra.mxu0 0.0
    %309 = vmatprep.subr.mxu0 0.0
    %310 = vmatpush1.msra.mxu0 0.0
    %311 = vmatprep.subr.mxu0 0.0
    %312 = vmatpush1.msra.mxu0 0.0
    %313 = vmatprep.subr.mxu0 0.0
    %314 = vmatpush1.msra.mxu0 0.0
    %315 = vmatprep.subr.mxu0 0.0
    %316 = vmatpush1.msra.mxu0 0.0
    %317 = vmatprep.subr.mxu0 0.0
    %318 = vmatpush1.msra.mxu0 0.0
    %319 = vmatprep.subr.mxu0 0.0
    %320 = vmatpush1.msra.mxu0 0.0
    %321 = vmatprep.subr.mxu0 0.0
    %322 = vmatpush1.msra.mxu0 0.0
    %323 = vmatprep.subr.mxu0 0.0
    %324 = vmatpush1.msra.mxu0 0.0
    %325 = vmatprep.subr.mxu0 0.0
    %326 = vmatpush1.msra.mxu0 0.0
    %327 = vmatprep.subr.mxu0 0.0
    %328 = vmatpush1.msra.mxu0 0.0
    %329 = vmatprep.subr.mxu0 0.0
    %330 = vmatpush1.msra.mxu0 0.0
    %331 = vmatprep.subr.mxu0 0.0
    %332 = vmatpush1.msra.mxu0 0.0
    %333 = vmatprep.mubr.f32.mxu0 0.0
    %334 = vmatmul.mubr.f32.gmra.mrb[0].mxu0 %v267
    %v335 = vpop.f32.mrb[0].mxu0
    %v336 = vadd.f32 %v263, %v335
    %v337 = vpop.f32.mrb[0].mxu0
    %338 = vdwg.mxu0
    %v339 = vmax.f32 %v336, 0.0
    %v341 = vlaneseq
    %v342 = vshrl.u32 %v341, 7
    %v343 = vsub.s32 0, %v342
    %v344 = vrot.slane %v73, %v343
    %vm346 = vcmask 523264
    %v348 = vsel %vm346, %v339, 0
    %350 = vmatprep.subr.mxu0 0.0
    %351 = vmatpush1.msra.mxu0 %v65
    %352 = vmatprep.subr.mxu0 0.0
    %353 = vmatpush1.msra.mxu0 %v66
    %354 = vmatprep.subr.mxu0 0.0
    %355 = vmatpush1.msra.mxu0 %v67
    %356 = vmatprep.subr.mxu0 0.0
    %357 = vmatpush1.msra.mxu0 %v68
    %358 = vmatprep.subr.mxu0 0.0
    %359 = vmatpush1.msra.mxu0 %v69
    %360 = vmatprep.subr.mxu0 0.0
    %361 = vmatpush1.msra.mxu0 %v70
    %362 = vmatprep.subr.mxu0 0.0
    %363 = vmatpush1.msra.mxu0 %v71
    %364 = vmatprep.subr.mxu0 0.0
    %365 = vmatpush1.msra.mxu0 %v72
    %366 = vmatprep.subr.mxu0 0.0
    %367 = vmatpush1.msra.mxu0 0.0
    %368 = vmatprep.subr.mxu0 0.0
    %369 = vmatpush1.msra.mxu0 0.0
    %370 = vmatprep.subr.mxu0 0.0
    %371 = vmatpush1.msra.mxu0 0.0
    %372 = vmatprep.subr.mxu0 0.0
    %373 = vmatpush1.msra.mxu0 0.0
    %374 = vmatprep.subr.mxu0 0.0
    %375 = vmatpush1.msra.mxu0 0.0
    %376 = vmatprep.subr.mxu0 0.0
    %377 = vmatpush1.msra.mxu0 0.0
    %378 = vmatprep.subr.mxu0 0.0
    %379 = vmatpush1.msra.mxu0 0.0
    %380 = vmatprep.subr.mxu0 0.0
    %381 = vmatpush1.msra.mxu0 0.0
    %382 = vmatprep.subr.mxu0 0.0
    %383 = vmatpush1.msra.mxu0 0.0
    %384 = vmatprep.subr.mxu0 0.0
    %385 = vmatpush1.msra.mxu0 0.0
    %386 = vmatprep.subr.mxu0 0.0
    %387 = vmatpush1.msra.mxu0 0.0
    %388 = vmatprep.subr.mxu0 0.0
    %389 = vmatpush1.msra.mxu0 0.0
    %390 = vmatprep.subr.mxu0 0.0
    %391 = vmatpush1.msra.mxu0 0.0
    %392 = vmatprep.subr.mxu0 0.0
    %393 = vmatpush1.msra.mxu0 0.0
    %394 = vmatprep.subr.mxu0 0.0
    %395 = vmatpush1.msra.mxu0 0.0
    %396 = vmatprep.subr.mxu0 0.0
    %397 = vmatpush1.msra.mxu0 0.0
    %398 = vmatprep.subr.mxu0 0.0
    %399 = vmatpush1.msra.mxu0 0.0
    %400 = vmatprep.subr.mxu0 0.0
    %401 = vmatpush1.msra.mxu0 0.0
    %402 = vmatprep.subr.mxu0 0.0
    %403 = vmatpush1.msra.mxu0 0.0
    %404 = vmatprep.subr.mxu0 0.0
    %405 = vmatpush1.msra.mxu0 0.0
    %406 = vmatprep.subr.mxu0 0.0
    %407 = vmatpush1.msra.mxu0 0.0
    %408 = vmatprep.subr.mxu0 0.0
    %409 = vmatpush1.msra.mxu0 0.0
    %410 = vmatprep.subr.mxu0 0.0
    %411 = vmatpush1.msra.mxu0 0.0
    %412 = vmatprep.subr.mxu0 0.0
    %413 = vmatpush1.msra.mxu0 0.0
    %414 = vmatprep.mubr.f32.mxu0 0.0
    %415 = vmatmul.mubr.f32.gmra.mrb[0].mxu0 %v348
    %v416 = vpop.f32.mrb[0].mxu0
    %v417 = vadd.f32 %v344, %v416
    %v418 = vpop.f32.mrb[0].mxu0
    %419 = vdwg.mxu0
    %vm420 = vcmask 31744
    %v421 = vsel %vm420, %v417, -inf
    %422 = vmax.xlane.f32.xlu0 %v421
    %v423 = vpop.xlane.xlu0 %422
    %v424 = vsub.f32 %v417, %v423
    %v425 = vmul.f32 %v424, 1.442695
    %v426 = vpow.pop %v425
    %v427 = vsel %vm420, %v426, 0.0
    %428 = vadd.xlane.f32.xlu0 %v427
    %v429 = vpop.xlane.xlu0 %428
    %v430 = vrcp.pop %v429
    %v431 = vmul.f32 %v426, %v430
    %v432 = vxor.u32 %v258, 2147483648
    %v433 = vmul.f32 %v432, 1.442695
    %v434 = vpow.pop %v433
    %v435 = vadd.f32 %v434, 1.0
    %v436 = vrcp.pop %v435
    %v437 = vmul.f32 1.0, %v436
    %439 = vset.pattern.permute.xlu0 15
    %440 = vperm.xlu0 %439, %v437
    %v441 = vpop.permute.xlu0 %440
    %v443 = vmul.f32 %v431, %v441
    %v444 = vsub.f32 1.0, %v437
    %446 = vset.pattern.permute.xlu0 15
    %447 = vperm.xlu0 %446, %v444
    %v448 = vpop.permute.xlu0 %447
    %v450 = vmul.f32 %v75, %v448
    %v451 = vadd.f32 %v443, %v450
    %453 = vset.pattern.permute.xlu0 0
    %454 = vperm.xlu0 %453, %v451
    %v455 = vpop.permute.xlu0 %454
    %v457 = vmul.f32 %v455, %v163
    %v458 = vadd.f32 %v457, 0.0
    %459 = vset.pattern.permute.xlu0 1
    %460 = vperm.xlu0 %459, %v451
    %v461 = vpop.permute.xlu0 %460
    %v463 = vmul.f32 %v461, %v163
    %465 = vrot.lane.b32.xlu0 %v463, 120
    %v466 = vpop.permute.xlu0 %465
    %v468 = vadd.f32 %v458, %v466
    %469 = vset.pattern.permute.xlu0 2
    %470 = vperm.xlu0 %469, %v451
    %v471 = vpop.permute.xlu0 %470
    %v473 = vmul.f32 %v471, %v163
    %475 = vrot.lane.b32.xlu0 %v473, 112
    %v476 = vpop.permute.xlu0 %475
    %v478 = vadd.f32 %v468, %v476
    %479 = vset.pattern.permute.xlu0 3
    %480 = vperm.xlu0 %479, %v451
    %v481 = vpop.permute.xlu0 %480
    %v483 = vmul.f32 %v481, %v163
    %485 = vrot.lane.b32.xlu0 %v483, 104
    %v486 = vpop.permute.xlu0 %485
    %v488 = vadd.f32 %v478, %v486
    %v489 = vmax.f32 %v488, 0.0
    %v490 = vsub.f32 %v488, 1.0
    %v491 = vmax.f32 %v490, 0.0
    %v492 = vsub.f32 %v489, %v491
    %494 = vrot.lane.b32.xlu0 %v54, 7
    %v495 = vpop.permute.xlu0 %494
    %v497 = vsub.f32 %v492, %v495
    %v498 = vmul.f32 %v497, %v497
    %v499 = vsub.f32 1.0, %v498
    %500 = vset.pattern.permute.xlu0 1
    %501 = vperm.xlu0 %500, %v53
    %v502 = vpop.permute.xlu0 %501
    %v504 = vmul.f32 %v502, %v86
    %v506 = vsel %vm89, %v488, 0
    %508 = vmatprep.subr.mxu0 0.0
    %509 = vmatpush1.msra.mxu0 %v55
    %510 = vmatprep.subr.mxu0 0.0
    %511 = vmatpush1.msra.mxu0 0.0
    %512 = vmatprep.subr.mxu0 0.0
    %513 = vmatpush1.msra.mxu0 0.0
    %514 = vmatprep.subr.mxu0 0.0
    %515 = vmatpush1.msra.mxu0 0.0
    %516 = vmatprep.subr.mxu0 0.0
    %517 = vmatpush1.msra.mxu0 0.0
    %518 = vmatprep.subr.mxu0 0.0
    %519 = vmatpush1.msra.mxu0 0.0
    %520 = vmatprep.subr.mxu0 0.0
    %521 = vmatpush1.msra.mxu0 0.0
    %522 = vmatprep.subr.mxu0 0.0
    %523 = vmatpush1.msra.mxu0 0.0
    %524 = vmatprep.subr.mxu0 0.0
    %525 = vmatpush1.msra.mxu0 0.0
    %526 = vmatprep.subr.mxu0 0.0
    %527 = vmatpush1.msra.mxu0 0.0
    %528 = vmatprep.subr.mxu0 0.0
    %529 = vmatpush1.msra.mxu0 0.0
    %530 = vmatprep.subr.mxu0 0.0
    %531 = vmatpush1.msra.mxu0 0.0
    %532 = vmatprep.subr.mxu0 0.0
    %533 = vmatpush1.msra.mxu0 0.0
    %534 = vmatprep.subr.mxu0 0.0
    %535 = vmatpush1.msra.mxu0 0.0
    %536 = vmatprep.subr.mxu0 0.0
    %537 = vmatpush1.msra.mxu0 0.0
    %538 = vmatprep.subr.mxu0 0.0
    %539 = vmatpush1.msra.mxu0 0.0
    %540 = vmatprep.subr.mxu0 0.0
    %541 = vmatpush1.msra.mxu0 0.0
    %542 = vmatprep.subr.mxu0 0.0
    %543 = vmatpush1.msra.mxu0 0.0
    %544 = vmatprep.subr.mxu0 0.0
    %545 = vmatpush1.msra.mxu0 0.0
    %546 = vmatprep.subr.mxu0 0.0
    %547 = vmatpush1.msra.mxu0 0.0
    %548 = vmatprep.subr.mxu0 0.0
    %549 = vmatpush1.msra.mxu0 0.0
    %550 = vmatprep.subr.mxu0 0.0
    %551 = vmatpush1.msra.mxu0 0.0
    %552 = vmatprep.subr.mxu0 0.0
    %553 = vmatpush1.msra.mxu0 0.0
    %554 = vmatprep.subr.mxu0 0.0
    %555 = vmatpush1.msra.mxu0 0.0
    %556 = vmatprep.subr.mxu0 0.0
    %557 = vmatpush1.msra.mxu0 0.0
    %558 = vmatprep.subr.mxu0 0.0
    %559 = vmatpush1.msra.mxu0 0.0
    %560 = vmatprep.subr.mxu0 0.0
    %561 = vmatpush1.msra.mxu0 0.0
    %562 = vmatprep.subr.mxu0 0.0
    %563 = vmatpush1.msra.mxu0 0.0
    %564 = vmatprep.subr.mxu0 0.0
    %565 = vmatpush1.msra.mxu0 0.0
    %566 = vmatprep.subr.mxu0 0.0
    %567 = vmatpush1.msra.mxu0 0.0
    %568 = vmatprep.subr.mxu0 0.0
    %569 = vmatpush1.msra.mxu0 0.0
    %570 = vmatprep.subr.mxu0 0.0
    %571 = vmatpush1.msra.mxu0 0.0
    %572 = vmatprep.mubr.f32.mxu0 0.0
    %573 = vmatmul.mubr.f32.gmra.mrb[0].mxu0 %v506
    %v574 = vpop.f32.mrb[0].mxu0
    %v575 = vadd.f32 %v504, %v574
    %v576 = vpop.f32.mrb[0].mxu0
    %577 = vdwg.mxu0
    %v578 = vtanh.pop %v575
    %580 = vset.pattern.permute.xlu0 7
    %581 = vperm.xlu0 %580, %v497
    %v582 = vpop.permute.xlu0 %581
    %v584 = vmul.f32 %v582, %v173
    %586 = vrot.lane.b32.xlu0 %v578, 96
    %v587 = vpop.permute.xlu0 %586
    %v588 = vsel %vm89, %v587, 0
    %590 = vmatprep.subr.mxu0 0.0
    %591 = vmatpush1.msra.mxu0 %v57
    %592 = vmatprep.subr.mxu0 0.0
    %593 = vmatpush1.msra.mxu0 0.0
    %594 = vmatprep.subr.mxu0 0.0
    %595 = vmatpush1.msra.mxu0 0.0
    %596 = vmatprep.subr.mxu0 0.0
    %597 = vmatpush1.msra.mxu0 0.0
    %598 = vmatprep.subr.mxu0 0.0
    %599 = vmatpush1.msra.mxu0 0.0
    %600 = vmatprep.subr.mxu0 0.0
    %601 = vmatpush1.msra.mxu0 0.0
    %602 = vmatprep.subr.mxu0 0.0
    %603 = vmatpush1.msra.mxu0 0.0
    %604 = vmatprep.subr.mxu0 0.0
    %605 = vmatpush1.msra.mxu0 0.0
    %606 = vmatprep.subr.mxu0 0.0
    %607 = vmatpush1.msra.mxu0 0.0
    %608 = vmatprep.subr.mxu0 0.0
    %609 = vmatpush1.msra.mxu0 0.0
    %610 = vmatprep.subr.mxu0 0.0
    %611 = vmatpush1.msra.mxu0 0.0
    %612 = vmatprep.subr.mxu0 0.0
    %613 = vmatpush1.msra.mxu0 0.0
    %614 = vmatprep.subr.mxu0 0.0
    %615 = vmatpush1.msra.mxu0 0.0
    %616 = vmatprep.subr.mxu0 0.0
    %617 = vmatpush1.msra.mxu0 0.0
    %618 = vmatprep.subr.mxu0 0.0
    %619 = vmatpush1.msra.mxu0 0.0
    %620 = vmatprep.subr.mxu0 0.0
    %621 = vmatpush1.msra.mxu0 0.0
    %622 = vmatprep.subr.mxu0 0.0
    %623 = vmatpush1.msra.mxu0 0.0
    %624 = vmatprep.subr.mxu0 0.0
    %625 = vmatpush1.msra.mxu0 0.0
    %626 = vmatprep.subr.mxu0 0.0
    %627 = vmatpush1.msra.mxu0 0.0
    %628 = vmatprep.subr.mxu0 0.0
    %629 = vmatpush1.msra.mxu0 0.0
    %630 = vmatprep.subr.mxu0 0.0
    %631 = vmatpush1.msra.mxu0 0.0
    %632 = vmatprep.subr.mxu0 0.0
    %633 = vmatpush1.msra.mxu0 0.0
    %634 = vmatprep.subr.mxu0 0.0
    %635 = vmatpush1.msra.mxu0 0.0
    %636 = vmatprep.subr.mxu0 0.0
    %637 = vmatpush1.msra.mxu0 0.0
    %638 = vmatprep.subr.mxu0 0.0
    %639 = vmatpush1.msra.mxu0 0.0
    %640 = vmatprep.subr.mxu0 0.0
    %641 = vmatpush1.msra.mxu0 0.0
    %642 = vmatprep.subr.mxu0 0.0
    %643 = vmatpush1.msra.mxu0 0.0
    %644 = vmatprep.subr.mxu0 0.0
    %645 = vmatpush1.msra.mxu0 0.0
    %646 = vmatprep.subr.mxu0 0.0
    %647 = vmatpush1.msra.mxu0 0.0
    %648 = vmatprep.subr.mxu0 0.0
    %649 = vmatpush1.msra.mxu0 0.0
    %650 = vmatprep.subr.mxu0 0.0
    %651 = vmatpush1.msra.mxu0 0.0
    %652 = vmatprep.subr.mxu0 0.0
    %653 = vmatpush1.msra.mxu0 0.0
    %654 = vmatprep.mubr.f32.mxu0 0.0
    %655 = vmatmul.mubr.f32.gmra.mrb[0].mxu0 %v588
    %v656 = vpop.f32.mrb[0].mxu0
    %v657 = vadd.f32 %v584, %v656
    %v658 = vpop.f32.mrb[0].mxu0
    %659 = vdwg.mxu0
    %v660 = vadd.f32 %v657, %v255
    %661 = vmatprep.subr.mxu0 0.0
    %662 = vmatpush1.msra.mxu0 %v59
    %663 = vmatprep.subr.mxu0 0.0
    %664 = vmatpush1.msra.mxu0 %v60
    %665 = vmatprep.subr.mxu0 0.0
    %666 = vmatpush1.msra.mxu0 0.0
    %667 = vmatprep.subr.mxu0 0.0
    %668 = vmatpush1.msra.mxu0 0.0
    %669 = vmatprep.subr.mxu0 0.0
    %670 = vmatpush1.msra.mxu0 0.0
    %671 = vmatprep.subr.mxu0 0.0
    %672 = vmatpush1.msra.mxu0 0.0
    %673 = vmatprep.subr.mxu0 0.0
    %674 = vmatpush1.msra.mxu0 0.0
    %675 = vmatprep.subr.mxu0 0.0
    %676 = vmatpush1.msra.mxu0 0.0
    %677 = vmatprep.subr.mxu0 0.0
    %678 = vmatpush1.msra.mxu0 0.0
    %679 = vmatprep.subr.mxu0 0.0
    %680 = vmatpush1.msra.mxu0 0.0
    %681 = vmatprep.subr.mxu0 0.0
    %682 = vmatpush1.msra.mxu0 0.0
    %683 = vmatprep.subr.mxu0 0.0
    %684 = vmatpush1.msra.mxu0 0.0
    %685 = vmatprep.subr.mxu0 0.0
    %686 = vmatpush1.msra.mxu0 0.0
    %687 = vmatprep.subr.mxu0 0.0
    %688 = vmatpush1.msra.mxu0 0.0
    %689 = vmatprep.subr.mxu0 0.0
    %690 = vmatpush1.msra.mxu0 0.0
    %691 = vmatprep.subr.mxu0 0.0
    %692 = vmatpush1.msra.mxu0 0.0
    %693 = vmatprep.subr.mxu0 0.0
    %694 = vmatpush1.msra.mxu0 0.0
    %695 = vmatprep.subr.mxu0 0.0
    %696 = vmatpush1.msra.mxu0 0.0
    %697 = vmatprep.subr.mxu0 0.0
    %698 = vmatpush1.msra.mxu0 0.0
    %699 = vmatprep.subr.mxu0 0.0
    %700 = vmatpush1.msra.mxu0 0.0
    %701 = vmatprep.subr.mxu0 0.0
    %702 = vmatpush1.msra.mxu0 0.0
    %703 = vmatprep.subr.mxu0 0.0
    %704 = vmatpush1.msra.mxu0 0.0
    %705 = vmatprep.subr.mxu0 0.0
    %706 = vmatpush1.msra.mxu0 0.0
    %707 = vmatprep.subr.mxu0 0.0
    %708 = vmatpush1.msra.mxu0 0.0
    %709 = vmatprep.subr.mxu0 0.0
    %710 = vmatpush1.msra.mxu0 0.0
    %711 = vmatprep.subr.mxu0 0.0
    %712 = vmatpush1.msra.mxu0 0.0
    %713 = vmatprep.subr.mxu0 0.0
    %714 = vmatpush1.msra.mxu0 0.0
    %715 = vmatprep.subr.mxu0 0.0
    %716 = vmatpush1.msra.mxu0 0.0
    %717 = vmatprep.subr.mxu0 0.0
    %718 = vmatpush1.msra.mxu0 0.0
    %719 = vmatprep.subr.mxu0 0.0
    %720 = vmatpush1.msra.mxu0 0.0
    %721 = vmatprep.subr.mxu0 0.0
    %722 = vmatpush1.msra.mxu0 0.0
    %723 = vmatprep.subr.mxu0 0.0
    %724 = vmatpush1.msra.mxu0 0.0
    %725 = vmatprep.mubr.f32.mxu0 0.0
    %726 = vmatmul.mubr.f32.gmra.mrb[0].mxu0 %v267
    %v727 = vpop.f32.mrb[0].mxu0
    %v728 = vadd.f32 0.0, %v727
    %v729 = vpop.f32.mrb[0].mxu0
    %730 = vdwg.mxu0
    %v731 = vadd.f32 %v660, %v728
    %v732 = vtanh.pop %v731
    %v734 = vsel %vm265, %v732, 0
    %736 = vmatprep.subr.mxu0 0.0
    %737 = vmatpush1.msra.mxu0 %v62
    %738 = vmatprep.subr.mxu0 0.0
    %739 = vmatpush1.msra.mxu0 %v63
    %740 = vmatprep.subr.mxu0 0.0
    %741 = vmatpush1.msra.mxu0 0.0
    %742 = vmatprep.subr.mxu0 0.0
    %743 = vmatpush1.msra.mxu0 0.0
    %744 = vmatprep.subr.mxu0 0.0
    %745 = vmatpush1.msra.mxu0 0.0
    %746 = vmatprep.subr.mxu0 0.0
    %747 = vmatpush1.msra.mxu0 0.0
    %748 = vmatprep.subr.mxu0 0.0
    %749 = vmatpush1.msra.mxu0 0.0
    %750 = vmatprep.subr.mxu0 0.0
    %751 = vmatpush1.msra.mxu0 0.0
    %752 = vmatprep.subr.mxu0 0.0
    %753 = vmatpush1.msra.mxu0 0.0
    %754 = vmatprep.subr.mxu0 0.0
    %755 = vmatpush1.msra.mxu0 0.0
    %756 = vmatprep.subr.mxu0 0.0
    %757 = vmatpush1.msra.mxu0 0.0
    %758 = vmatprep.subr.mxu0 0.0
    %759 = vmatpush1.msra.mxu0 0.0
    %760 = vmatprep.subr.mxu0 0.0
    %761 = vmatpush1.msra.mxu0 0.0
    %762 = vmatprep.subr.mxu0 0.0
    %763 = vmatpush1.msra.mxu0 0.0
    %764 = vmatprep.subr.mxu0 0.0
    %765 = vmatpush1.msra.mxu0 0.0
    %766 = vmatprep.subr.mxu0 0.0
    %767 = vmatpush1.msra.mxu0 0.0
    %768 = vmatprep.subr.mxu0 0.0
    %769 = vmatpush1.msra.mxu0 0.0
    %770 = vmatprep.subr.mxu0 0.0
    %771 = vmatpush1.msra.mxu0 0.0
    %772 = vmatprep.subr.mxu0 0.0
    %773 = vmatpush1.msra.mxu0 0.0
    %774 = vmatprep.subr.mxu0 0.0
    %775 = vmatpush1.msra.mxu0 0.0
    %776 = vmatprep.subr.mxu0 0.0
    %777 = vmatpush1.msra.mxu0 0.0
    %778 = vmatprep.subr.mxu0 0.0
    %779 = vmatpush1.msra.mxu0 0.0
    %780 = vmatprep.subr.mxu0 0.0
    %781 = vmatpush1.msra.mxu0 0.0
    %782 = vmatprep.subr.mxu0 0.0
    %783 = vmatpush1.msra.mxu0 0.0
    %784 = vmatprep.subr.mxu0 0.0
    %785 = vmatpush1.msra.mxu0 0.0
    %786 = vmatprep.subr.mxu0 0.0
    %787 = vmatpush1.msra.mxu0 0.0
    %788 = vmatprep.subr.mxu0 0.0
    %789 = vmatpush1.msra.mxu0 0.0
    %790 = vmatprep.subr.mxu0 0.0
    %791 = vmatpush1.msra.mxu0 0.0
    %792 = vmatprep.subr.mxu0 0.0
    %793 = vmatpush1.msra.mxu0 0.0
    %794 = vmatprep.subr.mxu0 0.0
    %795 = vmatpush1.msra.mxu0 0.0
    %796 = vmatprep.subr.mxu0 0.0
    %797 = vmatpush1.msra.mxu0 0.0
    %798 = vmatprep.subr.mxu0 0.0
    %799 = vmatpush1.msra.mxu0 0.0
    %800 = vmatprep.mubr.f32.mxu0 0.0
    %801 = vmatmul.mubr.f32.gmra.mrb[0].mxu0 %v734
    %v802 = vpop.f32.mrb[0].mxu0
    %v803 = vadd.f32 %v263, %v802
    %v804 = vpop.f32.mrb[0].mxu0
    %805 = vdwg.mxu0
    %v806 = vmax.f32 %v803, 0.0
    %v808 = vsel %vm346, %v806, 0
    %810 = vmatprep.subr.mxu0 0.0
    %811 = vmatpush1.msra.mxu0 %v65
    %812 = vmatprep.subr.mxu0 0.0
    %813 = vmatpush1.msra.mxu0 %v66
    %814 = vmatprep.subr.mxu0 0.0
    %815 = vmatpush1.msra.mxu0 %v67
    %816 = vmatprep.subr.mxu0 0.0
    %817 = vmatpush1.msra.mxu0 %v68
    %818 = vmatprep.subr.mxu0 0.0
    %819 = vmatpush1.msra.mxu0 %v69
    %820 = vmatprep.subr.mxu0 0.0
    %821 = vmatpush1.msra.mxu0 %v70
    %822 = vmatprep.subr.mxu0 0.0
    %823 = vmatpush1.msra.mxu0 %v71
    %824 = vmatprep.subr.mxu0 0.0
    %825 = vmatpush1.msra.mxu0 %v72
    %826 = vmatprep.subr.mxu0 0.0
    %827 = vmatpush1.msra.mxu0 0.0
    %828 = vmatprep.subr.mxu0 0.0
    %829 = vmatpush1.msra.mxu0 0.0
    %830 = vmatprep.subr.mxu0 0.0
    %831 = vmatpush1.msra.mxu0 0.0
    %832 = vmatprep.subr.mxu0 0.0
    %833 = vmatpush1.msra.mxu0 0.0
    %834 = vmatprep.subr.mxu0 0.0
    %835 = vmatpush1.msra.mxu0 0.0
    %836 = vmatprep.subr.mxu0 0.0
    %837 = vmatpush1.msra.mxu0 0.0
    %838 = vmatprep.subr.mxu0 0.0
    %839 = vmatpush1.msra.mxu0 0.0
    %840 = vmatprep.subr.mxu0 0.0
    %841 = vmatpush1.msra.mxu0 0.0
    %842 = vmatprep.subr.mxu0 0.0
    %843 = vmatpush1.msra.mxu0 0.0
    %844 = vmatprep.subr.mxu0 0.0
    %845 = vmatpush1.msra.mxu0 0.0
    %846 = vmatprep.subr.mxu0 0.0
    %847 = vmatpush1.msra.mxu0 0.0
    %848 = vmatprep.subr.mxu0 0.0
    %849 = vmatpush1.msra.mxu0 0.0
    %850 = vmatprep.subr.mxu0 0.0
    %851 = vmatpush1.msra.mxu0 0.0
    %852 = vmatprep.subr.mxu0 0.0
    %853 = vmatpush1.msra.mxu0 0.0
    %854 = vmatprep.subr.mxu0 0.0
    %855 = vmatpush1.msra.mxu0 0.0
    %856 = vmatprep.subr.mxu0 0.0
    %857 = vmatpush1.msra.mxu0 0.0
    %858 = vmatprep.subr.mxu0 0.0
    %859 = vmatpush1.msra.mxu0 0.0
    %860 = vmatprep.subr.mxu0 0.0
    %861 = vmatpush1.msra.mxu0 0.0
    %862 = vmatprep.subr.mxu0 0.0
    %863 = vmatpush1.msra.mxu0 0.0
    %864 = vmatprep.subr.mxu0 0.0
    %865 = vmatpush1.msra.mxu0 0.0
    %866 = vmatprep.subr.mxu0 0.0
    %867 = vmatpush1.msra.mxu0 0.0
    %868 = vmatprep.subr.mxu0 0.0
    %869 = vmatpush1.msra.mxu0 0.0
    %870 = vmatprep.subr.mxu0 0.0
    %871 = vmatpush1.msra.mxu0 0.0
    %872 = vmatprep.subr.mxu0 0.0
    %873 = vmatpush1.msra.mxu0 0.0
    %874 = vmatprep.mubr.f32.mxu0 0.0
    %875 = vmatmul.mubr.f32.gmra.mrb[0].mxu0 %v808
    %v876 = vpop.f32.mrb[0].mxu0
    %v877 = vadd.f32 %v344, %v876
    %v878 = vpop.f32.mrb[0].mxu0
    %879 = vdwg.mxu0
    %v880 = vsel %vm420, %v877, -inf
    %881 = vmax.xlane.f32.xlu0 %v880
    %v882 = vpop.xlane.xlu0 %881
    %v883 = vsub.f32 %v877, %v882
    %v884 = vmul.f32 %v883, 1.442695
    %v885 = vpow.pop %v884
    %v886 = vsel %vm420, %v885, 0.0
    %887 = vadd.xlane.f32.xlu0 %v886
    %v888 = vpop.xlane.xlu0 %887
    %v889 = vrcp.pop %v888
    %v890 = vmul.f32 %v885, %v889
    %v891 = vxor.u32 %v732, 2147483648
    %v892 = vmul.f32 %v891, 1.442695
    %v893 = vpow.pop %v892
    %v894 = vadd.f32 %v893, 1.0
    %v895 = vrcp.pop %v894
    %v896 = vmul.f32 1.0, %v895
    %898 = vset.pattern.permute.xlu0 15
    %899 = vperm.xlu0 %898, %v896
    %v900 = vpop.permute.xlu0 %899
    %v902 = vmul.f32 %v890, %v900
    %v903 = vsub.f32 1.0, %v896
    %905 = vset.pattern.permute.xlu0 15
    %906 = vperm.xlu0 %905, %v903
    %v907 = vpop.permute.xlu0 %906
    %v909 = vmul.f32 %v451, %v907
    %v910 = vadd.f32 %v902, %v909
    %912 = vset.pattern.permute.xlu0 0
    %913 = vperm.xlu0 %912, %v910
    %v914 = vpop.permute.xlu0 %913
    %v916 = vmul.f32 %v914, %v578
    %v917 = vadd.f32 %v916, 0.0
    %918 = vset.pattern.permute.xlu0 1
    %919 = vperm.xlu0 %918, %v910
    %v920 = vpop.permute.xlu0 %919
    %v922 = vmul.f32 %v920, %v578
    %924 = vrot.lane.b32.xlu0 %v922, 120
    %v925 = vpop.permute.xlu0 %924
    %v927 = vadd.f32 %v917, %v925
    %928 = vset.pattern.permute.xlu0 2
    %929 = vperm.xlu0 %928, %v910
    %v930 = vpop.permute.xlu0 %929
    %v932 = vmul.f32 %v930, %v578
    %934 = vrot.lane.b32.xlu0 %v932, 112
    %v935 = vpop.permute.xlu0 %934
    %v937 = vadd.f32 %v927, %v935
    %938 = vset.pattern.permute.xlu0 3
    %939 = vperm.xlu0 %938, %v910
    %v940 = vpop.permute.xlu0 %939
    %v942 = vmul.f32 %v940, %v578
    %944 = vrot.lane.b32.xlu0 %v942, 104
    %v945 = vpop.permute.xlu0 %944
    %v947 = vadd.f32 %v937, %v945
    %v948 = vmax.f32 %v947, 0.0
    %v949 = vsub.f32 %v947, 1.0
    %v950 = vmax.f32 %v949, 0.0
    %v951 = vsub.f32 %v948, %v950
    %952 = vrot.lane.b32.xlu0 %v54, 6
    %v953 = vpop.permute.xlu0 %952
    %v955 = vsub.f32 %v951, %v953
    %v956 = vmul.f32 %v955, %v955
    %v957 = vsub.f32 1.0, %v956
    %958 = vset.pattern.permute.xlu0 2
    %959 = vperm.xlu0 %958, %v53
    %v960 = vpop.permute.xlu0 %959
    %v962 = vmul.f32 %v960, %v86
    %v964 = vsel %vm89, %v947, 0
    %966 = vmatprep.subr.mxu0 0.0
    %967 = vmatpush1.msra.mxu0 %v55
    %968 = vmatprep.subr.mxu0 0.0
    %969 = vmatpush1.msra.mxu0 0.0
    %970 = vmatprep.subr.mxu0 0.0
    %971 = vmatpush1.msra.mxu0 0.0
    %972 = vmatprep.subr.mxu0 0.0
    %973 = vmatpush1.msra.mxu0 0.0
    %974 = vmatprep.subr.mxu0 0.0
    %975 = vmatpush1.msra.mxu0 0.0
    %976 = vmatprep.subr.mxu0 0.0
    %977 = vmatpush1.msra.mxu0 0.0
    %978 = vmatprep.subr.mxu0 0.0
    %979 = vmatpush1.msra.mxu0 0.0
    %980 = vmatprep.subr.mxu0 0.0
    %981 = vmatpush1.msra.mxu0 0.0
    %982 = vmatprep.subr.mxu0 0.0
    %983 = vmatpush1.msra.mxu0 0.0
    %984 = vmatprep.subr.mxu0 0.0
    %985 = vmatpush1.msra.mxu0 0.0
    %986 = vmatprep.subr.mxu0 0.0
    %987 = vmatpush1.msra.mxu0 0.0
    %988 = vmatprep.subr.mxu0 0.0
    %989 = vmatpush1.msra.mxu0 0.0
    %990 = vmatprep.subr.mxu0 0.0
    %991 = vmatpush1.msra.mxu0 0.0
    %992 = vmatprep.subr.mxu0 0.0
    %993 = vmatpush1.msra.mxu0 0.0
    %994 = vmatprep.subr.mxu0 0.0
    %995 = vmatpush1.msra.mxu0 0.0
    %996 = vmatprep.subr.mxu0 0.0
    %997 = vmatpush1.msra.mxu0 0.0
    %998 = vmatprep.subr.mxu0 0.0
    %999 = vmatpush1.msra.mxu0 0.0
    %1000 = vmatprep.subr.mxu0 0.0
    %1001 = vmatpush1.msra.mxu0 0.0
    %1002 = vmatprep.subr.mxu0 0.0
    %1003 = vmatpush1.msra.mxu0 0.0
    %1004 = vmatprep.subr.mxu0 0.0
    %1005 = vmatpush1.msra.mxu0 0.0
    %1006 = vmatprep.subr.mxu0 0.0
    %1007 = vmatpush1.msra.mxu0 0.0
    %1008 = vmatprep.subr.mxu0 0.0
    %1009 = vmatpush1.msra.mxu0 0.0
    %1010 = vmatprep.subr.mxu0 0.0
    %1011 = vmatpush1.msra.mxu0 0.0
    %1012 = vmatprep.subr.mxu0 0.0
    %1013 = vmatpush1.msra.mxu0 0.0
    %1014 = vmatprep.subr.mxu0 0.0
    %1015 = vmatpush1.msra.mxu0 0.0
    %1016 = vmatprep.subr.mxu0 0.0
    %1017 = vmatpush1.msra.mxu0 0.0
    %1018 = vmatprep.subr.mxu0 0.0
    %1019 = vmatpush1.msra.mxu0 0.0
    %1020 = vmatprep.subr.mxu0 0.0
    %1021 = vmatpush1.msra.mxu0 0.0
    %1022 = vmatprep.subr.mxu0 0.0
    %1023 = vmatpush1.msra.mxu0 0.0
    %1024 = vmatprep.subr.mxu0 0.0
    %1025 = vmatpush1.msra.mxu0 0.0
    %1026 = vmatprep.subr.mxu0 0.0
    %1027 = vmatpush1.msra.mxu0 0.0
    %1028 = vmatprep.subr.mxu0 0.0
    %1029 = vmatpush1.msra.mxu0 0.0
    %1030 = vmatprep.mubr.f32.mxu0 0.0
    %1031 = vmatmul.mubr.f32.gmra.mrb[0].mxu0 %v964
    %v1032 = vpop.f32.mrb[0].mxu0
    %v1033 = vadd.f32 %v962, %v1032
    %v1034 = vpop.f32.mrb[0].mxu0
    %1035 = vdwg.mxu0
    %v1036 = vtanh.pop %v1033
    %1038 = vset.pattern.permute.xlu0 7
    %1039 = vperm.xlu0 %1038, %v955
    %v1040 = vpop.permute.xlu0 %1039
    %v1042 = vmul.f32 %v1040, %v173
    %1044 = vrot.lane.b32.xlu0 %v1036, 96
    %v1045 = vpop.permute.xlu0 %1044
    %v1046 = vsel %vm89, %v1045, 0
    %1048 = vmatprep.subr.mxu0 0.0
    %1049 = vmatpush1.msra.mxu0 %v57
    %1050 = vmatprep.subr.mxu0 0.0
    %1051 = vmatpush1.msra.mxu0 0.0
    %1052 = vmatprep.subr.mxu0 0.0
    %1053 = vmatpush1.msra.mxu0 0.0
    %1054 = vmatprep.subr.mxu0 0.0
    %1055 = vmatpush1.msra.mxu0 0.0
    %1056 = vmatprep.subr.mxu0 0.0
    %1057 = vmatpush1.msra.mxu0 0.0
    %1058 = vmatprep.subr.mxu0 0.0
    %1059 = vmatpush1.msra.mxu0 0.0
    %1060 = vmatprep.subr.mxu0 0.0
    %1061 = vmatpush1.msra.mxu0 0.0
    %1062 = vmatprep.subr.mxu0 0.0
    %1063 = vmatpush1.msra.mxu0 0.0
    %1064 = vmatprep.subr.mxu0 0.0
    %1065 = vmatpush1.msra.mxu0 0.0
    %1066 = vmatprep.subr.mxu0 0.0
    %1067 = vmatpush1.msra.mxu0 0.0
    %1068 = vmatprep.subr.mxu0 0.0
    %1069 = vmatpush1.msra.mxu0 0.0
    %1070 = vmatprep.subr.mxu0 0.0
    %1071 = vmatpush1.msra.mxu0 0.0
    %1072 = vmatprep.subr.mxu0 0.0
    %1073 = vmatpush1.msra.mxu0 0.0
    %1074 = vmatprep.subr.mxu0 0.0
    %1075 = vmatpush1.msra.mxu0 0.0
    %1076 = vmatprep.subr.mxu0 0.0
    %1077 = vmatpush1.msra.mxu0 0.0
    %1078 = vmatprep.subr.mxu0 0.0
    %1079 = vmatpush1.msra.mxu0 0.0
    %1080 = vmatprep.subr.mxu0 0.0
    %1081 = vmatpush1.msra.mxu0 0.0
    %1082 = vmatprep.subr.mxu0 0.0
    %1083 = vmatpush1.msra.mxu0 0.0
    %1084 = vmatprep.subr.mxu0 0.0
    %1085 = vmatpush1.msra.mxu0 0.0
    %1086 = vmatprep.subr.mxu0 0.0
    %1087 = vmatpush1.msra.mxu0 0.0
    %1088 = vmatprep.subr.mxu0 0.0
    %1089 = vmatpush1.msra.mxu0 0.0
    %1090 = vmatprep.subr.mxu0 0.0
    %1091 = vmatpush1.msra.mxu0 0.0
    %1092 = vmatprep.subr.mxu0 0.0
    %1093 = vmatpush1.msra.mxu0 0.0
    %1094 = vmatprep.subr.mxu0 0.0
    %1095 = vmatpush1.msra.mxu0 0.0
    %1096 = vmatprep.subr.mxu0 0.0
    %1097 = vmatpush1.msra.mxu0 0.0
    %1098 = vmatprep.subr.mxu0 0.0
    %1099 = vmatpush1.msra.mxu0 0.0
    %1100 = vmatprep.subr.mxu0 0.0
    %1101 = vmatpush1.msra.mxu0 0.0
    %1102 = vmatprep.subr.mxu0 0.0
    %1103 = vmatpush1.msra.mxu0 0.0
    %1104 = vmatprep.subr.mxu0 0.0
    %1105 = vmatpush1.msra.mxu0 0.0
    %1106 = vmatprep.subr.mxu0 0.0
    %1107 = vmatpush1.msra.mxu0 0.0
    %1108 = vmatprep.subr.mxu0 0.0
    %1109 = vmatpush1.msra.mxu0 0.0
    %1110 = vmatprep.subr.mxu0 0.0
    %1111 = vmatpush1.msra.mxu0 0.0
    %1112 = vmatprep.mubr.f32.mxu0 0.0
    %1113 = vmatmul.mubr.f32.gmra.mrb[0].mxu0 %v1046
    %v1114 = vpop.f32.mrb[0].mxu0
    %v1115 = vadd.f32 %v1042, %v1114
    %v1116 = vpop.f32.mrb[0].mxu0
    %1117 = vdwg.mxu0
    %v1118 = vadd.f32 %v1115, %v255
    %1119 = vmatprep.subr.mxu0 0.0
    %1120 = vmatpush1.msra.mxu0 %v59
    %1121 = vmatprep.subr.mxu0 0.0
    %1122 = vmatpush1.msra.mxu0 %v60
    %1123 = vmatprep.subr.mxu0 0.0
    %1124 = vmatpush1.msra.mxu0 0.0
    %1125 = vmatprep.subr.mxu0 0.0
    %1126 = vmatpush1.msra.mxu0 0.0
    %1127 = vmatprep.subr.mxu0 0.0
    %1128 = vmatpush1.msra.mxu0 0.0
    %1129 = vmatprep.subr.mxu0 0.0
    %1130 = vmatpush1.msra.mxu0 0.0
    %1131 = vmatprep.subr.mxu0 0.0
    %1132 = vmatpush1.msra.mxu0 0.0
    %1133 = vmatprep.subr.mxu0 0.0
    %1134 = vmatpush1.msra.mxu0 0.0
    %1135 = vmatprep.subr.mxu0 0.0
    %1136 = vmatpush1.msra.mxu0 0.0
    %1137 = vmatprep.subr.mxu0 0.0
    %1138 = vmatpush1.msra.mxu0 0.0
    %1139 = vmatprep.subr.mxu0 0.0
    %1140 = vmatpush1.msra.mxu0 0.0
    %1141 = vmatprep.subr.mxu0 0.0
    %1142 = vmatpush1.msra.mxu0 0.0
    %1143 = vmatprep.subr.mxu0 0.0
    %1144 = vmatpush1.msra.mxu0 0.0
    %1145 = vmatprep.subr.mxu0 0.0
    %1146 = vmatpush1.msra.mxu0 0.0
    %1147 = vmatprep.subr.mxu0 0.0
    %1148 = vmatpush1.msra.mxu0 0.0
    %1149 = vmatprep.subr.mxu0 0.0
    %1150 = vmatpush1.msra.mxu0 0.0
    %1151 = vmatprep.subr.mxu0 0.0
    %1152 = vmatpush1.msra.mxu0 0.0
    %1153 = vmatprep.subr.mxu0 0.0
    %1154 = vmatpush1.msra.mxu0 0.0
    %1155 = vmatprep.subr.mxu0 0.0
    %1156 = vmatpush1.msra.mxu0 0.0
    %1157 = vmatprep.subr.mxu0 0.0
    %1158 = vmatpush1.msra.mxu0 0.0
    %1159 = vmatprep.subr.mxu0 0.0
    %1160 = vmatpush1.msra.mxu0 0.0
    %1161 = vmatprep.subr.mxu0 0.0
    %1162 = vmatpush1.msra.mxu0 0.0
    %1163 = vmatprep.subr.mxu0 0.0
    %1164 = vmatpush1.msra.mxu0 0.0
    %1165 = vmatprep.subr.mxu0 0.0
    %1166 = vmatpush1.msra.mxu0 0.0
    %1167 = vmatprep.subr.mxu0 0.0
    %1168 = vmatpush1.msra.mxu0 0.0
    %1169 = vmatprep.subr.mxu0 0.0
    %1170 = vmatpush1.msra.mxu0 0.0
    %1171 = vmatprep.subr.mxu0 0.0
    %1172 = vmatpush1.msra.mxu0 0.0
    %1173 = vmatprep.subr.mxu0 0.0
    %1174 = vmatpush1.msra.mxu0 0.0
    %1175 = vmatprep.subr.mxu0 0.0
    %1176 = vmatpush1.msra.mxu0 0.0
    %1177 = vmatprep.subr.mxu0 0.0
    %1178 = vmatpush1.msra.mxu0 0.0
    %1179 = vmatprep.subr.mxu0 0.0
    %1180 = vmatpush1.msra.mxu0 0.0
    %1181 = vmatprep.subr.mxu0 0.0
    %1182 = vmatpush1.msra.mxu0 0.0
    %1183 = vmatprep.mubr.f32.mxu0 0.0
    %1184 = vmatmul.mubr.f32.gmra.mrb[0].mxu0 %v734
    %v1185 = vpop.f32.mrb[0].mxu0
    %v1186 = vadd.f32 0.0, %v1185
    %v1187 = vpop.f32.mrb[0].mxu0
    %1188 = vdwg.mxu0
    %v1189 = vadd.f32 %v1118, %v1186
    %v1190 = vtanh.pop %v1189
    %v1192 = vsel %vm265, %v1190, 0
    %1194 = vmatprep.subr.mxu0 0.0
    %1195 = vmatpush1.msra.mxu0 %v62
    %1196 = vmatprep.subr.mxu0 0.0
    %1197 = vmatpush1.msra.mxu0 %v63
    %1198 = vmatprep.subr.mxu0 0.0
    %1199 = vmatpush1.msra.mxu0 0.0
    %1200 = vmatprep.subr.mxu0 0.0
    %1201 = vmatpush1.msra.mxu0 0.0
    %1202 = vmatprep.subr.mxu0 0.0
    %1203 = vmatpush1.msra.mxu0 0.0
    %1204 = vmatprep.subr.mxu0 0.0
    %1205 = vmatpush1.msra.mxu0 0.0
    %1206 = vmatprep.subr.mxu0 0.0
    %1207 = vmatpush1.msra.mxu0 0.0
    %1208 = vmatprep.subr.mxu0 0.0
    %1209 = vmatpush1.msra.mxu0 0.0
    %1210 = vmatprep.subr.mxu0 0.0
    %1211 = vmatpush1.msra.mxu0 0.0
    %1212 = vmatprep.subr.mxu0 0.0
    %1213 = vmatpush1.msra.mxu0 0.0
    %1214 = vmatprep.subr.mxu0 0.0
    %1215 = vmatpush1.msra.mxu0 0.0
    %1216 = vmatprep.subr.mxu0 0.0
    %1217 = vmatpush1.msra.mxu0 0.0
    %1218 = vmatprep.subr.mxu0 0.0
    %1219 = vmatpush1.msra.mxu0 0.0
    %1220 = vmatprep.subr.mxu0 0.0
    %1221 = vmatpush1.msra.mxu0 0.0
    %1222 = vmatprep.subr.mxu0 0.0
    %1223 = vmatpush1.msra.mxu0 0.0
    %1224 = vmatprep.subr.mxu0 0.0
    %1225 = vmatpush1.msra.mxu0 0.0
    %1226 = vmatprep.subr.mxu0 0.0
    %1227 = vmatpush1.msra.mxu0 0.0
    %1228 = vmatprep.subr.mxu0 0.0
    %1229 = vmatpush1.msra.mxu0 0.0
    %1230 = vmatprep.subr.mxu0 0.0
    %1231 = vmatpush1.msra.mxu0 0.0
    %1232 = vmatprep.subr.mxu0 0.0
    %1233 = vmatpush1.msra.mxu0 0.0
    %1234 = vmatprep.subr.mxu0 0.0
    %1235 = vmatpush1.msra.mxu0 0.0
    %1236 = vmatprep.subr.mxu0 0.0
    %1237 = vmatpush1.msra.mxu0 0.0
    %1238 = vmatprep.subr.mxu0 0.0
    %1239 = vmatpush1.msra.mxu0 0.0
    %1240 = vmatprep.subr.mxu0 0.0
    %1241 = vmatpush1.msra.mxu0 0.0
    %1242 = vmatprep.subr.mxu0 0.0
    %1243 = vmatpush1.msra.mxu0 0.0
    %1244 = vmatprep.subr.mxu0 0.0
    %1245 = vmatpush1.msra.mxu0 0.0
    %1246 = vmatprep.subr.mxu0 0.0
    %1247 = vmatpush1.msra.mxu0 0.0
    %1248 = vmatprep.subr.mxu0 0.0
    %1249 = vmatpush1.msra.mxu0 0.0
    %1250 = vmatprep.subr.mxu0 0.0
    %1251 = vmatpush1.msra.mxu0 0.0
    %1252 = vmatprep.subr.mxu0 0.0
    %1253 = vmatpush1.msra.mxu0 0.0
    %1254 = vmatprep.subr.mxu0 0.0
    %1255 = vmatpush1.msra.mxu0 0.0
    %1256 = vmatprep.subr.mxu0 0.0
    %1257 = vmatpush1.msra.mxu0 0.0
    %1258 = vmatprep.mubr.f32.mxu0 0.0
    %1259 = vmatmul.mubr.f32.gmra.mrb[0].mxu0 %v1192
    %v1260 = vpop.f32.mrb[0].mxu0
    %v1261 = vadd.f32 %v263, %v1260
    %v1262 = vpop.f32.mrb[0].mxu0
    %1263 = vdwg.mxu0
    %v1264 = vmax.f32 %v1261, 0.0
    %v1266 = vsel %vm346, %v1264, 0
    %1268 = vmatprep.subr.mxu0 0.0
    %1269 = vmatpush1.msra.mxu0 %v65
    %1270 = vmatprep.subr.mxu0 0.0
    %1271 = vmatpush1.msra.mxu0 %v66
    %1272 = vmatprep.subr.mxu0 0.0
    %1273 = vmatpush1.msra.mxu0 %v67
    %1274 = vmatprep.subr.mxu0 0.0
    %1275 = vmatpush1.msra.mxu0 %v68
    %1276 = vmatprep.subr.mxu0 0.0
    %1277 = vmatpush1.msra.mxu0 %v69
    %1278 = vmatprep.subr.mxu0 0.0
    %1279 = vmatpush1.msra.mxu0 %v70
    %1280 = vmatprep.subr.mxu0 0.0
    %1281 = vmatpush1.msra.mxu0 %v71
    %1282 = vmatprep.subr.mxu0 0.0
    %1283 = vmatpush1.msra.mxu0 %v72
    %1284 = vmatprep.subr.mxu0 0.0
    %1285 = vmatpush1.msra.mxu0 0.0
    %1286 = vmatprep.subr.mxu0 0.0
    %1287 = vmatpush1.msra.mxu0 0.0
    %1288 = vmatprep.subr.mxu0 0.0
    %1289 = vmatpush1.msra.mxu0 0.0
    %1290 = vmatprep.subr.mxu0 0.0
    %1291 = vmatpush1.msra.mxu0 0.0
    %1292 = vmatprep.subr.mxu0 0.0
    %1293 = vmatpush1.msra.mxu0 0.0
    %1294 = vmatprep.subr.mxu0 0.0
    %1295 = vmatpush1.msra.mxu0 0.0
    %1296 = vmatprep.subr.mxu0 0.0
    %1297 = vmatpush1.msra.mxu0 0.0
    %1298 = vmatprep.subr.mxu0 0.0
    %1299 = vmatpush1.msra.mxu0 0.0
    %1300 = vmatprep.subr.mxu0 0.0
    %1301 = vmatpush1.msra.mxu0 0.0
    %1302 = vmatprep.subr.mxu0 0.0
    %1303 = vmatpush1.msra.mxu0 0.0
    %1304 = vmatprep.subr.mxu0 0.0
    %1305 = vmatpush1.msra.mxu0 0.0
    %1306 = vmatprep.subr.mxu0 0.0
    %1307 = vmatpush1.msra.mxu0 0.0
    %1308 = vmatprep.subr.mxu0 0.0
    %1309 = vmatpush1.msra.mxu0 0.0
    %1310 = vmatprep.subr.mxu0 0.0
    %1311 = vmatpush1.msra.mxu0 0.0
    %1312 = vmatprep.subr.mxu0 0.0
    %1313 = vmatpush1.msra.mxu0 0.0
    %1314 = vmatprep.subr.mxu0 0.0
    %1315 = vmatpush1.msra.mxu0 0.0
    %1316 = vmatprep.subr.mxu0 0.0
    %1317 = vmatpush1.msra.mxu0 0.0
    %1318 = vmatprep.subr.mxu0 0.0
    %1319 = vmatpush1.msra.mxu0 0.0
    %1320 = vmatprep.subr.mxu0 0.0
    %1321 = vmatpush1.msra.mxu0 0.0
    %1322 = vmatprep.subr.mxu0 0.0
    %1323 = vmatpush1.msra.mxu0 0.0
    %1324 = vmatprep.subr.mxu0 0.0
    %1325 = vmatpush1.msra.mxu0 0.0
    %1326 = vmatprep.subr.mxu0 0.0
    %1327 = vmatpush1.msra.mxu0 0.0
    %1328 = vmatprep.subr.mxu0 0.0
    %1329 = vmatpush1.msra.mxu0 0.0
    %1330 = vmatprep.subr.mxu0 0.0
    %1331 = vmatpush1.msra.mxu0 0.0
    %1332 = vmatprep.mubr.f32.mxu0 0.0
    %1333 = vmatmul.mubr.f32.gmra.mrb[0].mxu0 %v1266
    %v1334 = vpop.f32.mrb[0].mxu0
    %v1335 = vadd.f32 %v344, %v1334
    %v1336 = vpop.f32.mrb[0].mxu0
    %1337 = vdwg.mxu0
    %v1338 = vsel %vm420, %v1335, -inf
    %1339 = vmax.xlane.f32.xlu0 %v1338
    %v1340 = vpop.xlane.xlu0 %1339
    %v1341 = vsub.f32 %v1335, %v1340
    %v1342 = vmul.f32 %v1341, 1.442695
    %v1343 = vpow.pop %v1342
    %v1344 = vsel %vm420, %v1343, 0.0
    %1345 = vadd.xlane.f32.xlu0 %v1344
    %v1346 = vpop.xlane.xlu0 %1345
    %v1347 = vrcp.pop %v1346
    %v1348 = vmul.f32 %v1343, %v1347
    %v1349 = vxor.u32 %v1190, 2147483648
    %v1350 = vmul.f32 %v1349, 1.442695
    %v1351 = vpow.pop %v1350
    %v1352 = vadd.f32 %v1351, 1.0
    %v1353 = vrcp.pop %v1352
    %v1354 = vmul.f32 1.0, %v1353
    %1356 = vset.pattern.permute.xlu0 15
    %1357 = vperm.xlu0 %1356, %v1354
    %v1358 = vpop.permute.xlu0 %1357
    %v1360 = vmul.f32 %v1348, %v1358
    %v1361 = vsub.f32 1.0, %v1354
    %1363 = vset.pattern.permute.xlu0 15
    %1364 = vperm.xlu0 %1363, %v1361
    %v1365 = vpop.permute.xlu0 %1364
    %v1367 = vmul.f32 %v910, %v1365
    %v1368 = vadd.f32 %v1360, %v1367
    %1370 = vset.pattern.permute.xlu0 0
    %1371 = vperm.xlu0 %1370, %v1368
    %v1372 = vpop.permute.xlu0 %1371
    %v1374 = vmul.f32 %v1372, %v1036
    %v1375 = vadd.f32 %v1374, 0.0
    %1376 = vset.pattern.permute.xlu0 1
    %1377 = vperm.xlu0 %1376, %v1368
    %v1378 = vpop.permute.xlu0 %1377
    %v1380 = vmul.f32 %v1378, %v1036
    %1382 = vrot.lane.b32.xlu0 %v1380, 120
    %v1383 = vpop.permute.xlu0 %1382
    %v1385 = vadd.f32 %v1375, %v1383
    %1386 = vset.pattern.permute.xlu0 2
    %1387 = vperm.xlu0 %1386, %v1368
    %v1388 = vpop.permute.xlu0 %1387
    %v1390 = vmul.f32 %v1388, %v1036
    %1392 = vrot.lane.b32.xlu0 %v1390, 112
    %v1393 = vpop.permute.xlu0 %1392
    %v1395 = vadd.f32 %v1385, %v1393
    %1396 = vset.pattern.permute.xlu0 3
    %1397 = vperm.xlu0 %1396, %v1368
    %v1398 = vpop.permute.xlu0 %1397
    %v1400 = vmul.f32 %v1398, %v1036
    %1402 = vrot.lane.b32.xlu0 %v1400, 104
    %v1403 = vpop.permute.xlu0 %1402
    %v1405 = vadd.f32 %v1395, %v1403
    %v1406 = vmax.f32 %v1405, 0.0
    %v1407 = vsub.f32 %v1405, 1.0
    %v1408 = vmax.f32 %v1407, 0.0
    %v1409 = vsub.f32 %v1406, %v1408
    %1410 = vrot.lane.b32.xlu0 %v54, 5
    %v1411 = vpop.permute.xlu0 %1410
    %v1413 = vsub.f32 %v1409, %v1411
    %v1414 = vmul.f32 %v1413, %v1413
    %v1415 = vsub.f32 1.0, %v1414
    %1416 = vset.pattern.permute.xlu0 3
    %1417 = vperm.xlu0 %1416, %v53
    %v1418 = vpop.permute.xlu0 %1417
    %v1420 = vmul.f32 %v1418, %v86
    %v1422 = vsel %vm89, %v1405, 0
    %1424 = vmatprep.subr.mxu0 0.0
    %1425 = vmatpush1.msra.mxu0 %v55
    %1426 = vmatprep.subr.mxu0 0.0
    %1427 = vmatpush1.msra.mxu0 0.0
    %1428 = vmatprep.subr.mxu0 0.0
    %1429 = vmatpush1.msra.mxu0 0.0
    %1430 = vmatprep.subr.mxu0 0.0
    %1431 = vmatpush1.msra.mxu0 0.0
    %1432 = vmatprep.subr.mxu0 0.0
    %1433 = vmatpush1.msra.mxu0 0.0
    %1434 = vmatprep.subr.mxu0 0.0
    %1435 = vmatpush1.msra.mxu0 0.0
    %1436 = vmatprep.subr.mxu0 0.0
    %1437 = vmatpush1.msra.mxu0 0.0
    %1438 = vmatprep.subr.mxu0 0.0
    %1439 = vmatpush1.msra.mxu0 0.0
    %1440 = vmatprep.subr.mxu0 0.0
    %1441 = vmatpush1.msra.mxu0 0.0
    %1442 = vmatprep.subr.mxu0 0.0
    %1443 = vmatpush1.msra.mxu0 0.0
    %1444 = vmatprep.subr.mxu0 0.0
    %1445 = vmatpush1.msra.mxu0 0.0
    %1446 = vmatprep.subr.mxu0 0.0
    %1447 = vmatpush1.msra.mxu0 0.0
    %1448 = vmatprep.subr.mxu0 0.0
    %1449 = vmatpush1.msra.mxu0 0.0
    %1450 = vmatprep.subr.mxu0 0.0
    %1451 = vmatpush1.msra.mxu0 0.0
    %1452 = vmatprep.subr.mxu0 0.0
    %1453 = vmatpush1.msra.mxu0 0.0
    %1454 = vmatprep.subr.mxu0 0.0
    %1455 = vmatpush1.msra.mxu0 0.0
    %1456 = vmatprep.subr.mxu0 0.0
    %1457 = vmatpush1.msra.mxu0 0.0
    %1458 = vmatprep.subr.mxu0 0.0
    %1459 = vmatpush1.msra.mxu0 0.0
    %1460 = vmatprep.subr.mxu0 0.0
    %1461 = vmatpush1.msra.mxu0 0.0
    %1462 = vmatprep.subr.mxu0 0.0
    %1463 = vmatpush1.msra.mxu0 0.0
    %1464 = vmatprep.subr.mxu0 0.0
    %1465 = vmatpush1.msra.mxu0 0.0
    %1466 = vmatprep.subr.mxu0 0.0
    %1467 = vmatpush1.msra.mxu0 0.0
    %1468 = vmatprep.subr.mxu0 0.0
    %1469 = vmatpush1.msra.mxu0 0.0
    %1470 = vmatprep.subr.mxu0 0.0
    %1471 = vmatpush1.msra.mxu0 0.0
    %1472 = vmatprep.subr.mxu0 0.0
    %1473 = vmatpush1.msra.mxu0 0.0
    %1474 = vmatprep.subr.mxu0 0.0
    %1475 = vmatpush1.msra.mxu0 0.0
    %1476 = vmatprep.subr.mxu0 0.0
    %1477 = vmatpush1.msra.mxu0 0.0
    %1478 = vmatprep.subr.mxu0 0.0
    %1479 = vmatpush1.msra.mxu0 0.0
    %1480 = vmatprep.subr.mxu0 0.0
    %1481 = vmatpush1.msra.mxu0 0.0
    %1482 = vmatprep.subr.mxu0 0.0
    %1483 = vmatpush1.msra.mxu0 0.0
    %1484 = vmatprep.subr.mxu0 0.0
    %1485 = vmatpush1.msra.mxu0 0.0
    %1486 = vmatprep.subr.mxu0 0.0
    %1487 = vmatpush1.msra.mxu0 0.0
    %1488 = vmatprep.mubr.f32.mxu0 0.0
    %1489 = vmatmul.mubr.f32.gmra.mrb[0].mxu0 %v1422
    %v1490 = vpop.f32.mrb[0].mxu0
    %v1491 = vadd.f32 %v1420, %v1490
    %v1492 = vpop.f32.mrb[0].mxu0
    %1493 = vdwg.mxu0
    %v1494 = vtanh.pop %v1491
    %1496 = vset.pattern.permute.xlu0 7
    %1497 = vperm.xlu0 %1496, %v1413
    %v1498 = vpop.permute.xlu0 %1497
    %v1500 = vmul.f32 %v1498, %v173
    %1502 = vrot.lane.b32.xlu0 %v1494, 96
    %v1503 = vpop.permute.xlu0 %1502
    %v1504 = vsel %vm89, %v1503, 0
    %1506 = vmatprep.subr.mxu0 0.0
    %1507 = vmatpush1.msra.mxu0 %v57
    %1508 = vmatprep.subr.mxu0 0.0
    %1509 = vmatpush1.msra.mxu0 0.0
    %1510 = vmatprep.subr.mxu0 0.0
    %1511 = vmatpush1.msra.mxu0 0.0
    %1512 = vmatprep.subr.mxu0 0.0
    %1513 = vmatpush1.msra.mxu0 0.0
    %1514 = vmatprep.subr.mxu0 0.0
    %1515 = vmatpush1.msra.mxu0 0.0
    %1516 = vmatprep.subr.mxu0 0.0
    %1517 = vmatpush1.msra.mxu0 0.0
    %1518 = vmatprep.subr.mxu0 0.0
    %1519 = vmatpush1.msra.mxu0 0.0
    %1520 = vmatprep.subr.mxu0 0.0
    %1521 = vmatpush1.msra.mxu0 0.0
    %1522 = vmatprep.subr.mxu0 0.0
    %1523 = vmatpush1.msra.mxu0 0.0
    %1524 = vmatprep.subr.mxu0 0.0
    %1525 = vmatpush1.msra.mxu0 0.0
    %1526 = vmatprep.subr.mxu0 0.0
    %1527 = vmatpush1.msra.mxu0 0.0
    %1528 = vmatprep.subr.mxu0 0.0
    %1529 = vmatpush1.msra.mxu0 0.0
    %1530 = vmatprep.subr.mxu0 0.0
    %1531 = vmatpush1.msra.mxu0 0.0
    %1532 = vmatprep.subr.mxu0 0.0
    %1533 = vmatpush1.msra.mxu0 0.0
    %1534 = vmatprep.subr.mxu0 0.0
    %1535 = vmatpush1.msra.mxu0 0.0
    %1536 = vmatprep.subr.mxu0 0.0
    %1537 = vmatpush1.msra.mxu0 0.0
    %1538 = vmatprep.subr.mxu0 0.0
    %1539 = vmatpush1.msra.mxu0 0.0
    %1540 = vmatprep.subr.mxu0 0.0
    %1541 = vmatpush1.msra.mxu0 0.0
    %1542 = vmatprep.subr.mxu0 0.0
    %1543 = vmatpush1.msra.mxu0 0.0
    %1544 = vmatprep.subr.mxu0 0.0
    %1545 = vmatpush1.msra.mxu0 0.0
    %1546 = vmatprep.subr.mxu0 0.0
    %1547 = vmatpush1.msra.mxu0 0.0
    %1548 = vmatprep.subr.mxu0 0.0
    %1549 = vmatpush1.msra.mxu0 0.0
    %1550 = vmatprep.subr.mxu0 0.0
    %1551 = vmatpush1.msra.mxu0 0.0
    %1552 = vmatprep.subr.mxu0 0.0
    %1553 = vmatpush1.msra.mxu0 0.0
    %1554 = vmatprep.subr.mxu0 0.0
    %1555 = vmatpush1.msra.mxu0 0.0
    %1556 = vmatprep.subr.mxu0 0.0
    %1557 = vmatpush1.msra.mxu0 0.0
    %1558 = vmatprep.subr.mxu0 0.0
    %1559 = vmatpush1.msra.mxu0 0.0
    %1560 = vmatprep.subr.mxu0 0.0
    %1561 = vmatpush1.msra.mxu0 0.0
    %1562 = vmatprep.subr.mxu0 0.0
    %1563 = vmatpush1.msra.mxu0 0.0
    %1564 = vmatprep.subr.mxu0 0.0
    %1565 = vmatpush1.msra.mxu0 0.0
    %1566 = vmatprep.subr.mxu0 0.0
    %1567 = vmatpush1.msra.mxu0 0.0
    %1568 = vmatprep.subr.mxu0 0.0
    %1569 = vmatpush1.msra.mxu0 0.0
    %1570 = vmatprep.mubr.f32.mxu0 0.0
    %1571 = vmatmul.mubr.f32.gmra.mrb[0].mxu0 %v1504
    %v1572 = vpop.f32.mrb[0].mxu0
    %v1573 = vadd.f32 %v1500, %v1572
    %v1574 = vpop.f32.mrb[0].mxu0
    %1575 = vdwg.mxu0
    %v1576 = vadd.f32 %v1573, %v255
    %1577 = vmatprep.subr.mxu0 0.0
    %1578 = vmatpush1.msra.mxu0 %v59
    %1579 = vmatprep.subr.mxu0 0.0
    %1580 = vmatpush1.msra.mxu0 %v60
    %1581 = vmatprep.subr.mxu0 0.0
    %1582 = vmatpush1.msra.mxu0 0.0
    %1583 = vmatprep.subr.mxu0 0.0
    %1584 = vmatpush1.msra.mxu0 0.0
    %1585 = vmatprep.subr.mxu0 0.0
    %1586 = vmatpush1.msra.mxu0 0.0
    %1587 = vmatprep.subr.mxu0 0.0
    %1588 = vmatpush1.msra.mxu0 0.0
    %1589 = vmatprep.subr.mxu0 0.0
    %1590 = vmatpush1.msra.mxu0 0.0
    %1591 = vmatprep.subr.mxu0 0.0
    %1592 = vmatpush1.msra.mxu0 0.0
    %1593 = vmatprep.subr.mxu0 0.0
    %1594 = vmatpush1.msra.mxu0 0.0
    %1595 = vmatprep.subr.mxu0 0.0
    %1596 = vmatpush1.msra.mxu0 0.0
    %1597 = vmatprep.subr.mxu0 0.0
    %1598 = vmatpush1.msra.mxu0 0.0
    %1599 = vmatprep.subr.mxu0 0.0
    %1600 = vmatpush1.msra.mxu0 0.0
    %1601 = vmatprep.subr.mxu0 0.0
    %1602 = vmatpush1.msra.mxu0 0.0
    %1603 = vmatprep.subr.mxu0 0.0
    %1604 = vmatpush1.msra.mxu0 0.0
    %1605 = vmatprep.subr.mxu0 0.0
    %1606 = vmatpush1.msra.mxu0 0.0
    %1607 = vmatprep.subr.mxu0 0.0
    %1608 = vmatpush1.msra.mxu0 0.0
    %1609 = vmatprep.subr.mxu0 0.0
    %1610 = vmatpush1.msra.mxu0 0.0
    %1611 = vmatprep.subr.mxu0 0.0
    %1612 = vmatpush1.msra.mxu0 0.0
    %1613 = vmatprep.subr.mxu0 0.0
    %1614 = vmatpush1.msra.mxu0 0.0
    %1615 = vmatprep.subr.mxu0 0.0
    %1616 = vmatpush1.msra.mxu0 0.0
    %1617 = vmatprep.subr.mxu0 0.0
    %1618 = vmatpush1.msra.mxu0 0.0
    %1619 = vmatprep.subr.mxu0 0.0
    %1620 = vmatpush1.msra.mxu0 0.0
    %1621 = vmatprep.subr.mxu0 0.0
    %1622 = vmatpush1.msra.mxu0 0.0
    %1623 = vmatprep.subr.mxu0 0.0
    %1624 = vmatpush1.msra.mxu0 0.0
    %1625 = vmatprep.subr.mxu0 0.0
    %1626 = vmatpush1.msra.mxu0 0.0
    %1627 = vmatprep.subr.mxu0 0.0
    %1628 = vmatpush1.msra.mxu0 0.0
    %1629 = vmatprep.subr.mxu0 0.0
    %1630 = vmatpush1.msra.mxu0 0.0
    %1631 = vmatprep.subr.mxu0 0.0
    %1632 = vmatpush1.msra.mxu0 0.0
    %1633 = vmatprep.subr.mxu0 0.0
    %1634 = vmatpush1.msra.mxu0 0.0
    %1635 = vmatprep.subr.mxu0 0.0
    %1636 = vmatpush1.msra.mxu0 0.0
    %1637 = vmatprep.subr.mxu0 0.0
    %1638 = vmatpush1.msra.mxu0 0.0
    %1639 = vmatprep.subr.mxu0 0.0
    %1640 = vmatpush1.msra.mxu0 0.0
    %1641 = vmatprep.mubr.f32.mxu0 0.0
    %1642 = vmatmul.mubr.f32.gmra.mrb[0].mxu0 %v1192
    %v1643 = vpop.f32.mrb[0].mxu0
    %v1644 = vadd.f32 0.0, %v1643
    %v1645 = vpop.f32.mrb[0].mxu0
    %1646 = vdwg.mxu0
    %v1647 = vadd.f32 %v1576, %v1644
    %v1648 = vtanh.pop %v1647
    %v1650 = vsel %vm265, %v1648, 0
    %1652 = vmatprep.subr.mxu0 0.0
    %1653 = vmatpush1.msra.mxu0 %v62
    %1654 = vmatprep.subr.mxu0 0.0
    %1655 = vmatpush1.msra.mxu0 %v63
    %1656 = vmatprep.subr.mxu0 0.0
    %1657 = vmatpush1.msra.mxu0 0.0
    %1658 = vmatprep.subr.mxu0 0.0
    %1659 = vmatpush1.msra.mxu0 0.0
    %1660 = vmatprep.subr.mxu0 0.0
    %1661 = vmatpush1.msra.mxu0 0.0
    %1662 = vmatprep.subr.mxu0 0.0
    %1663 = vmatpush1.msra.mxu0 0.0
    %1664 = vmatprep.subr.mxu0 0.0
    %1665 = vmatpush1.msra.mxu0 0.0
    %1666 = vmatprep.subr.mxu0 0.0
    %1667 = vmatpush1.msra.mxu0 0.0
    %1668 = vmatprep.subr.mxu0 0.0
    %1669 = vmatpush1.msra.mxu0 0.0
    %1670 = vmatprep.subr.mxu0 0.0
    %1671 = vmatpush1.msra.mxu0 0.0
    %1672 = vmatprep.subr.mxu0 0.0
    %1673 = vmatpush1.msra.mxu0 0.0
    %1674 = vmatprep.subr.mxu0 0.0
    %1675 = vmatpush1.msra.mxu0 0.0
    %1676 = vmatprep.subr.mxu0 0.0
    %1677 = vmatpush1.msra.mxu0 0.0
    %1678 = vmatprep.subr.mxu0 0.0
    %1679 = vmatpush1.msra.mxu0 0.0
    %1680 = vmatprep.subr.mxu0 0.0
    %1681 = vmatpush1.msra.mxu0 0.0
    %1682 = vmatprep.subr.mxu0 0.0
    %1683 = vmatpush1.msra.mxu0 0.0
    %1684 = vmatprep.subr.mxu0 0.0
    %1685 = vmatpush1.msra.mxu0 0.0
    %1686 = vmatprep.subr.mxu0 0.0
    %1687 = vmatpush1.msra.mxu0 0.0
    %1688 = vmatprep.subr.mxu0 0.0
    %1689 = vmatpush1.msra.mxu0 0.0
    %1690 = vmatprep.subr.mxu0 0.0
    %1691 = vmatpush1.msra.mxu0 0.0
    %1692 = vmatprep.subr.mxu0 0.0
    %1693 = vmatpush1.msra.mxu0 0.0
    %1694 = vmatprep.subr.mxu0 0.0
    %1695 = vmatpush1.msra.mxu0 0.0
    %1696 = vmatprep.subr.mxu0 0.0
    %1697 = vmatpush1.msra.mxu0 0.0
    %1698 = vmatprep.subr.mxu0 0.0
    %1699 = vmatpush1.msra.mxu0 0.0
    %1700 = vmatprep.subr.mxu0 0.0
    %1701 = vmatpush1.msra.mxu0 0.0
    %1702 = vmatprep.subr.mxu0 0.0
    %1703 = vmatpush1.msra.mxu0 0.0
    %1704 = vmatprep.subr.mxu0 0.0
    %1705 = vmatpush1.msra.mxu0 0.0
    %1706 = vmatprep.subr.mxu0 0.0
    %1707 = vmatpush1.msra.mxu0 0.0
    %1708 = vmatprep.subr.mxu0 0.0
    %1709 = vmatpush1.msra.mxu0 0.0
    %1710 = vmatprep.subr.mxu0 0.0
    %1711 = vmatpush1.msra.mxu0 0.0
    %1712 = vmatprep.subr.mxu0 0.0
    %1713 = vmatpush1.msra.mxu0 0.0
    %1714 = vmatprep.subr.mxu0 0.0
    %1715 = vmatpush1.msra.mxu0 0.0
    %1716 = vmatprep.mubr.f32.mxu0 0.0
    %1717 = vmatmul.mubr.f32.gmra.mrb[0].mxu0 %v1650
    %v1718 = vpop.f32.mrb[0].mxu0
    %v1719 = vadd.f32 %v263, %v1718
    %v1720 = vpop.f32.mrb[0].mxu0
    %1721 = vdwg.mxu0
    %v1722 = vmax.f32 %v1719, 0.0
    %v1724 = vsel %vm346, %v1722, 0
    %1726 = vmatprep.subr.mxu0 0.0
    %1727 = vmatpush1.msra.mxu0 %v65
    %1728 = vmatprep.subr.mxu0 0.0
    %1729 = vmatpush1.msra.mxu0 %v66
    %1730 = vmatprep.subr.mxu0 0.0
    %1731 = vmatpush1.msra.mxu0 %v67
    %1732 = vmatprep.subr.mxu0 0.0
    %1733 = vmatpush1.msra.mxu0 %v68
    %1734 = vmatprep.subr.mxu0 0.0
    %1735 = vmatpush1.msra.mxu0 %v69
    %1736 = vmatprep.subr.mxu0 0.0
    %1737 = vmatpush1.msra.mxu0 %v70
    %1738 = vmatprep.subr.mxu0 0.0
    %1739 = vmatpush1.msra.mxu0 %v71
    %1740 = vmatprep.subr.mxu0 0.0
    %1741 = vmatpush1.msra.mxu0 %v72
    %1742 = vmatprep.subr.mxu0 0.0
    %1743 = vmatpush1.msra.mxu0 0.0
    %1744 = vmatprep.subr.mxu0 0.0
    %1745 = vmatpush1.msra.mxu0 0.0
    %1746 = vmatprep.subr.mxu0 0.0
    %1747 = vmatpush1.msra.mxu0 0.0
    %1748 = vmatprep.subr.mxu0 0.0
    %1749 = vmatpush1.msra.mxu0 0.0
    %1750 = vmatprep.subr.mxu0 0.0
    %1751 = vmatpush1.msra.mxu0 0.0
    %1752 = vmatprep.subr.mxu0 0.0
    %1753 = vmatpush1.msra.mxu0 0.0
    %1754 = vmatprep.subr.mxu0 0.0
    %1755 = vmatpush1.msra.mxu0 0.0
    %1756 = vmatprep.subr.mxu0 0.0
    %1757 = vmatpush1.msra.mxu0 0.0
    %1758 = vmatprep.subr.mxu0 0.0
    %1759 = vmatpush1.msra.mxu0 0.0
    %1760 = vmatprep.subr.mxu0 0.0
    %1761 = vmatpush1.msra.mxu0 0.0
    %1762 = vmatprep.subr.mxu0 0.0
    %1763 = vmatpush1.msra.mxu0 0.0
    %1764 = vmatprep.subr.mxu0 0.0
    %1765 = vmatpush1.msra.mxu0 0.0
    %1766 = vmatprep.subr.mxu0 0.0
    %1767 = vmatpush1.msra.mxu0 0.0
    %1768 = vmatprep.subr.mxu0 0.0
    %1769 = vmatpush1.msra.mxu0 0.0
    %1770 = vmatprep.subr.mxu0 0.0
    %1771 = vmatpush1.msra.mxu0 0.0
    %1772 = vmatprep.subr.mxu0 0.0
    %1773 = vmatpush1.msra.mxu0 0.0
    %1774 = vmatprep.subr.mxu0 0.0
    %1775 = vmatpush1.msra.mxu0 0.0
    %1776 = vmatprep.subr.mxu0 0.0
    %1777 = vmatpush1.msra.mxu0 0.0
    %1778 = vmatprep.subr.mxu0 0.0
    %1779 = vmatpush1.msra.mxu0 0.0
    %1780 = vmatprep.subr.mxu0 0.0
    %1781 = vmatpush1.msra.mxu0 0.0
    %1782 = vmatprep.subr.mxu0 0.0
    %1783 = vmatpush1.msra.mxu0 0.0
    %1784 = vmatprep.subr.mxu0 0.0
    %1785 = vmatpush1.msra.mxu0 0.0
    %1786 = vmatprep.subr.mxu0 0.0
    %1787 = vmatpush1.msra.mxu0 0.0
    %1788 = vmatprep.subr.mxu0 0.0
    %1789 = vmatpush1.msra.mxu0 0.0
    %1790 = vmatprep.mubr.f32.mxu0 0.0
    %1791 = vmatmul.mubr.f32.gmra.mrb[0].mxu0 %v1724
    %v1792 = vpop.f32.mrb[0].mxu0
    %v1793 = vadd.f32 %v344, %v1792
    %v1794 = vpop.f32.mrb[0].mxu0
    %1795 = vdwg.mxu0
    %v1796 = vsel %vm420, %v1793, -inf
    %1797 = vmax.xlane.f32.xlu0 %v1796
    %v1798 = vpop.xlane.xlu0 %1797
    %v1799 = vsub.f32 %v1793, %v1798
    %v1800 = vmul.f32 %v1799, 1.442695
    %v1801 = vpow.pop %v1800
    %v1802 = vsel %vm420, %v1801, 0.0
    %1803 = vadd.xlane.f32.xlu0 %v1802
    %v1804 = vpop.xlane.xlu0 %1803
    %v1805 = vrcp.pop %v1804
    %v1806 = vmul.f32 %v1801, %v1805
    %v1807 = vxor.u32 %v1648, 2147483648
    %v1808 = vmul.f32 %v1807, 1.442695
    %v1809 = vpow.pop %v1808
    %v1810 = vadd.f32 %v1809, 1.0
    %v1811 = vrcp.pop %v1810
    %v1812 = vmul.f32 1.0, %v1811
    %1814 = vset.pattern.permute.xlu0 15
    %1815 = vperm.xlu0 %1814, %v1812
    %v1816 = vpop.permute.xlu0 %1815
    %v1818 = vmul.f32 %v1806, %v1816
    %v1819 = vsub.f32 1.0, %v1812
    %1821 = vset.pattern.permute.xlu0 15
    %1822 = vperm.xlu0 %1821, %v1819
    %v1823 = vpop.permute.xlu0 %1822
    %v1825 = vmul.f32 %v1368, %v1823
    %v1826 = vadd.f32 %v1818, %v1825
    %1828 = vset.pattern.permute.xlu0 0
    %1829 = vperm.xlu0 %1828, %v1826
    %v1830 = vpop.permute.xlu0 %1829
    %v1832 = vmul.f32 %v1830, %v1494
    %v1833 = vadd.f32 %v1832, 0.0
    %1834 = vset.pattern.permute.xlu0 1
    %1835 = vperm.xlu0 %1834, %v1826
    %v1836 = vpop.permute.xlu0 %1835
    %v1838 = vmul.f32 %v1836, %v1494
    %1840 = vrot.lane.b32.xlu0 %v1838, 120
    %v1841 = vpop.permute.xlu0 %1840
    %v1843 = vadd.f32 %v1833, %v1841
    %1844 = vset.pattern.permute.xlu0 2
    %1845 = vperm.xlu0 %1844, %v1826
    %v1846 = vpop.permute.xlu0 %1845
    %v1848 = vmul.f32 %v1846, %v1494
    %1850 = vrot.lane.b32.xlu0 %v1848, 112
    %v1851 = vpop.permute.xlu0 %1850
    %v1853 = vadd.f32 %v1843, %v1851
    %1854 = vset.pattern.permute.xlu0 3
    %1855 = vperm.xlu0 %1854, %v1826
    %v1856 = vpop.permute.xlu0 %1855
    %v1858 = vmul.f32 %v1856, %v1494
    %1860 = vrot.lane.b32.xlu0 %v1858, 104
    %v1861 = vpop.permute.xlu0 %1860
    %v1863 = vadd.f32 %v1853, %v1861
    %v1864 = vmax.f32 %v1863, 0.0
    %v1865 = vsub.f32 %v1863, 1.0
    %v1866 = vmax.f32 %v1865, 0.0
    %v1867 = vsub.f32 %v1864, %v1866
    %1868 = vrot.lane.b32.xlu0 %v54, 4
    %v1869 = vpop.permute.xlu0 %1868
    %v1871 = vsub.f32 %v1867, %v1869
    %v1872 = vmul.f32 %v1871, %v1871
    %v1873 = vsub.f32 1.0, %v1872
    %1874 = vset.pattern.permute.xlu0 4
    %1875 = vperm.xlu0 %1874, %v53
    %v1876 = vpop.permute.xlu0 %1875
    %v1878 = vmul.f32 %v1876, %v86
    %v1880 = vsel %vm89, %v1863, 0
    %1882 = vmatprep.subr.mxu0 0.0
    %1883 = vmatpush1.msra.mxu0 %v55
    %1884 = vmatprep.subr.mxu0 0.0
    %1885 = vmatpush1.msra.mxu0 0.0
    %1886 = vmatprep.subr.mxu0 0.0
    %1887 = vmatpush1.msra.mxu0 0.0
    %1888 = vmatprep.subr.mxu0 0.0
    %1889 = vmatpush1.msra.mxu0 0.0
    %1890 = vmatprep.subr.mxu0 0.0
    %1891 = vmatpush1.msra.mxu0 0.0
    %1892 = vmatprep.subr.mxu0 0.0
    %1893 = vmatpush1.msra.mxu0 0.0
    %1894 = vmatprep.subr.mxu0 0.0
    %1895 = vmatpush1.msra.mxu0 0.0
    %1896 = vmatprep.subr.mxu0 0.0
    %1897 = vmatpush1.msra.mxu0 0.0
    %1898 = vmatprep.subr.mxu0 0.0
    %1899 = vmatpush1.msra.mxu0 0.0
    %1900 = vmatprep.subr.mxu0 0.0
    %1901 = vmatpush1.msra.mxu0 0.0
    %1902 = vmatprep.subr.mxu0 0.0
    %1903 = vmatpush1.msra.mxu0 0.0
    %1904 = vmatprep.subr.mxu0 0.0
    %1905 = vmatpush1.msra.mxu0 0.0
    %1906 = vmatprep.subr.mxu0 0.0
    %1907 = vmatpush1.msra.mxu0 0.0
    %1908 = vmatprep.subr.mxu0 0.0
    %1909 = vmatpush1.msra.mxu0 0.0
    %1910 = vmatprep.subr.mxu0 0.0
    %1911 = vmatpush1.msra.mxu0 0.0
    %1912 = vmatprep.subr.mxu0 0.0
    %1913 = vmatpush1.msra.mxu0 0.0
    %1914 = vmatprep.subr.mxu0 0.0
    %1915 = vmatpush1.msra.mxu0 0.0
    %1916 = vmatprep.subr.mxu0 0.0
    %1917 = vmatpush1.msra.mxu0 0.0
    %1918 = vmatprep.subr.mxu0 0.0
    %1919 = vmatpush1.msra.mxu0 0.0
    %1920 = vmatprep.subr.mxu0 0.0
    %1921 = vmatpush1.msra.mxu0 0.0
    %1922 = vmatprep.subr.mxu0 0.0
    %1923 = vmatpush1.msra.mxu0 0.0
    %1924 = vmatprep.subr.mxu0 0.0
    %1925 = vmatpush1.msra.mxu0 0.0
    %1926 = vmatprep.subr.mxu0 0.0
    %1927 = vmatpush1.msra.mxu0 0.0
    %1928 = vmatprep.subr.mxu0 0.0
    %1929 = vmatpush1.msra.mxu0 0.0
    %1930 = vmatprep.subr.mxu0 0.0
    %1931 = vmatpush1.msra.mxu0 0.0
    %1932 = vmatprep.subr.mxu0 0.0
    %1933 = vmatpush1.msra.mxu0 0.0
    %1934 = vmatprep.subr.mxu0 0.0
    %1935 = vmatpush1.msra.mxu0 0.0
    %1936 = vmatprep.subr.mxu0 0.0
    %1937 = vmatpush1.msra.mxu0 0.0
    %1938 = vmatprep.subr.mxu0 0.0
    %1939 = vmatpush1.msra.mxu0 0.0
    %1940 = vmatprep.subr.mxu0 0.0
    %1941 = vmatpush1.msra.mxu0 0.0
    %1942 = vmatprep.subr.mxu0 0.0
    %1943 = vmatpush1.msra.mxu0 0.0
    %1944 = vmatprep.subr.mxu0 0.0
    %1945 = vmatpush1.msra.mxu0 0.0
    %1946 = vmatprep.mubr.f32.mxu0 0.0
    %1947 = vmatmul.mubr.f32.gmra.mrb[0].mxu0 %v1880
    %v1948 = vpop.f32.mrb[0].mxu0
    %v1949 = vadd.f32 %v1878, %v1948
    %v1950 = vpop.f32.mrb[0].mxu0
    %1951 = vdwg.mxu0
    %v1952 = vtanh.pop %v1949
    %1954 = vset.pattern.permute.xlu0 7
    %1955 = vperm.xlu0 %1954, %v1871
    %v1956 = vpop.permute.xlu0 %1955
    %v1958 = vmul.f32 %v1956, %v173
    %1960 = vrot.lane.b32.xlu0 %v1952, 96
    %v1961 = vpop.permute.xlu0 %1960
    %v1962 = vsel %vm89, %v1961, 0
    %1964 = vmatprep.subr.mxu0 0.0
    %1965 = vmatpush1.msra.mxu0 %v57
    %1966 = vmatprep.subr.mxu0 0.0
    %1967 = vmatpush1.msra.mxu0 0.0
    %1968 = vmatprep.subr.mxu0 0.0
    %1969 = vmatpush1.msra.mxu0 0.0
    %1970 = vmatprep.subr.mxu0 0.0
    %1971 = vmatpush1.msra.mxu0 0.0
    %1972 = vmatprep.subr.mxu0 0.0
    %1973 = vmatpush1.msra.mxu0 0.0
    %1974 = vmatprep.subr.mxu0 0.0
    %1975 = vmatpush1.msra.mxu0 0.0
    %1976 = vmatprep.subr.mxu0 0.0
    %1977 = vmatpush1.msra.mxu0 0.0
    %1978 = vmatprep.subr.mxu0 0.0
    %1979 = vmatpush1.msra.mxu0 0.0
    %1980 = vmatprep.subr.mxu0 0.0
    %1981 = vmatpush1.msra.mxu0 0.0
    %1982 = vmatprep.subr.mxu0 0.0
    %1983 = vmatpush1.msra.mxu0 0.0
    %1984 = vmatprep.subr.mxu0 0.0
    %1985 = vmatpush1.msra.mxu0 0.0
    %1986 = vmatprep.subr.mxu0 0.0
    %1987 = vmatpush1.msra.mxu0 0.0
    %1988 = vmatprep.subr.mxu0 0.0
    %1989 = vmatpush1.msra.mxu0 0.0
    %1990 = vmatprep.subr.mxu0 0.0
    %1991 = vmatpush1.msra.mxu0 0.0
    %1992 = vmatprep.subr.mxu0 0.0
    %1993 = vmatpush1.msra.mxu0 0.0
    %1994 = vmatprep.subr.mxu0 0.0
    %1995 = vmatpush1.msra.mxu0 0.0
    %1996 = vmatprep.subr.mxu0 0.0
    %1997 = vmatpush1.msra.mxu0 0.0
    %1998 = vmatprep.subr.mxu0 0.0
    %1999 = vmatpush1.msra.mxu0 0.0
    %2000 = vmatprep.subr.mxu0 0.0
    %2001 = vmatpush1.msra.mxu0 0.0
    %2002 = vmatprep.subr.mxu0 0.0
    %2003 = vmatpush1.msra.mxu0 0.0
    %2004 = vmatprep.subr.mxu0 0.0
    %2005 = vmatpush1.msra.mxu0 0.0
    %2006 = vmatprep.subr.mxu0 0.0
    %2007 = vmatpush1.msra.mxu0 0.0
    %2008 = vmatprep.subr.mxu0 0.0
    %2009 = vmatpush1.msra.mxu0 0.0
    %2010 = vmatprep.subr.mxu0 0.0
    %2011 = vmatpush1.msra.mxu0 0.0
    %2012 = vmatprep.subr.mxu0 0.0
    %2013 = vmatpush1.msra.mxu0 0.0
    %2014 = vmatprep.subr.mxu0 0.0
    %2015 = vmatpush1.msra.mxu0 0.0
    %2016 = vmatprep.subr.mxu0 0.0
    %2017 = vmatpush1.msra.mxu0 0.0
    %2018 = vmatprep.subr.mxu0 0.0
    %2019 = vmatpush1.msra.mxu0 0.0
    %2020 = vmatprep.subr.mxu0 0.0
    %2021 = vmatpush1.msra.mxu0 0.0
    %2022 = vmatprep.subr.mxu0 0.0
    %2023 = vmatpush1.msra.mxu0 0.0
    %2024 = vmatprep.subr.mxu0 0.0
    %2025 = vmatpush1.msra.mxu0 0.0
    %2026 = vmatprep.subr.mxu0 0.0
    %2027 = vmatpush1.msra.mxu0 0.0
    %2028 = vmatprep.mubr.f32.mxu0 0.0
    %2029 = vmatmul.mubr.f32.gmra.mrb[0].mxu0 %v1962
    %v2030 = vpop.f32.mrb[0].mxu0
    %v2031 = vadd.f32 %v1958, %v2030
    %v2032 = vpop.f32.mrb[0].mxu0
    %2033 = vdwg.mxu0
    %v2034 = vadd.f32 %v2031, %v255
    %2035 = vmatprep.subr.mxu0 0.0
    %2036 = vmatpush1.msra.mxu0 %v59
    %2037 = vmatprep.subr.mxu0 0.0
    %2038 = vmatpush1.msra.mxu0 %v60
    %2039 = vmatprep.subr.mxu0 0.0
    %2040 = vmatpush1.msra.mxu0 0.0
    %2041 = vmatprep.subr.mxu0 0.0
    %2042 = vmatpush1.msra.mxu0 0.0
    %2043 = vmatprep.subr.mxu0 0.0
    %2044 = vmatpush1.msra.mxu0 0.0
    %2045 = vmatprep.subr.mxu0 0.0
    %2046 = vmatpush1.msra.mxu0 0.0
    %2047 = vmatprep.subr.mxu0 0.0
    %2048 = vmatpush1.msra.mxu0 0.0
    %2049 = vmatprep.subr.mxu0 0.0
    %2050 = vmatpush1.msra.mxu0 0.0
    %2051 = vmatprep.subr.mxu0 0.0
    %2052 = vmatpush1.msra.mxu0 0.0
    %2053 = vmatprep.subr.mxu0 0.0
    %2054 = vmatpush1.msra.mxu0 0.0
    %2055 = vmatprep.subr.mxu0 0.0
    %2056 = vmatpush1.msra.mxu0 0.0
    %2057 = vmatprep.subr.mxu0 0.0
    %2058 = vmatpush1.msra.mxu0 0.0
    %2059 = vmatprep.subr.mxu0 0.0
    %2060 = vmatpush1.msra.mxu0 0.0
    %2061 = vmatprep.subr.mxu0 0.0
    %2062 = vmatpush1.msra.mxu0 0.0
    %2063 = vmatprep.subr.mxu0 0.0
    %2064 = vmatpush1.msra.mxu0 0.0
    %2065 = vmatprep.subr.mxu0 0.0
    %2066 = vmatpush1.msra.mxu0 0.0
    %2067 = vmatprep.subr.mxu0 0.0
    %2068 = vmatpush1.msra.mxu0 0.0
    %2069 = vmatprep.subr.mxu0 0.0
    %2070 = vmatpush1.msra.mxu0 0.0
    %2071 = vmatprep.subr.mxu0 0.0
    %2072 = vmatpush1.msra.mxu0 0.0
    %2073 = vmatprep.subr.mxu0 0.0
    %2074 = vmatpush1.msra.mxu0 0.0
    %2075 = vmatprep.subr.mxu0 0.0
    %2076 = vmatpush1.msra.mxu0 0.0
    %2077 = vmatprep.subr.mxu0 0.0
    %2078 = vmatpush1.msra.mxu0 0.0
    %2079 = vmatprep.subr.mxu0 0.0
    %2080 = vmatpush1.msra.mxu0 0.0
    %2081 = vmatprep.subr.mxu0 0.0
    %2082 = vmatpush1.msra.mxu0 0.0
    %2083 = vmatprep.subr.mxu0 0.0
    %2084 = vmatpush1.msra.mxu0 0.0
    %2085 = vmatprep.subr.mxu0 0.0
    %2086 = vmatpush1.msra.mxu0 0.0
    %2087 = vmatprep.subr.mxu0 0.0
    %2088 = vmatpush1.msra.mxu0 0.0
    %2089 = vmatprep.subr.mxu0 0.0
    %2090 = vmatpush1.msra.mxu0 0.0
    %2091 = vmatprep.subr.mxu0 0.0
    %2092 = vmatpush1.msra.mxu0 0.0
    %2093 = vmatprep.subr.mxu0 0.0
    %2094 = vmatpush1.msra.mxu0 0.0
    %2095 = vmatprep.subr.mxu0 0.0
    %2096 = vmatpush1.msra.mxu0 0.0
    %2097 = vmatprep.subr.mxu0 0.0
    %2098 = vmatpush1.msra.mxu0 0.0
    %2099 = vmatprep.mubr.f32.mxu0 0.0
    %2100 = vmatmul.mubr.f32.gmra.mrb[0].mxu0 %v1650
    %v2101 = vpop.f32.mrb[0].mxu0
    %v2102 = vadd.f32 0.0, %v2101
    %v2103 = vpop.f32.mrb[0].mxu0
    %2104 = vdwg.mxu0
    %v2105 = vadd.f32 %v2034, %v2102
    %v2106 = vtanh.pop %v2105
    %v2108 = vsel %vm265, %v2106, 0
    %2110 = vmatprep.subr.mxu0 0.0
    %2111 = vmatpush1.msra.mxu0 %v62
    %2112 = vmatprep.subr.mxu0 0.0
    %2113 = vmatpush1.msra.mxu0 %v63
    %2114 = vmatprep.subr.mxu0 0.0
    %2115 = vmatpush1.msra.mxu0 0.0
    %2116 = vmatprep.subr.mxu0 0.0
    %2117 = vmatpush1.msra.mxu0 0.0
    %2118 = vmatprep.subr.mxu0 0.0
    %2119 = vmatpush1.msra.mxu0 0.0
    %2120 = vmatprep.subr.mxu0 0.0
    %2121 = vmatpush1.msra.mxu0 0.0
    %2122 = vmatprep.subr.mxu0 0.0
    %2123 = vmatpush1.msra.mxu0 0.0
    %2124 = vmatprep.subr.mxu0 0.0
    %2125 = vmatpush1.msra.mxu0 0.0
    %2126 = vmatprep.subr.mxu0 0.0
    %2127 = vmatpush1.msra.mxu0 0.0
    %2128 = vmatprep.subr.mxu0 0.0
    %2129 = vmatpush1.msra.mxu0 0.0
    %2130 = vmatprep.subr.mxu0 0.0
    %2131 = vmatpush1.msra.mxu0 0.0
    %2132 = vmatprep.subr.mxu0 0.0
    %2133 = vmatpush1.msra.mxu0 0.0
    %2134 = vmatprep.subr.mxu0 0.0
    %2135 = vmatpush1.msra.mxu0 0.0
    %2136 = vmatprep.subr.mxu0 0.0
    %2137 = vmatpush1.msra.mxu0 0.0
    %2138 = vmatprep.subr.mxu0 0.0
    %2139 = vmatpush1.msra.mxu0 0.0
    %2140 = vmatprep.subr.mxu0 0.0
    %2141 = vmatpush1.msra.mxu0 0.0
    %2142 = vmatprep.subr.mxu0 0.0
    %2143 = vmatpush1.msra.mxu0 0.0
    %2144 = vmatprep.subr.mxu0 0.0
    %2145 = vmatpush1.msra.mxu0 0.0
    %2146 = vmatprep.subr.mxu0 0.0
    %2147 = vmatpush1.msra.mxu0 0.0
    %2148 = vmatprep.subr.mxu0 0.0
    %2149 = vmatpush1.msra.mxu0 0.0
    %2150 = vmatprep.subr.mxu0 0.0
    %2151 = vmatpush1.msra.mxu0 0.0
    %2152 = vmatprep.subr.mxu0 0.0
    %2153 = vmatpush1.msra.mxu0 0.0
    %2154 = vmatprep.subr.mxu0 0.0
    %2155 = vmatpush1.msra.mxu0 0.0
    %2156 = vmatprep.subr.mxu0 0.0
    %2157 = vmatpush1.msra.mxu0 0.0
    %2158 = vmatprep.subr.mxu0 0.0
    %2159 = vmatpush1.msra.mxu0 0.0
    %2160 = vmatprep.subr.mxu0 0.0
    %2161 = vmatpush1.msra.mxu0 0.0
    %2162 = vmatprep.subr.mxu0 0.0
    %2163 = vmatpush1.msra.mxu0 0.0
    %2164 = vmatprep.subr.mxu0 0.0
    %2165 = vmatpush1.msra.mxu0 0.0
    %2166 = vmatprep.subr.mxu0 0.0
    %2167 = vmatpush1.msra.mxu0 0.0
    %2168 = vmatprep.subr.mxu0 0.0
    %2169 = vmatpush1.msra.mxu0 0.0
    %2170 = vmatprep.subr.mxu0 0.0
    %2171 = vmatpush1.msra.mxu0 0.0
    %2172 = vmatprep.subr.mxu0 0.0
    %2173 = vmatpush1.msra.mxu0 0.0
    %2174 = vmatprep.mubr.f32.mxu0 0.0
    %2175 = vmatmul.mubr.f32.gmra.mrb[0].mxu0 %v2108
    %v2176 = vpop.f32.mrb[0].mxu0
    %v2177 = vadd.f32 %v263, %v2176
    %v2178 = vpop.f32.mrb[0].mxu0
    %2179 = vdwg.mxu0
    %v2180 = vmax.f32 %v2177, 0.0
    %v2182 = vsel %vm346, %v2180, 0
    %2184 = vmatprep.subr.mxu0 0.0
    %2185 = vmatpush1.msra.mxu0 %v65
    %2186 = vmatprep.subr.mxu0 0.0
    %2187 = vmatpush1.msra.mxu0 %v66
    %2188 = vmatprep.subr.mxu0 0.0
    %2189 = vmatpush1.msra.mxu0 %v67
    %2190 = vmatprep.subr.mxu0 0.0
    %2191 = vmatpush1.msra.mxu0 %v68
    %2192 = vmatprep.subr.mxu0 0.0
    %2193 = vmatpush1.msra.mxu0 %v69
    %2194 = vmatprep.subr.mxu0 0.0
    %2195 = vmatpush1.msra.mxu0 %v70
    %2196 = vmatprep.subr.mxu0 0.0
    %2197 = vmatpush1.msra.mxu0 %v71
    %2198 = vmatprep.subr.mxu0 0.0
    %2199 = vmatpush1.msra.mxu0 %v72
    %2200 = vmatprep.subr.mxu0 0.0
    %2201 = vmatpush1.msra.mxu0 0.0
    %2202 = vmatprep.subr.mxu0 0.0
    %2203 = vmatpush1.msra.mxu0 0.0
    %2204 = vmatprep.subr.mxu0 0.0
    %2205 = vmatpush1.msra.mxu0 0.0
    %2206 = vmatprep.subr.mxu0 0.0
    %2207 = vmatpush1.msra.mxu0 0.0
    %2208 = vmatprep.subr.mxu0 0.0
    %2209 = vmatpush1.msra.mxu0 0.0
    %2210 = vmatprep.subr.mxu0 0.0
    %2211 = vmatpush1.msra.mxu0 0.0
    %2212 = vmatprep.subr.mxu0 0.0
    %2213 = vmatpush1.msra.mxu0 0.0
    %2214 = vmatprep.subr.mxu0 0.0
    %2215 = vmatpush1.msra.mxu0 0.0
    %2216 = vmatprep.subr.mxu0 0.0
    %2217 = vmatpush1.msra.mxu0 0.0
    %2218 = vmatprep.subr.mxu0 0.0
    %2219 = vmatpush1.msra.mxu0 0.0
    %2220 = vmatprep.subr.mxu0 0.0
    %2221 = vmatpush1.msra.mxu0 0.0
    %2222 = vmatprep.subr.mxu0 0.0
    %2223 = vmatpush1.msra.mxu0 0.0
    %2224 = vmatprep.subr.mxu0 0.0
    %2225 = vmatpush1.msra.mxu0 0.0
    %2226 = vmatprep.subr.mxu0 0.0
    %2227 = vmatpush1.msra.mxu0 0.0
    %2228 = vmatprep.subr.mxu0 0.0
    %2229 = vmatpush1.msra.mxu0 0.0
    %2230 = vmatprep.subr.mxu0 0.0
    %2231 = vmatpush1.msra.mxu0 0.0
    %2232 = vmatprep.subr.mxu0 0.0
    %2233 = vmatpush1.msra.mxu0 0.0
    %2234 = vmatprep.subr.mxu0 0.0
    %2235 = vmatpush1.msra.mxu0 0.0
    %2236 = vmatprep.subr.mxu0 0.0
    %2237 = vmatpush1.msra.mxu0 0.0
    %2238 = vmatprep.subr.mxu0 0.0
    %2239 = vmatpush1.msra.mxu0 0.0
    %2240 = vmatprep.subr.mxu0 0.0
    %2241 = vmatpush1.msra.mxu0 0.0
    %2242 = vmatprep.subr.mxu0 0.0
    %2243 = vmatpush1.msra.mxu0 0.0
    %2244 = vmatprep.subr.mxu0 0.0
    %2245 = vmatpush1.msra.mxu0 0.0
    %2246 = vmatprep.subr.mxu0 0.0
    %2247 = vmatpush1.msra.mxu0 0.0
    %2248 = vmatprep.mubr.f32.mxu0 0.0
    %2249 = vmatmul.mubr.f32.gmra.mrb[0].mxu0 %v2182
    %v2250 = vpop.f32.mrb[0].mxu0
    %v2251 = vadd.f32 %v344, %v2250
    %v2252 = vpop.f32.mrb[0].mxu0
    %2253 = vdwg.mxu0
    %v2254 = vsel %vm420, %v2251, -inf
    %2255 = vmax.xlane.f32.xlu0 %v2254
    %v2256 = vpop.xlane.xlu0 %2255
    %v2257 = vsub.f32 %v2251, %v2256
    %v2258 = vmul.f32 %v2257, 1.442695
    %v2259 = vpow.pop %v2258
    %v2260 = vsel %vm420, %v2259, 0.0
    %2261 = vadd.xlane.f32.xlu0 %v2260
    %v2262 = vpop.xlane.xlu0 %2261
    %v2263 = vrcp.pop %v2262
    %v2264 = vmul.f32 %v2259, %v2263
    %v2265 = vxor.u32 %v2106, 2147483648
    %v2266 = vmul.f32 %v2265, 1.442695
    %v2267 = vpow.pop %v2266
    %v2268 = vadd.f32 %v2267, 1.0
    %v2269 = vrcp.pop %v2268
    %v2270 = vmul.f32 1.0, %v2269
    %2272 = vset.pattern.permute.xlu0 15
    %2273 = vperm.xlu0 %2272, %v2270
    %v2274 = vpop.permute.xlu0 %2273
    %v2276 = vmul.f32 %v2264, %v2274
    %v2277 = vsub.f32 1.0, %v2270
    %2279 = vset.pattern.permute.xlu0 15
    %2280 = vperm.xlu0 %2279, %v2277
    %v2281 = vpop.permute.xlu0 %2280
    %v2283 = vmul.f32 %v1826, %v2281
    %v2284 = vadd.f32 %v2276, %v2283
    %2286 = vset.pattern.permute.xlu0 0
    %2287 = vperm.xlu0 %2286, %v2284
    %v2288 = vpop.permute.xlu0 %2287
    %v2290 = vmul.f32 %v2288, %v1952
    %v2291 = vadd.f32 %v2290, 0.0
    %2292 = vset.pattern.permute.xlu0 1
    %2293 = vperm.xlu0 %2292, %v2284
    %v2294 = vpop.permute.xlu0 %2293
    %v2296 = vmul.f32 %v2294, %v1952
    %2298 = vrot.lane.b32.xlu0 %v2296, 120
    %v2299 = vpop.permute.xlu0 %2298
    %v2301 = vadd.f32 %v2291, %v2299
    %2302 = vset.pattern.permute.xlu0 2
    %2303 = vperm.xlu0 %2302, %v2284
    %v2304 = vpop.permute.xlu0 %2303
    %v2306 = vmul.f32 %v2304, %v1952
    %2308 = vrot.lane.b32.xlu0 %v2306, 112
    %v2309 = vpop.permute.xlu0 %2308
    %v2311 = vadd.f32 %v2301, %v2309
    %2312 = vset.pattern.permute.xlu0 3
    %2313 = vperm.xlu0 %2312, %v2284
    %v2314 = vpop.permute.xlu0 %2313
    %v2316 = vmul.f32 %v2314, %v1952
    %2318 = vrot.lane.b32.xlu0 %v2316, 104
    %v2319 = vpop.permute.xlu0 %2318
    %v2321 = vadd.f32 %v2311, %v2319
    %v2322 = vmax.f32 %v2321, 0.0
    %v2323 = vsub.f32 %v2321, 1.0
    %v2324 = vmax.f32 %v2323, 0.0
    %v2325 = vsub.f32 %v2322, %v2324
    %2326 = vrot.lane.b32.xlu0 %v54, 3
    %v2327 = vpop.permute.xlu0 %2326
    %v2329 = vsub.f32 %v2325, %v2327
    %v2330 = vmul.f32 %v2329, %v2329
    %v2331 = vsub.f32 1.0, %v2330
    %2332 = vset.pattern.permute.xlu0 5
    %2333 = vperm.xlu0 %2332, %v53
    %v2334 = vpop.permute.xlu0 %2333
    %v2336 = vmul.f32 %v2334, %v86
    %v2338 = vsel %vm89, %v2321, 0
    %2340 = vmatprep.subr.mxu0 0.0
    %2341 = vmatpush1.msra.mxu0 %v55
    %2342 = vmatprep.subr.mxu0 0.0
    %2343 = vmatpush1.msra.mxu0 0.0
    %2344 = vmatprep.subr.mxu0 0.0
    %2345 = vmatpush1.msra.mxu0 0.0
    %2346 = vmatprep.subr.mxu0 0.0
    %2347 = vmatpush1.msra.mxu0 0.0
    %2348 = vmatprep.subr.mxu0 0.0
    %2349 = vmatpush1.msra.mxu0 0.0
    %2350 = vmatprep.subr.mxu0 0.0
    %2351 = vmatpush1.msra.mxu0 0.0
    %2352 = vmatprep.subr.mxu0 0.0
    %2353 = vmatpush1.msra.mxu0 0.0
    %2354 = vmatprep.subr.mxu0 0.0
    %2355 = vmatpush1.msra.mxu0 0.0
    %2356 = vmatprep.subr.mxu0 0.0
    %2357 = vmatpush1.msra.mxu0 0.0
    %2358 = vmatprep.subr.mxu0 0.0
    %2359 = vmatpush1.msra.mxu0 0.0
    %2360 = vmatprep.subr.mxu0 0.0
    %2361 = vmatpush1.msra.mxu0 0.0
    %2362 = vmatprep.subr.mxu0 0.0
    %2363 = vmatpush1.msra.mxu0 0.0
    %2364 = vmatprep.subr.mxu0 0.0
    %2365 = vmatpush1.msra.mxu0 0.0
    %2366 = vmatprep.subr.mxu0 0.0
    %2367 = vmatpush1.msra.mxu0 0.0
    %2368 = vmatprep.subr.mxu0 0.0
    %2369 = vmatpush1.msra.mxu0 0.0
    %2370 = vmatprep.subr.mxu0 0.0
    %2371 = vmatpush1.msra.mxu0 0.0
    %2372 = vmatprep.subr.mxu0 0.0
    %2373 = vmatpush1.msra.mxu0 0.0
    %2374 = vmatprep.subr.mxu0 0.0
    %2375 = vmatpush1.msra.mxu0 0.0
    %2376 = vmatprep.subr.mxu0 0.0
    %2377 = vmatpush1.msra.mxu0 0.0
    %2378 = vmatprep.subr.mxu0 0.0
    %2379 = vmatpush1.msra.mxu0 0.0
    %2380 = vmatprep.subr.mxu0 0.0
    %2381 = vmatpush1.msra.mxu0 0.0
    %2382 = vmatprep.subr.mxu0 0.0
    %2383 = vmatpush1.msra.mxu0 0.0
    %2384 = vmatprep.subr.mxu0 0.0
    %2385 = vmatpush1.msra.mxu0 0.0
    %2386 = vmatprep.subr.mxu0 0.0
    %2387 = vmatpush1.msra.mxu0 0.0
    %2388 = vmatprep.subr.mxu0 0.0
    %2389 = vmatpush1.msra.mxu0 0.0
    %2390 = vmatprep.subr.mxu0 0.0
    %2391 = vmatpush1.msra.mxu0 0.0
    %2392 = vmatprep.subr.mxu0 0.0
    %2393 = vmatpush1.msra.mxu0 0.0
    %2394 = vmatprep.subr.mxu0 0.0
    %2395 = vmatpush1.msra.mxu0 0.0
    %2396 = vmatprep.subr.mxu0 0.0
    %2397 = vmatpush1.msra.mxu0 0.0
    %2398 = vmatprep.subr.mxu0 0.0
    %2399 = vmatpush1.msra.mxu0 0.0
    %2400 = vmatprep.subr.mxu0 0.0
    %2401 = vmatpush1.msra.mxu0 0.0
    %2402 = vmatprep.subr.mxu0 0.0
    %2403 = vmatpush1.msra.mxu0 0.0
    %2404 = vmatprep.mubr.f32.mxu0 0.0
    %2405 = vmatmul.mubr.f32.gmra.mrb[0].mxu0 %v2338
    %v2406 = vpop.f32.mrb[0].mxu0
    %v2407 = vadd.f32 %v2336, %v2406
    %v2408 = vpop.f32.mrb[0].mxu0
    %2409 = vdwg.mxu0
    %v2410 = vtanh.pop %v2407
    %2412 = vset.pattern.permute.xlu0 7
    %2413 = vperm.xlu0 %2412, %v2329
    %v2414 = vpop.permute.xlu0 %2413
    %v2416 = vmul.f32 %v2414, %v173
    %2418 = vrot.lane.b32.xlu0 %v2410, 96
    %v2419 = vpop.permute.xlu0 %2418
    %v2420 = vsel %vm89, %v2419, 0
    %2422 = vmatprep.subr.mxu0 0.0
    %2423 = vmatpush1.msra.mxu0 %v57
    %2424 = vmatprep.subr.mxu0 0.0
    %2425 = vmatpush1.msra.mxu0 0.0
    %2426 = vmatprep.subr.mxu0 0.0
    %2427 = vmatpush1.msra.mxu0 0.0
    %2428 = vmatprep.subr.mxu0 0.0
    %2429 = vmatpush1.msra.mxu0 0.0
    %2430 = vmatprep.subr.mxu0 0.0
    %2431 = vmatpush1.msra.mxu0 0.0
    %2432 = vmatprep.subr.mxu0 0.0
    %2433 = vmatpush1.msra.mxu0 0.0
    %2434 = vmatprep.subr.mxu0 0.0
    %2435 = vmatpush1.msra.mxu0 0.0
    %2436 = vmatprep.subr.mxu0 0.0
    %2437 = vmatpush1.msra.mxu0 0.0
    %2438 = vmatprep.subr.mxu0 0.0
    %2439 = vmatpush1.msra.mxu0 0.0
    %2440 = vmatprep.subr.mxu0 0.0
    %2441 = vmatpush1.msra.mxu0 0.0
    %2442 = vmatprep.subr.mxu0 0.0
    %2443 = vmatpush1.msra.mxu0 0.0
    %2444 = vmatprep.subr.mxu0 0.0
    %2445 = vmatpush1.msra.mxu0 0.0
    %2446 = vmatprep.subr.mxu0 0.0
    %2447 = vmatpush1.msra.mxu0 0.0
    %2448 = vmatprep.subr.mxu0 0.0
    %2449 = vmatpush1.msra.mxu0 0.0
    %2450 = vmatprep.subr.mxu0 0.0
    %2451 = vmatpush1.msra.mxu0 0.0
    %2452 = vmatprep.subr.mxu0 0.0
    %2453 = vmatpush1.msra.mxu0 0.0
    %2454 = vmatprep.subr.mxu0 0.0
    %2455 = vmatpush1.msra.mxu0 0.0
    %2456 = vmatprep.subr.mxu0 0.0
    %2457 = vmatpush1.msra.mxu0 0.0
    %2458 = vmatprep.subr.mxu0 0.0
    %2459 = vmatpush1.msra.mxu0 0.0
    %2460 = vmatprep.subr.mxu0 0.0
    %2461 = vmatpush1.msra.mxu0 0.0
    %2462 = vmatprep.subr.mxu0 0.0
    %2463 = vmatpush1.msra.mxu0 0.0
    %2464 = vmatprep.subr.mxu0 0.0
    %2465 = vmatpush1.msra.mxu0 0.0
    %2466 = vmatprep.subr.mxu0 0.0
    %2467 = vmatpush1.msra.mxu0 0.0
    %2468 = vmatprep.subr.mxu0 0.0
    %2469 = vmatpush1.msra.mxu0 0.0
    %2470 = vmatprep.subr.mxu0 0.0
    %2471 = vmatpush1.msra.mxu0 0.0
    %2472 = vmatprep.subr.mxu0 0.0
    %2473 = vmatpush1.msra.mxu0 0.0
    %2474 = vmatprep.subr.mxu0 0.0
    %2475 = vmatpush1.msra.mxu0 0.0
    %2476 = vmatprep.subr.mxu0 0.0
    %2477 = vmatpush1.msra.mxu0 0.0
    %2478 = vmatprep.subr.mxu0 0.0
    %2479 = vmatpush1.msra.mxu0 0.0
    %2480 = vmatprep.subr.mxu0 0.0
    %2481 = vmatpush1.msra.mxu0 0.0
    %2482 = vmatprep.subr.mxu0 0.0
    %2483 = vmatpush1.msra.mxu0 0.0
    %2484 = vmatprep.subr.mxu0 0.0
    %2485 = vmatpush1.msra.mxu0 0.0
    %2486 = vmatprep.mubr.f32.mxu0 0.0
    %2487 = vmatmul.mubr.f32.gmra.mrb[0].mxu0 %v2420
    %v2488 = vpop.f32.mrb[0].mxu0
    %v2489 = vadd.f32 %v2416, %v2488
    %v2490 = vpop.f32.mrb[0].mxu0
    %2491 = vdwg.mxu0
    %v2492 = vadd.f32 %v2489, %v255
    %2493 = vmatprep.subr.mxu0 0.0
    %2494 = vmatpush1.msra.mxu0 %v59
    %2495 = vmatprep.subr.mxu0 0.0
    %2496 = vmatpush1.msra.mxu0 %v60
    %2497 = vmatprep.subr.mxu0 0.0
    %2498 = vmatpush1.msra.mxu0 0.0
    %2499 = vmatprep.subr.mxu0 0.0
    %2500 = vmatpush1.msra.mxu0 0.0
    %2501 = vmatprep.subr.mxu0 0.0
    %2502 = vmatpush1.msra.mxu0 0.0
    %2503 = vmatprep.subr.mxu0 0.0
    %2504 = vmatpush1.msra.mxu0 0.0
    %2505 = vmatprep.subr.mxu0 0.0
    %2506 = vmatpush1.msra.mxu0 0.0
    %2507 = vmatprep.subr.mxu0 0.0
    %2508 = vmatpush1.msra.mxu0 0.0
    %2509 = vmatprep.subr.mxu0 0.0
    %2510 = vmatpush1.msra.mxu0 0.0
    %2511 = vmatprep.subr.mxu0 0.0
    %2512 = vmatpush1.msra.mxu0 0.0
    %2513 = vmatprep.subr.mxu0 0.0
    %2514 = vmatpush1.msra.mxu0 0.0
    %2515 = vmatprep.subr.mxu0 0.0
    %2516 = vmatpush1.msra.mxu0 0.0
    %2517 = vmatprep.subr.mxu0 0.0
    %2518 = vmatpush1.msra.mxu0 0.0
    %2519 = vmatprep.subr.mxu0 0.0
    %2520 = vmatpush1.msra.mxu0 0.0
    %2521 = vmatprep.subr.mxu0 0.0
    %2522 = vmatpush1.msra.mxu0 0.0
    %2523 = vmatprep.subr.mxu0 0.0
    %2524 = vmatpush1.msra.mxu0 0.0
    %2525 = vmatprep.subr.mxu0 0.0
    %2526 = vmatpush1.msra.mxu0 0.0
    %2527 = vmatprep.subr.mxu0 0.0
    %2528 = vmatpush1.msra.mxu0 0.0
    %2529 = vmatprep.subr.mxu0 0.0
    %2530 = vmatpush1.msra.mxu0 0.0
    %2531 = vmatprep.subr.mxu0 0.0
    %2532 = vmatpush1.msra.mxu0 0.0
    %2533 = vmatprep.subr.mxu0 0.0
    %2534 = vmatpush1.msra.mxu0 0.0
    %2535 = vmatprep.subr.mxu0 0.0
    %2536 = vmatpush1.msra.mxu0 0.0
    %2537 = vmatprep.subr.mxu0 0.0
    %2538 = vmatpush1.msra.mxu0 0.0
    %2539 = vmatprep.subr.mxu0 0.0
    %2540 = vmatpush1.msra.mxu0 0.0
    %2541 = vmatprep.subr.mxu0 0.0
    %2542 = vmatpush1.msra.mxu0 0.0
    %2543 = vmatprep.subr.mxu0 0.0
    %2544 = vmatpush1.msra.mxu0 0.0
    %2545 = vmatprep.subr.mxu0 0.0
    %2546 = vmatpush1.msra.mxu0 0.0
    %2547 = vmatprep.subr.mxu0 0.0
    %2548 = vmatpush1.msra.mxu0 0.0
    %2549 = vmatprep.subr.mxu0 0.0
    %2550 = vmatpush1.msra.mxu0 0.0
    %2551 = vmatprep.subr.mxu0 0.0
    %2552 = vmatpush1.msra.mxu0 0.0
    %2553 = vmatprep.subr.mxu0 0.0
    %2554 = vmatpush1.msra.mxu0 0.0
    %2555 = vmatprep.subr.mxu0 0.0
    %2556 = vmatpush1.msra.mxu0 0.0
    %2557 = vmatprep.mubr.f32.mxu0 0.0
    %2558 = vmatmul.mubr.f32.gmra.mrb[0].mxu0 %v2108
    %v2559 = vpop.f32.mrb[0].mxu0
    %v2560 = vadd.f32 0.0, %v2559
    %v2561 = vpop.f32.mrb[0].mxu0
    %2562 = vdwg.mxu0
    %v2563 = vadd.f32 %v2492, %v2560
    %v2564 = vtanh.pop %v2563
    %v2566 = vsel %vm265, %v2564, 0
    %2568 = vmatprep.subr.mxu0 0.0
    %2569 = vmatpush1.msra.mxu0 %v62
    %2570 = vmatprep.subr.mxu0 0.0
    %2571 = vmatpush1.msra.mxu0 %v63
    %2572 = vmatprep.subr.mxu0 0.0
    %2573 = vmatpush1.msra.mxu0 0.0
    %2574 = vmatprep.subr.mxu0 0.0
    %2575 = vmatpush1.msra.mxu0 0.0
    %2576 = vmatprep.subr.mxu0 0.0
    %2577 = vmatpush1.msra.mxu0 0.0
    %2578 = vmatprep.subr.mxu0 0.0
    %2579 = vmatpush1.msra.mxu0 0.0
    %2580 = vmatprep.subr.mxu0 0.0
    %2581 = vmatpush1.msra.mxu0 0.0
    %2582 = vmatprep.subr.mxu0 0.0
    %2583 = vmatpush1.msra.mxu0 0.0
    %2584 = vmatprep.subr.mxu0 0.0
    %2585 = vmatpush1.msra.mxu0 0.0
    %2586 = vmatprep.subr.mxu0 0.0
    %2587 = vmatpush1.msra.mxu0 0.0
    %2588 = vmatprep.subr.mxu0 0.0
    %2589 = vmatpush1.msra.mxu0 0.0
    %2590 = vmatprep.subr.mxu0 0.0
    %2591 = vmatpush1.msra.mxu0 0.0
    %2592 = vmatprep.subr.mxu0 0.0
    %2593 = vmatpush1.msra.mxu0 0.0
    %2594 = vmatprep.subr.mxu0 0.0
    %2595 = vmatpush1.msra.mxu0 0.0
    %2596 = vmatprep.subr.mxu0 0.0
    %2597 = vmatpush1.msra.mxu0 0.0
    %2598 = vmatprep.subr.mxu0 0.0
    %2599 = vmatpush1.msra.mxu0 0.0
    %2600 = vmatprep.subr.mxu0 0.0
    %2601 = vmatpush1.msra.mxu0 0.0
    %2602 = vmatprep.subr.mxu0 0.0
    %2603 = vmatpush1.msra.mxu0 0.0
    %2604 = vmatprep.subr.mxu0 0.0
    %2605 = vmatpush1.msra.mxu0 0.0
    %2606 = vmatprep.subr.mxu0 0.0
    %2607 = vmatpush1.msra.mxu0 0.0
    %2608 = vmatprep.subr.mxu0 0.0
    %2609 = vmatpush1.msra.mxu0 0.0
    %2610 = vmatprep.subr.mxu0 0.0
    %2611 = vmatpush1.msra.mxu0 0.0
    %2612 = vmatprep.subr.mxu0 0.0
    %2613 = vmatpush1.msra.mxu0 0.0
    %2614 = vmatprep.subr.mxu0 0.0
    %2615 = vmatpush1.msra.mxu0 0.0
    %2616 = vmatprep.subr.mxu0 0.0
    %2617 = vmatpush1.msra.mxu0 0.0
    %2618 = vmatprep.subr.mxu0 0.0
    %2619 = vmatpush1.msra.mxu0 0.0
    %2620 = vmatprep.subr.mxu0 0.0
    %2621 = vmatpush1.msra.mxu0 0.0
    %2622 = vmatprep.subr.mxu0 0.0
    %2623 = vmatpush1.msra.mxu0 0.0
    %2624 = vmatprep.subr.mxu0 0.0
    %2625 = vmatpush1.msra.mxu0 0.0
    %2626 = vmatprep.subr.mxu0 0.0
    %2627 = vmatpush1.msra.mxu0 0.0
    %2628 = vmatprep.subr.mxu0 0.0
    %2629 = vmatpush1.msra.mxu0 0.0
    %2630 = vmatprep.subr.mxu0 0.0
    %2631 = vmatpush1.msra.mxu0 0.0
    %2632 = vmatprep.mubr.f32.mxu0 0.0
    %2633 = vmatmul.mubr.f32.gmra.mrb[0].mxu0 %v2566
    %v2634 = vpop.f32.mrb[0].mxu0
    %v2635 = vadd.f32 %v263, %v2634
    %v2636 = vpop.f32.mrb[0].mxu0
    %2637 = vdwg.mxu0
    %v2638 = vmax.f32 %v2635, 0.0
    %v2640 = vsel %vm346, %v2638, 0
    %2642 = vmatprep.subr.mxu0 0.0
    %2643 = vmatpush1.msra.mxu0 %v65
    %2644 = vmatprep.subr.mxu0 0.0
    %2645 = vmatpush1.msra.mxu0 %v66
    %2646 = vmatprep.subr.mxu0 0.0
    %2647 = vmatpush1.msra.mxu0 %v67
    %2648 = vmatprep.subr.mxu0 0.0
    %2649 = vmatpush1.msra.mxu0 %v68
    %2650 = vmatprep.subr.mxu0 0.0
    %2651 = vmatpush1.msra.mxu0 %v69
    %2652 = vmatprep.subr.mxu0 0.0
    %2653 = vmatpush1.msra.mxu0 %v70
    %2654 = vmatprep.subr.mxu0 0.0
    %2655 = vmatpush1.msra.mxu0 %v71
    %2656 = vmatprep.subr.mxu0 0.0
    %2657 = vmatpush1.msra.mxu0 %v72
    %2658 = vmatprep.subr.mxu0 0.0
    %2659 = vmatpush1.msra.mxu0 0.0
    %2660 = vmatprep.subr.mxu0 0.0
    %2661 = vmatpush1.msra.mxu0 0.0
    %2662 = vmatprep.subr.mxu0 0.0
    %2663 = vmatpush1.msra.mxu0 0.0
    %2664 = vmatprep.subr.mxu0 0.0
    %2665 = vmatpush1.msra.mxu0 0.0
    %2666 = vmatprep.subr.mxu0 0.0
    %2667 = vmatpush1.msra.mxu0 0.0
    %2668 = vmatprep.subr.mxu0 0.0
    %2669 = vmatpush1.msra.mxu0 0.0
    %2670 = vmatprep.subr.mxu0 0.0
    %2671 = vmatpush1.msra.mxu0 0.0
    %2672 = vmatprep.subr.mxu0 0.0
    %2673 = vmatpush1.msra.mxu0 0.0
    %2674 = vmatprep.subr.mxu0 0.0
    %2675 = vmatpush1.msra.mxu0 0.0
    %2676 = vmatprep.subr.mxu0 0.0
    %2677 = vmatpush1.msra.mxu0 0.0
    %2678 = vmatprep.subr.mxu0 0.0
    %2679 = vmatpush1.msra.mxu0 0.0
    %2680 = vmatprep.subr.mxu0 0.0
    %2681 = vmatpush1.msra.mxu0 0.0
    %2682 = vmatprep.subr.mxu0 0.0
    %2683 = vmatpush1.msra.mxu0 0.0
    %2684 = vmatprep.subr.mxu0 0.0
    %2685 = vmatpush1.msra.mxu0 0.0
    %2686 = vmatprep.subr.mxu0 0.0
    %2687 = vmatpush1.msra.mxu0 0.0
    %2688 = vmatprep.subr.mxu0 0.0
    %2689 = vmatpush1.msra.mxu0 0.0
    %2690 = vmatprep.subr.mxu0 0.0
    %2691 = vmatpush1.msra.mxu0 0.0
    %2692 = vmatprep.subr.mxu0 0.0
    %2693 = vmatpush1.msra.mxu0 0.0
    %2694 = vmatprep.subr.mxu0 0.0
    %2695 = vmatpush1.msra.mxu0 0.0
    %2696 = vmatprep.subr.mxu0 0.0
    %2697 = vmatpush1.msra.mxu0 0.0
    %2698 = vmatprep.subr.mxu0 0.0
    %2699 = vmatpush1.msra.mxu0 0.0
    %2700 = vmatprep.subr.mxu0 0.0
    %2701 = vmatpush1.msra.mxu0 0.0
    %2702 = vmatprep.subr.mxu0 0.0
    %2703 = vmatpush1.msra.mxu0 0.0
    %2704 = vmatprep.subr.mxu0 0.0
    %2705 = vmatpush1.msra.mxu0 0.0
    %2706 = vmatprep.mubr.f32.mxu0 0.0
    %2707 = vmatmul.mubr.f32.gmra.mrb[0].mxu0 %v2640
    %v2708 = vpop.f32.mrb[0].mxu0
    %v2709 = vadd.f32 %v344, %v2708
    %v2710 = vpop.f32.mrb[0].mxu0
    %2711 = vdwg.mxu0
    %v2712 = vsel %vm420, %v2709, -inf
    %2713 = vmax.xlane.f32.xlu0 %v2712
    %v2714 = vpop.xlane.xlu0 %2713
    %v2715 = vsub.f32 %v2709, %v2714
    %v2716 = vmul.f32 %v2715, 1.442695
    %v2717 = vpow.pop %v2716
    %v2718 = vsel %vm420, %v2717, 0.0
    %2719 = vadd.xlane.f32.xlu0 %v2718
    %v2720 = vpop.xlane.xlu0 %2719
    %v2721 = vrcp.pop %v2720
    %v2722 = vmul.f32 %v2717, %v2721
    %v2723 = vxor.u32 %v2564, 2147483648
    %v2724 = vmul.f32 %v2723, 1.442695
    %v2725 = vpow.pop %v2724
    %v2726 = vadd.f32 %v2725, 1.0
    %v2727 = vrcp.pop %v2726
    %v2728 = vmul.f32 1.0, %v2727
    %2730 = vset.pattern.permute.xlu0 15
    %2731 = vperm.xlu0 %2730, %v2728
    %v2732 = vpop.permute.xlu0 %2731
    %v2734 = vmul.f32 %v2722, %v2732
    %v2735 = vsub.f32 1.0, %v2728
    %2737 = vset.pattern.permute.xlu0 15
    %2738 = vperm.xlu0 %2737, %v2735
    %v2739 = vpop.permute.xlu0 %2738
    %v2741 = vmul.f32 %v2284, %v2739
    %v2742 = vadd.f32 %v2734, %v2741
    %2744 = vset.pattern.permute.xlu0 0
    %2745 = vperm.xlu0 %2744, %v2742
    %v2746 = vpop.permute.xlu0 %2745
    %v2748 = vmul.f32 %v2746, %v2410
    %v2749 = vadd.f32 %v2748, 0.0
    %2750 = vset.pattern.permute.xlu0 1
    %2751 = vperm.xlu0 %2750, %v2742
    %v2752 = vpop.permute.xlu0 %2751
    %v2754 = vmul.f32 %v2752, %v2410
    %2756 = vrot.lane.b32.xlu0 %v2754, 120
    %v2757 = vpop.permute.xlu0 %2756
    %v2759 = vadd.f32 %v2749, %v2757
    %2760 = vset.pattern.permute.xlu0 2
    %2761 = vperm.xlu0 %2760, %v2742
    %v2762 = vpop.permute.xlu0 %2761
    %v2764 = vmul.f32 %v2762, %v2410
    %2766 = vrot.lane.b32.xlu0 %v2764, 112
    %v2767 = vpop.permute.xlu0 %2766
    %v2769 = vadd.f32 %v2759, %v2767
    %2770 = vset.pattern.permute.xlu0 3
    %2771 = vperm.xlu0 %2770, %v2742
    %v2772 = vpop.permute.xlu0 %2771
    %v2774 = vmul.f32 %v2772, %v2410
    %2776 = vrot.lane.b32.xlu0 %v2774, 104
    %v2777 = vpop.permute.xlu0 %2776
    %v2779 = vadd.f32 %v2769, %v2777
    %v2780 = vmax.f32 %v2779, 0.0
    %v2781 = vsub.f32 %v2779, 1.0
    %v2782 = vmax.f32 %v2781, 0.0
    %v2783 = vsub.f32 %v2780, %v2782
    %2784 = vrot.lane.b32.xlu0 %v54, 2
    %v2785 = vpop.permute.xlu0 %2784
    %v2787 = vsub.f32 %v2783, %v2785
    %v2788 = vmul.f32 %v2787, %v2787
    %v2789 = vsub.f32 1.0, %v2788
    %2790 = vset.pattern.permute.xlu0 6
    %2791 = vperm.xlu0 %2790, %v53
    %v2792 = vpop.permute.xlu0 %2791
    %v2794 = vmul.f32 %v2792, %v86
    %v2796 = vsel %vm89, %v2779, 0
    %2798 = vmatprep.subr.mxu0 0.0
    %2799 = vmatpush1.msra.mxu0 %v55
    %2800 = vmatprep.subr.mxu0 0.0
    %2801 = vmatpush1.msra.mxu0 0.0
    %2802 = vmatprep.subr.mxu0 0.0
    %2803 = vmatpush1.msra.mxu0 0.0
    %2804 = vmatprep.subr.mxu0 0.0
    %2805 = vmatpush1.msra.mxu0 0.0
    %2806 = vmatprep.subr.mxu0 0.0
    %2807 = vmatpush1.msra.mxu0 0.0
    %2808 = vmatprep.subr.mxu0 0.0
    %2809 = vmatpush1.msra.mxu0 0.0
    %2810 = vmatprep.subr.mxu0 0.0
    %2811 = vmatpush1.msra.mxu0 0.0
    %2812 = vmatprep.subr.mxu0 0.0
    %2813 = vmatpush1.msra.mxu0 0.0
    %2814 = vmatprep.subr.mxu0 0.0
    %2815 = vmatpush1.msra.mxu0 0.0
    %2816 = vmatprep.subr.mxu0 0.0
    %2817 = vmatpush1.msra.mxu0 0.0
    %2818 = vmatprep.subr.mxu0 0.0
    %2819 = vmatpush1.msra.mxu0 0.0
    %2820 = vmatprep.subr.mxu0 0.0
    %2821 = vmatpush1.msra.mxu0 0.0
    %2822 = vmatprep.subr.mxu0 0.0
    %2823 = vmatpush1.msra.mxu0 0.0
    %2824 = vmatprep.subr.mxu0 0.0
    %2825 = vmatpush1.msra.mxu0 0.0
    %2826 = vmatprep.subr.mxu0 0.0
    %2827 = vmatpush1.msra.mxu0 0.0
    %2828 = vmatprep.subr.mxu0 0.0
    %2829 = vmatpush1.msra.mxu0 0.0
    %2830 = vmatprep.subr.mxu0 0.0
    %2831 = vmatpush1.msra.mxu0 0.0
    %2832 = vmatprep.subr.mxu0 0.0
    %2833 = vmatpush1.msra.mxu0 0.0
    %2834 = vmatprep.subr.mxu0 0.0
    %2835 = vmatpush1.msra.mxu0 0.0
    %2836 = vmatprep.subr.mxu0 0.0
    %2837 = vmatpush1.msra.mxu0 0.0
    %2838 = vmatprep.subr.mxu0 0.0
    %2839 = vmatpush1.msra.mxu0 0.0
    %2840 = vmatprep.subr.mxu0 0.0
    %2841 = vmatpush1.msra.mxu0 0.0
    %2842 = vmatprep.subr.mxu0 0.0
    %2843 = vmatpush1.msra.mxu0 0.0
    %2844 = vmatprep.subr.mxu0 0.0
    %2845 = vmatpush1.msra.mxu0 0.0
    %2846 = vmatprep.subr.mxu0 0.0
    %2847 = vmatpush1.msra.mxu0 0.0
    %2848 = vmatprep.subr.mxu0 0.0
    %2849 = vmatpush1.msra.mxu0 0.0
    %2850 = vmatprep.subr.mxu0 0.0
    %2851 = vmatpush1.msra.mxu0 0.0
    %2852 = vmatprep.subr.mxu0 0.0
    %2853 = vmatpush1.msra.mxu0 0.0
    %2854 = vmatprep.subr.mxu0 0.0
    %2855 = vmatpush1.msra.mxu0 0.0
    %2856 = vmatprep.subr.mxu0 0.0
    %2857 = vmatpush1.msra.mxu0 0.0
    %2858 = vmatprep.subr.mxu0 0.0
    %2859 = vmatpush1.msra.mxu0 0.0
    %2860 = vmatprep.subr.mxu0 0.0
    %2861 = vmatpush1.msra.mxu0 0.0
    %2862 = vmatprep.mubr.f32.mxu0 0.0
    %2863 = vmatmul.mubr.f32.gmra.mrb[0].mxu0 %v2796
    %v2864 = vpop.f32.mrb[0].mxu0
    %v2865 = vadd.f32 %v2794, %v2864
    %v2866 = vpop.f32.mrb[0].mxu0
    %2867 = vdwg.mxu0
    %v2868 = vtanh.pop %v2865
    %2870 = vset.pattern.permute.xlu0 7
    %2871 = vperm.xlu0 %2870, %v2787
    %v2872 = vpop.permute.xlu0 %2871
    %v2874 = vmul.f32 %v2872, %v173
    %2876 = vrot.lane.b32.xlu0 %v2868, 96
    %v2877 = vpop.permute.xlu0 %2876
    %v2878 = vsel %vm89, %v2877, 0
    %2880 = vmatprep.subr.mxu0 0.0
    %2881 = vmatpush1.msra.mxu0 %v57
    %2882 = vmatprep.subr.mxu0 0.0
    %2883 = vmatpush1.msra.mxu0 0.0
    %2884 = vmatprep.subr.mxu0 0.0
    %2885 = vmatpush1.msra.mxu0 0.0
    %2886 = vmatprep.subr.mxu0 0.0
    %2887 = vmatpush1.msra.mxu0 0.0
    %2888 = vmatprep.subr.mxu0 0.0
    %2889 = vmatpush1.msra.mxu0 0.0
    %2890 = vmatprep.subr.mxu0 0.0
    %2891 = vmatpush1.msra.mxu0 0.0
    %2892 = vmatprep.subr.mxu0 0.0
    %2893 = vmatpush1.msra.mxu0 0.0
    %2894 = vmatprep.subr.mxu0 0.0
    %2895 = vmatpush1.msra.mxu0 0.0
    %2896 = vmatprep.subr.mxu0 0.0
    %2897 = vmatpush1.msra.mxu0 0.0
    %2898 = vmatprep.subr.mxu0 0.0
    %2899 = vmatpush1.msra.mxu0 0.0
    %2900 = vmatprep.subr.mxu0 0.0
    %2901 = vmatpush1.msra.mxu0 0.0
    %2902 = vmatprep.subr.mxu0 0.0
    %2903 = vmatpush1.msra.mxu0 0.0
    %2904 = vmatprep.subr.mxu0 0.0
    %2905 = vmatpush1.msra.mxu0 0.0
    %2906 = vmatprep.subr.mxu0 0.0
    %2907 = vmatpush1.msra.mxu0 0.0
    %2908 = vmatprep.subr.mxu0 0.0
    %2909 = vmatpush1.msra.mxu0 0.0
    %2910 = vmatprep.subr.mxu0 0.0
    %2911 = vmatpush1.msra.mxu0 0.0
    %2912 = vmatprep.subr.mxu0 0.0
    %2913 = vmatpush1.msra.mxu0 0.0
    %2914 = vmatprep.subr.mxu0 0.0
    %2915 = vmatpush1.msra.mxu0 0.0
    %2916 = vmatprep.subr.mxu0 0.0
    %2917 = vmatpush1.msra.mxu0 0.0
    %2918 = vmatprep.subr.mxu0 0.0
    %2919 = vmatpush1.msra.mxu0 0.0
    %2920 = vmatprep.subr.mxu0 0.0
    %2921 = vmatpush1.msra.mxu0 0.0
    %2922 = vmatprep.subr.mxu0 0.0
    %2923 = vmatpush1.msra.mxu0 0.0
    %2924 = vmatprep.subr.mxu0 0.0
    %2925 = vmatpush1.msra.mxu0 0.0
    %2926 = vmatprep.subr.mxu0 0.0
    %2927 = vmatpush1.msra.mxu0 0.0
    %2928 = vmatprep.subr.mxu0 0.0
    %2929 = vmatpush1.msra.mxu0 0.0
    %2930 = vmatprep.subr.mxu0 0.0
    %2931 = vmatpush1.msra.mxu0 0.0
    %2932 = vmatprep.subr.mxu0 0.0
    %2933 = vmatpush1.msra.mxu0 0.0
    %2934 = vmatprep.subr.mxu0 0.0
    %2935 = vmatpush1.msra.mxu0 0.0
    %2936 = vmatprep.subr.mxu0 0.0
    %2937 = vmatpush1.msra.mxu0 0.0
    %2938 = vmatprep.subr.mxu0 0.0
    %2939 = vmatpush1.msra.mxu0 0.0
    %2940 = vmatprep.subr.mxu0 0.0
    %2941 = vmatpush1.msra.mxu0 0.0
    %2942 = vmatprep.subr.mxu0 0.0
    %2943 = vmatpush1.msra.mxu0 0.0
    %2944 = vmatprep.mubr.f32.mxu0 0.0
    %2945 = vmatmul.mubr.f32.gmra.mrb[0].mxu0 %v2878
    %v2946 = vpop.f32.mrb[0].mxu0
    %v2947 = vadd.f32 %v2874, %v2946
    %v2948 = vpop.f32.mrb[0].mxu0
    %2949 = vdwg.mxu0
    %v2950 = vadd.f32 %v2947, %v255
    %2951 = vmatprep.subr.mxu0 0.0
    %2952 = vmatpush1.msra.mxu0 %v59
    %2953 = vmatprep.subr.mxu0 0.0
    %2954 = vmatpush1.msra.mxu0 %v60
    %2955 = vmatprep.subr.mxu0 0.0
    %2956 = vmatpush1.msra.mxu0 0.0
    %2957 = vmatprep.subr.mxu0 0.0
    %2958 = vmatpush1.msra.mxu0 0.0
    %2959 = vmatprep.subr.mxu0 0.0
    %2960 = vmatpush1.msra.mxu0 0.0
    %2961 = vmatprep.subr.mxu0 0.0
    %2962 = vmatpush1.msra.mxu0 0.0
    %2963 = vmatprep.subr.mxu0 0.0
    %2964 = vmatpush1.msra.mxu0 0.0
    %2965 = vmatprep.subr.mxu0 0.0
    %2966 = vmatpush1.msra.mxu0 0.0
    %2967 = vmatprep.subr.mxu0 0.0
    %2968 = vmatpush1.msra.mxu0 0.0
    %2969 = vmatprep.subr.mxu0 0.0
    %2970 = vmatpush1.msra.mxu0 0.0
    %2971 = vmatprep.subr.mxu0 0.0
    %2972 = vmatpush1.msra.mxu0 0.0
    %2973 = vmatprep.subr.mxu0 0.0
    %2974 = vmatpush1.msra.mxu0 0.0
    %2975 = vmatprep.subr.mxu0 0.0
    %2976 = vmatpush1.msra.mxu0 0.0
    %2977 = vmatprep.subr.mxu0 0.0
    %2978 = vmatpush1.msra.mxu0 0.0
    %2979 = vmatprep.subr.mxu0 0.0
    %2980 = vmatpush1.msra.mxu0 0.0
    %2981 = vmatprep.subr.mxu0 0.0
    %2982 = vmatpush1.msra.mxu0 0.0
    %2983 = vmatprep.subr.mxu0 0.0
    %2984 = vmatpush1.msra.mxu0 0.0
    %2985 = vmatprep.subr.mxu0 0.0
    %2986 = vmatpush1.msra.mxu0 0.0
    %2987 = vmatprep.subr.mxu0 0.0
    %2988 = vmatpush1.msra.mxu0 0.0
    %2989 = vmatprep.subr.mxu0 0.0
    %2990 = vmatpush1.msra.mxu0 0.0
    %2991 = vmatprep.subr.mxu0 0.0
    %2992 = vmatpush1.msra.mxu0 0.0
    %2993 = vmatprep.subr.mxu0 0.0
    %2994 = vmatpush1.msra.mxu0 0.0
    %2995 = vmatprep.subr.mxu0 0.0
    %2996 = vmatpush1.msra.mxu0 0.0
    %2997 = vmatprep.subr.mxu0 0.0
    %2998 = vmatpush1.msra.mxu0 0.0
    %2999 = vmatprep.subr.mxu0 0.0
    %3000 = vmatpush1.msra.mxu0 0.0
    %3001 = vmatprep.subr.mxu0 0.0
    %3002 = vmatpush1.msra.mxu0 0.0
    %3003 = vmatprep.subr.mxu0 0.0
    %3004 = vmatpush1.msra.mxu0 0.0
    %3005 = vmatprep.subr.mxu0 0.0
    %3006 = vmatpush1.msra.mxu0 0.0
    %3007 = vmatprep.subr.mxu0 0.0
    %3008 = vmatpush1.msra.mxu0 0.0
    %3009 = vmatprep.subr.mxu0 0.0
    %3010 = vmatpush1.msra.mxu0 0.0
    %3011 = vmatprep.subr.mxu0 0.0
    %3012 = vmatpush1.msra.mxu0 0.0
    %3013 = vmatprep.subr.mxu0 0.0
    %3014 = vmatpush1.msra.mxu0 0.0
    %3015 = vmatprep.mubr.f32.mxu0 0.0
    %3016 = vmatmul.mubr.f32.gmra.mrb[0].mxu0 %v2566
    %v3017 = vpop.f32.mrb[0].mxu0
    %v3018 = vadd.f32 0.0, %v3017
    %v3019 = vpop.f32.mrb[0].mxu0
    %3020 = vdwg.mxu0
    %v3021 = vadd.f32 %v2950, %v3018
    %v3022 = vtanh.pop %v3021
    %v3024 = vsel %vm265, %v3022, 0
    %3026 = vmatprep.subr.mxu0 0.0
    %3027 = vmatpush1.msra.mxu0 %v62
    %3028 = vmatprep.subr.mxu0 0.0
    %3029 = vmatpush1.msra.mxu0 %v63
    %3030 = vmatprep.subr.mxu0 0.0
    %3031 = vmatpush1.msra.mxu0 0.0
    %3032 = vmatprep.subr.mxu0 0.0
    %3033 = vmatpush1.msra.mxu0 0.0
    %3034 = vmatprep.subr.mxu0 0.0
    %3035 = vmatpush1.msra.mxu0 0.0
    %3036 = vmatprep.subr.mxu0 0.0
    %3037 = vmatpush1.msra.mxu0 0.0
    %3038 = vmatprep.subr.mxu0 0.0
    %3039 = vmatpush1.msra.mxu0 0.0
    %3040 = vmatprep.subr.mxu0 0.0
    %3041 = vmatpush1.msra.mxu0 0.0
    %3042 = vmatprep.subr.mxu0 0.0
    %3043 = vmatpush1.msra.mxu0 0.0
    %3044 = vmatprep.subr.mxu0 0.0
    %3045 = vmatpush1.msra.mxu0 0.0
    %3046 = vmatprep.subr.mxu0 0.0
    %3047 = vmatpush1.msra.mxu0 0.0
    %3048 = vmatprep.subr.mxu0 0.0
    %3049 = vmatpush1.msra.mxu0 0.0
    %3050 = vmatprep.subr.mxu0 0.0
    %3051 = vmatpush1.msra.mxu0 0.0
    %3052 = vmatprep.subr.mxu0 0.0
    %3053 = vmatpush1.msra.mxu0 0.0
    %3054 = vmatprep.subr.mxu0 0.0
    %3055 = vmatpush1.msra.mxu0 0.0
    %3056 = vmatprep.subr.mxu0 0.0
    %3057 = vmatpush1.msra.mxu0 0.0
    %3058 = vmatprep.subr.mxu0 0.0
    %3059 = vmatpush1.msra.mxu0 0.0
    %3060 = vmatprep.subr.mxu0 0.0
    %3061 = vmatpush1.msra.mxu0 0.0
    %3062 = vmatprep.subr.mxu0 0.0
    %3063 = vmatpush1.msra.mxu0 0.0
    %3064 = vmatprep.subr.mxu0 0.0
    %3065 = vmatpush1.msra.mxu0 0.0
    %3066 = vmatprep.subr.mxu0 0.0
    %3067 = vmatpush1.msra.mxu0 0.0
    %3068 = vmatprep.subr.mxu0 0.0
    %3069 = vmatpush1.msra.mxu0 0.0
    %3070 = vmatprep.subr.mxu0 0.0
    %3071 = vmatpush1.msra.mxu0 0.0
    %3072 = vmatprep.subr.mxu0 0.0
    %3073 = vmatpush1.msra.mxu0 0.0
    %3074 = vmatprep.subr.mxu0 0.0
    %3075 = vmatpush1.msra.mxu0 0.0
    %3076 = vmatprep.subr.mxu0 0.0
    %3077 = vmatpush1.msra.mxu0 0.0
    %3078 = vmatprep.subr.mxu0 0.0
    %3079 = vmatpush1.msra.mxu0 0.0
    %3080 = vmatprep.subr.mxu0 0.0
    %3081 = vmatpush1.msra.mxu0 0.0
    %3082 = vmatprep.subr.mxu0 0.0
    %3083 = vmatpush1.msra.mxu0 0.0
    %3084 = vmatprep.subr.mxu0 0.0
    %3085 = vmatpush1.msra.mxu0 0.0
    %3086 = vmatprep.subr.mxu0 0.0
    %3087 = vmatpush1.msra.mxu0 0.0
    %3088 = vmatprep.subr.mxu0 0.0
    %3089 = vmatpush1.msra.mxu0 0.0
    %3090 = vmatprep.mubr.f32.mxu0 0.0
    %3091 = vmatmul.mubr.f32.gmra.mrb[0].mxu0 %v3024
    %v3092 = vpop.f32.mrb[0].mxu0
    %v3093 = vadd.f32 %v263, %v3092
    %v3094 = vpop.f32.mrb[0].mxu0
    %3095 = vdwg.mxu0
    %v3096 = vmax.f32 %v3093, 0.0
    %v3098 = vsel %vm346, %v3096, 0
    %3100 = vmatprep.subr.mxu0 0.0
    %3101 = vmatpush1.msra.mxu0 %v65
    %3102 = vmatprep.subr.mxu0 0.0
    %3103 = vmatpush1.msra.mxu0 %v66
    %3104 = vmatprep.subr.mxu0 0.0
    %3105 = vmatpush1.msra.mxu0 %v67
    %3106 = vmatprep.subr.mxu0 0.0
    %3107 = vmatpush1.msra.mxu0 %v68
    %3108 = vmatprep.subr.mxu0 0.0
    %3109 = vmatpush1.msra.mxu0 %v69
    %3110 = vmatprep.subr.mxu0 0.0
    %3111 = vmatpush1.msra.mxu0 %v70
    %3112 = vmatprep.subr.mxu0 0.0
    %3113 = vmatpush1.msra.mxu0 %v71
    %3114 = vmatprep.subr.mxu0 0.0
    %3115 = vmatpush1.msra.mxu0 %v72
    %3116 = vmatprep.subr.mxu0 0.0
    %3117 = vmatpush1.msra.mxu0 0.0
    %3118 = vmatprep.subr.mxu0 0.0
    %3119 = vmatpush1.msra.mxu0 0.0
    %3120 = vmatprep.subr.mxu0 0.0
    %3121 = vmatpush1.msra.mxu0 0.0
    %3122 = vmatprep.subr.mxu0 0.0
    %3123 = vmatpush1.msra.mxu0 0.0
    %3124 = vmatprep.subr.mxu0 0.0
    %3125 = vmatpush1.msra.mxu0 0.0
    %3126 = vmatprep.subr.mxu0 0.0
    %3127 = vmatpush1.msra.mxu0 0.0
    %3128 = vmatprep.subr.mxu0 0.0
    %3129 = vmatpush1.msra.mxu0 0.0
    %3130 = vmatprep.subr.mxu0 0.0
    %3131 = vmatpush1.msra.mxu0 0.0
    %3132 = vmatprep.subr.mxu0 0.0
    %3133 = vmatpush1.msra.mxu0 0.0
    %3134 = vmatprep.subr.mxu0 0.0
    %3135 = vmatpush1.msra.mxu0 0.0
    %3136 = vmatprep.subr.mxu0 0.0
    %3137 = vmatpush1.msra.mxu0 0.0
    %3138 = vmatprep.subr.mxu0 0.0
    %3139 = vmatpush1.msra.mxu0 0.0
    %3140 = vmatprep.subr.mxu0 0.0
    %3141 = vmatpush1.msra.mxu0 0.0
    %3142 = vmatprep.subr.mxu0 0.0
    %3143 = vmatpush1.msra.mxu0 0.0
    %3144 = vmatprep.subr.mxu0 0.0
    %3145 = vmatpush1.msra.mxu0 0.0
    %3146 = vmatprep.subr.mxu0 0.0
    %3147 = vmatpush1.msra.mxu0 0.0
    %3148 = vmatprep.subr.mxu0 0.0
    %3149 = vmatpush1.msra.mxu0 0.0
    %3150 = vmatprep.subr.mxu0 0.0
    %3151 = vmatpush1.msra.mxu0 0.0
    %3152 = vmatprep.subr.mxu0 0.0
    %3153 = vmatpush1.msra.mxu0 0.0
    %3154 = vmatprep.subr.mxu0 0.0
    %3155 = vmatpush1.msra.mxu0 0.0
    %3156 = vmatprep.subr.mxu0 0.0
    %3157 = vmatpush1.msra.mxu0 0.0
    %3158 = vmatprep.subr.mxu0 0.0
    %3159 = vmatpush1.msra.mxu0 0.0
    %3160 = vmatprep.subr.mxu0 0.0
    %3161 = vmatpush1.msra.mxu0 0.0
    %3162 = vmatprep.subr.mxu0 0.0
    %3163 = vmatpush1.msra.mxu0 0.0
    %3164 = vmatprep.mubr.f32.mxu0 0.0
    %3165 = vmatmul.mubr.f32.gmra.mrb[0].mxu0 %v3098
    %v3166 = vpop.f32.mrb[0].mxu0
    %v3167 = vadd.f32 %v344, %v3166
    %v3168 = vpop.f32.mrb[0].mxu0
    %3169 = vdwg.mxu0
    %v3170 = vsel %vm420, %v3167, -inf
    %3171 = vmax.xlane.f32.xlu0 %v3170
    %v3172 = vpop.xlane.xlu0 %3171
    %v3173 = vsub.f32 %v3167, %v3172
    %v3174 = vmul.f32 %v3173, 1.442695
    %v3175 = vpow.pop %v3174
    %v3176 = vsel %vm420, %v3175, 0.0
    %3177 = vadd.xlane.f32.xlu0 %v3176
    %v3178 = vpop.xlane.xlu0 %3177
    %v3179 = vrcp.pop %v3178
    %v3180 = vmul.f32 %v3175, %v3179
    %v3181 = vxor.u32 %v3022, 2147483648
    %v3182 = vmul.f32 %v3181, 1.442695
    %v3183 = vpow.pop %v3182
    %v3184 = vadd.f32 %v3183, 1.0
    %v3185 = vrcp.pop %v3184
    %v3186 = vmul.f32 1.0, %v3185
    %3188 = vset.pattern.permute.xlu0 15
    %3189 = vperm.xlu0 %3188, %v3186
    %v3190 = vpop.permute.xlu0 %3189
    %v3192 = vmul.f32 %v3180, %v3190
    %v3193 = vsub.f32 1.0, %v3186
    %3195 = vset.pattern.permute.xlu0 15
    %3196 = vperm.xlu0 %3195, %v3193
    %v3197 = vpop.permute.xlu0 %3196
    %v3199 = vmul.f32 %v2742, %v3197
    %v3200 = vadd.f32 %v3192, %v3199
    %3202 = vset.pattern.permute.xlu0 0
    %3203 = vperm.xlu0 %3202, %v3200
    %v3204 = vpop.permute.xlu0 %3203
    %v3206 = vmul.f32 %v3204, %v2868
    %v3207 = vadd.f32 %v3206, 0.0
    %3208 = vset.pattern.permute.xlu0 1
    %3209 = vperm.xlu0 %3208, %v3200
    %v3210 = vpop.permute.xlu0 %3209
    %v3212 = vmul.f32 %v3210, %v2868
    %3214 = vrot.lane.b32.xlu0 %v3212, 120
    %v3215 = vpop.permute.xlu0 %3214
    %v3217 = vadd.f32 %v3207, %v3215
    %3218 = vset.pattern.permute.xlu0 2
    %3219 = vperm.xlu0 %3218, %v3200
    %v3220 = vpop.permute.xlu0 %3219
    %v3222 = vmul.f32 %v3220, %v2868
    %3224 = vrot.lane.b32.xlu0 %v3222, 112
    %v3225 = vpop.permute.xlu0 %3224
    %v3227 = vadd.f32 %v3217, %v3225
    %3228 = vset.pattern.permute.xlu0 3
    %3229 = vperm.xlu0 %3228, %v3200
    %v3230 = vpop.permute.xlu0 %3229
    %v3232 = vmul.f32 %v3230, %v2868
    %3234 = vrot.lane.b32.xlu0 %v3232, 104
    %v3235 = vpop.permute.xlu0 %3234
    %v3237 = vadd.f32 %v3227, %v3235
    %v3238 = vmax.f32 %v3237, 0.0
    %v3239 = vsub.f32 %v3237, 1.0
    %v3240 = vmax.f32 %v3239, 0.0
    %v3241 = vsub.f32 %v3238, %v3240
    %3242 = vrot.lane.b32.xlu0 %v54, 1
    %v3243 = vpop.permute.xlu0 %3242
    %v3245 = vsub.f32 %v3241, %v3243
    %v3246 = vmul.f32 %v3245, %v3245
    %v3247 = vsub.f32 1.0, %v3246
    %3248 = vset.pattern.permute.xlu0 7
    %3249 = vperm.xlu0 %3248, %v53
    %v3250 = vpop.permute.xlu0 %3249
    %v3252 = vmul.f32 %v3250, %v86
    %v3254 = vsel %vm89, %v3237, 0
    %3256 = vmatprep.subr.mxu0 0.0
    %3257 = vmatpush1.msra.mxu0 %v55
    %3258 = vmatprep.subr.mxu0 0.0
    %3259 = vmatpush1.msra.mxu0 0.0
    %3260 = vmatprep.subr.mxu0 0.0
    %3261 = vmatpush1.msra.mxu0 0.0
    %3262 = vmatprep.subr.mxu0 0.0
    %3263 = vmatpush1.msra.mxu0 0.0
    %3264 = vmatprep.subr.mxu0 0.0
    %3265 = vmatpush1.msra.mxu0 0.0
    %3266 = vmatprep.subr.mxu0 0.0
    %3267 = vmatpush1.msra.mxu0 0.0
    %3268 = vmatprep.subr.mxu0 0.0
    %3269 = vmatpush1.msra.mxu0 0.0
    %3270 = vmatprep.subr.mxu0 0.0
    %3271 = vmatpush1.msra.mxu0 0.0
    %3272 = vmatprep.subr.mxu0 0.0
    %3273 = vmatpush1.msra.mxu0 0.0
    %3274 = vmatprep.subr.mxu0 0.0
    %3275 = vmatpush1.msra.mxu0 0.0
    %3276 = vmatprep.subr.mxu0 0.0
    %3277 = vmatpush1.msra.mxu0 0.0
    %3278 = vmatprep.subr.mxu0 0.0
    %3279 = vmatpush1.msra.mxu0 0.0
    %3280 = vmatprep.subr.mxu0 0.0
    %3281 = vmatpush1.msra.mxu0 0.0
    %3282 = vmatprep.subr.mxu0 0.0
    %3283 = vmatpush1.msra.mxu0 0.0
    %3284 = vmatprep.subr.mxu0 0.0
    %3285 = vmatpush1.msra.mxu0 0.0
    %3286 = vmatprep.subr.mxu0 0.0
    %3287 = vmatpush1.msra.mxu0 0.0
    %3288 = vmatprep.subr.mxu0 0.0
    %3289 = vmatpush1.msra.mxu0 0.0
    %3290 = vmatprep.subr.mxu0 0.0
    %3291 = vmatpush1.msra.mxu0 0.0
    %3292 = vmatprep.subr.mxu0 0.0
    %3293 = vmatpush1.msra.mxu0 0.0
    %3294 = vmatprep.subr.mxu0 0.0
    %3295 = vmatpush1.msra.mxu0 0.0
    %3296 = vmatprep.subr.mxu0 0.0
    %3297 = vmatpush1.msra.mxu0 0.0
    %3298 = vmatprep.subr.mxu0 0.0
    %3299 = vmatpush1.msra.mxu0 0.0
    %3300 = vmatprep.subr.mxu0 0.0
    %3301 = vmatpush1.msra.mxu0 0.0
    %3302 = vmatprep.subr.mxu0 0.0
    %3303 = vmatpush1.msra.mxu0 0.0
    %3304 = vmatprep.subr.mxu0 0.0
    %3305 = vmatpush1.msra.mxu0 0.0
    %3306 = vmatprep.subr.mxu0 0.0
    %3307 = vmatpush1.msra.mxu0 0.0
    %3308 = vmatprep.subr.mxu0 0.0
    %3309 = vmatpush1.msra.mxu0 0.0
    %3310 = vmatprep.subr.mxu0 0.0
    %3311 = vmatpush1.msra.mxu0 0.0
    %3312 = vmatprep.subr.mxu0 0.0
    %3313 = vmatpush1.msra.mxu0 0.0
    %3314 = vmatprep.subr.mxu0 0.0
    %3315 = vmatpush1.msra.mxu0 0.0
    %3316 = vmatprep.subr.mxu0 0.0
    %3317 = vmatpush1.msra.mxu0 0.0
    %3318 = vmatprep.subr.mxu0 0.0
    %3319 = vmatpush1.msra.mxu0 0.0
    %3320 = vmatprep.mubr.f32.mxu0 0.0
    %3321 = vmatmul.mubr.f32.gmra.mrb[0].mxu0 %v3254
    %v3322 = vpop.f32.mrb[0].mxu0
    %v3323 = vadd.f32 %v3252, %v3322
    %v3324 = vpop.f32.mrb[0].mxu0
    %3325 = vdwg.mxu0
    %v3326 = vtanh.pop %v3323
    %3328 = vset.pattern.permute.xlu0 7
    %3329 = vperm.xlu0 %3328, %v3245
    %v3330 = vpop.permute.xlu0 %3329
    %v3332 = vmul.f32 %v3330, %v173
    %3334 = vrot.lane.b32.xlu0 %v3326, 96
    %v3335 = vpop.permute.xlu0 %3334
    %v3336 = vsel %vm89, %v3335, 0
    %3338 = vmatprep.subr.mxu0 0.0
    %3339 = vmatpush1.msra.mxu0 %v57
    %3340 = vmatprep.subr.mxu0 0.0
    %3341 = vmatpush1.msra.mxu0 0.0
    %3342 = vmatprep.subr.mxu0 0.0
    %3343 = vmatpush1.msra.mxu0 0.0
    %3344 = vmatprep.subr.mxu0 0.0
    %3345 = vmatpush1.msra.mxu0 0.0
    %3346 = vmatprep.subr.mxu0 0.0
    %3347 = vmatpush1.msra.mxu0 0.0
    %3348 = vmatprep.subr.mxu0 0.0
    %3349 = vmatpush1.msra.mxu0 0.0
    %3350 = vmatprep.subr.mxu0 0.0
    %3351 = vmatpush1.msra.mxu0 0.0
    %3352 = vmatprep.subr.mxu0 0.0
    %3353 = vmatpush1.msra.mxu0 0.0
    %3354 = vmatprep.subr.mxu0 0.0
    %3355 = vmatpush1.msra.mxu0 0.0
    %3356 = vmatprep.subr.mxu0 0.0
    %3357 = vmatpush1.msra.mxu0 0.0
    %3358 = vmatprep.subr.mxu0 0.0
    %3359 = vmatpush1.msra.mxu0 0.0
    %3360 = vmatprep.subr.mxu0 0.0
    %3361 = vmatpush1.msra.mxu0 0.0
    %3362 = vmatprep.subr.mxu0 0.0
    %3363 = vmatpush1.msra.mxu0 0.0
    %3364 = vmatprep.subr.mxu0 0.0
    %3365 = vmatpush1.msra.mxu0 0.0
    %3366 = vmatprep.subr.mxu0 0.0
    %3367 = vmatpush1.msra.mxu0 0.0
    %3368 = vmatprep.subr.mxu0 0.0
    %3369 = vmatpush1.msra.mxu0 0.0
    %3370 = vmatprep.subr.mxu0 0.0
    %3371 = vmatpush1.msra.mxu0 0.0
    %3372 = vmatprep.subr.mxu0 0.0
    %3373 = vmatpush1.msra.mxu0 0.0
    %3374 = vmatprep.subr.mxu0 0.0
    %3375 = vmatpush1.msra.mxu0 0.0
    %3376 = vmatprep.subr.mxu0 0.0
    %3377 = vmatpush1.msra.mxu0 0.0
    %3378 = vmatprep.subr.mxu0 0.0
    %3379 = vmatpush1.msra.mxu0 0.0
    %3380 = vmatprep.subr.mxu0 0.0
    %3381 = vmatpush1.msra.mxu0 0.0
    %3382 = vmatprep.subr.mxu0 0.0
    %3383 = vmatpush1.msra.mxu0 0.0
    %3384 = vmatprep.subr.mxu0 0.0
    %3385 = vmatpush1.msra.mxu0 0.0
    %3386 = vmatprep.subr.mxu0 0.0
    %3387 = vmatpush1.msra.mxu0 0.0
    %3388 = vmatprep.subr.mxu0 0.0
    %3389 = vmatpush1.msra.mxu0 0.0
    %3390 = vmatprep.subr.mxu0 0.0
    %3391 = vmatpush1.msra.mxu0 0.0
    %3392 = vmatprep.subr.mxu0 0.0
    %3393 = vmatpush1.msra.mxu0 0.0
    %3394 = vmatprep.subr.mxu0 0.0
    %3395 = vmatpush1.msra.mxu0 0.0
    %3396 = vmatprep.subr.mxu0 0.0
    %3397 = vmatpush1.msra.mxu0 0.0
    %3398 = vmatprep.subr.mxu0 0.0
    %3399 = vmatpush1.msra.mxu0 0.0
    %3400 = vmatprep.subr.mxu0 0.0
    %3401 = vmatpush1.msra.mxu0 0.0
    %3402 = vmatprep.mubr.f32.mxu0 0.0
    %3403 = vmatmul.mubr.f32.gmra.mrb[0].mxu0 %v3336
    %v3404 = vpop.f32.mrb[0].mxu0
    %v3405 = vadd.f32 %v3332, %v3404
    %v3406 = vpop.f32.mrb[0].mxu0
    %3407 = vdwg.mxu0
    %v3408 = vadd.f32 %v3405, %v255
    %3409 = vmatprep.subr.mxu0 0.0
    %3410 = vmatpush1.msra.mxu0 %v59
    %3411 = vmatprep.subr.mxu0 0.0
    %3412 = vmatpush1.msra.mxu0 %v60
    %3413 = vmatprep.subr.mxu0 0.0
    %3414 = vmatpush1.msra.mxu0 0.0
    %3415 = vmatprep.subr.mxu0 0.0
    %3416 = vmatpush1.msra.mxu0 0.0
    %3417 = vmatprep.subr.mxu0 0.0
    %3418 = vmatpush1.msra.mxu0 0.0
    %3419 = vmatprep.subr.mxu0 0.0
    %3420 = vmatpush1.msra.mxu0 0.0
    %3421 = vmatprep.subr.mxu0 0.0
    %3422 = vmatpush1.msra.mxu0 0.0
    %3423 = vmatprep.subr.mxu0 0.0
    %3424 = vmatpush1.msra.mxu0 0.0
    %3425 = vmatprep.subr.mxu0 0.0
    %3426 = vmatpush1.msra.mxu0 0.0
    %3427 = vmatprep.subr.mxu0 0.0
    %3428 = vmatpush1.msra.mxu0 0.0
    %3429 = vmatprep.subr.mxu0 0.0
    %3430 = vmatpush1.msra.mxu0 0.0
    %3431 = vmatprep.subr.mxu0 0.0
    %3432 = vmatpush1.msra.mxu0 0.0
    %3433 = vmatprep.subr.mxu0 0.0
    %3434 = vmatpush1.msra.mxu0 0.0
    %3435 = vmatprep.subr.mxu0 0.0
    %3436 = vmatpush1.msra.mxu0 0.0
    %3437 = vmatprep.subr.mxu0 0.0
    %3438 = vmatpush1.msra.mxu0 0.0
    %3439 = vmatprep.subr.mxu0 0.0
    %3440 = vmatpush1.msra.mxu0 0.0
    %3441 = vmatprep.subr.mxu0 0.0
    %3442 = vmatpush1.msra.mxu0 0.0
    %3443 = vmatprep.subr.mxu0 0.0
    %3444 = vmatpush1.msra.mxu0 0.0
    %3445 = vmatprep.subr.mxu0 0.0
    %3446 = vmatpush1.msra.mxu0 0.0
    %3447 = vmatprep.subr.mxu0 0.0
    %3448 = vmatpush1.msra.mxu0 0.0
    %3449 = vmatprep.subr.mxu0 0.0
    %3450 = vmatpush1.msra.mxu0 0.0
    %3451 = vmatprep.subr.mxu0 0.0
    %3452 = vmatpush1.msra.mxu0 0.0
    %3453 = vmatprep.subr.mxu0 0.0
    %3454 = vmatpush1.msra.mxu0 0.0
    %3455 = vmatprep.subr.mxu0 0.0
    %3456 = vmatpush1.msra.mxu0 0.0
    %3457 = vmatprep.subr.mxu0 0.0
    %3458 = vmatpush1.msra.mxu0 0.0
    %3459 = vmatprep.subr.mxu0 0.0
    %3460 = vmatpush1.msra.mxu0 0.0
    %3461 = vmatprep.subr.mxu0 0.0
    %3462 = vmatpush1.msra.mxu0 0.0
    %3463 = vmatprep.subr.mxu0 0.0
    %3464 = vmatpush1.msra.mxu0 0.0
    %3465 = vmatprep.subr.mxu0 0.0
    %3466 = vmatpush1.msra.mxu0 0.0
    %3467 = vmatprep.subr.mxu0 0.0
    %3468 = vmatpush1.msra.mxu0 0.0
    %3469 = vmatprep.subr.mxu0 0.0
    %3470 = vmatpush1.msra.mxu0 0.0
    %3471 = vmatprep.subr.mxu0 0.0
    %3472 = vmatpush1.msra.mxu0 0.0
    %3473 = vmatprep.mubr.f32.mxu0 0.0
    %3474 = vmatmul.mubr.f32.gmra.mrb[0].mxu0 %v3024
    %v3475 = vpop.f32.mrb[0].mxu0
    %v3476 = vadd.f32 0.0, %v3475
    %v3477 = vpop.f32.mrb[0].mxu0
    %3478 = vdwg.mxu0
    %v3479 = vadd.f32 %v3408, %v3476
    %v3480 = vtanh.pop %v3479
    %v3482 = vsel %vm265, %v3480, 0
    %3484 = vmatprep.subr.mxu0 0.0
    %3485 = vmatpush1.msra.mxu0 %v62
    %3486 = vmatprep.subr.mxu0 0.0
    %3487 = vmatpush1.msra.mxu0 %v63
    %3488 = vmatprep.subr.mxu0 0.0
    %3489 = vmatpush1.msra.mxu0 0.0
    %3490 = vmatprep.subr.mxu0 0.0
    %3491 = vmatpush1.msra.mxu0 0.0
    %3492 = vmatprep.subr.mxu0 0.0
    %3493 = vmatpush1.msra.mxu0 0.0
    %3494 = vmatprep.subr.mxu0 0.0
    %3495 = vmatpush1.msra.mxu0 0.0
    %3496 = vmatprep.subr.mxu0 0.0
    %3497 = vmatpush1.msra.mxu0 0.0
    %3498 = vmatprep.subr.mxu0 0.0
    %3499 = vmatpush1.msra.mxu0 0.0
    %3500 = vmatprep.subr.mxu0 0.0
    %3501 = vmatpush1.msra.mxu0 0.0
    %3502 = vmatprep.subr.mxu0 0.0
    %3503 = vmatpush1.msra.mxu0 0.0
    %3504 = vmatprep.subr.mxu0 0.0
    %3505 = vmatpush1.msra.mxu0 0.0
    %3506 = vmatprep.subr.mxu0 0.0
    %3507 = vmatpush1.msra.mxu0 0.0
    %3508 = vmatprep.subr.mxu0 0.0
    %3509 = vmatpush1.msra.mxu0 0.0
    %3510 = vmatprep.subr.mxu0 0.0
    %3511 = vmatpush1.msra.mxu0 0.0
    %3512 = vmatprep.subr.mxu0 0.0
    %3513 = vmatpush1.msra.mxu0 0.0
    %3514 = vmatprep.subr.mxu0 0.0
    %3515 = vmatpush1.msra.mxu0 0.0
    %3516 = vmatprep.subr.mxu0 0.0
    %3517 = vmatpush1.msra.mxu0 0.0
    %3518 = vmatprep.subr.mxu0 0.0
    %3519 = vmatpush1.msra.mxu0 0.0
    %3520 = vmatprep.subr.mxu0 0.0
    %3521 = vmatpush1.msra.mxu0 0.0
    %3522 = vmatprep.subr.mxu0 0.0
    %3523 = vmatpush1.msra.mxu0 0.0
    %3524 = vmatprep.subr.mxu0 0.0
    %3525 = vmatpush1.msra.mxu0 0.0
    %3526 = vmatprep.subr.mxu0 0.0
    %3527 = vmatpush1.msra.mxu0 0.0
    %3528 = vmatprep.subr.mxu0 0.0
    %3529 = vmatpush1.msra.mxu0 0.0
    %3530 = vmatprep.subr.mxu0 0.0
    %3531 = vmatpush1.msra.mxu0 0.0
    %3532 = vmatprep.subr.mxu0 0.0
    %3533 = vmatpush1.msra.mxu0 0.0
    %3534 = vmatprep.subr.mxu0 0.0
    %3535 = vmatpush1.msra.mxu0 0.0
    %3536 = vmatprep.subr.mxu0 0.0
    %3537 = vmatpush1.msra.mxu0 0.0
    %3538 = vmatprep.subr.mxu0 0.0
    %3539 = vmatpush1.msra.mxu0 0.0
    %3540 = vmatprep.subr.mxu0 0.0
    %3541 = vmatpush1.msra.mxu0 0.0
    %3542 = vmatprep.subr.mxu0 0.0
    %3543 = vmatpush1.msra.mxu0 0.0
    %3544 = vmatprep.subr.mxu0 0.0
    %3545 = vmatpush1.msra.mxu0 0.0
    %3546 = vmatprep.subr.mxu0 0.0
    %3547 = vmatpush1.msra.mxu0 0.0
    %3548 = vmatprep.mubr.f32.mxu0 0.0
    %3549 = vmatmul.mubr.f32.gmra.mrb[0].mxu0 %v3482
    %v3550 = vpop.f32.mrb[0].mxu0
    %v3551 = vadd.f32 %v263, %v3550
    %v3552 = vpop.f32.mrb[0].mxu0
    %3553 = vdwg.mxu0
    %v3554 = vmax.f32 %v3551, 0.0
    %v3556 = vsel %vm346, %v3554, 0
    %3558 = vmatprep.subr.mxu0 0.0
    %3559 = vmatpush1.msra.mxu0 %v65
    %3560 = vmatprep.subr.mxu0 0.0
    %3561 = vmatpush1.msra.mxu0 %v66
    %3562 = vmatprep.subr.mxu0 0.0
    %3563 = vmatpush1.msra.mxu0 %v67
    %3564 = vmatprep.subr.mxu0 0.0
    %3565 = vmatpush1.msra.mxu0 %v68
    %3566 = vmatprep.subr.mxu0 0.0
    %3567 = vmatpush1.msra.mxu0 %v69
    %3568 = vmatprep.subr.mxu0 0.0
    %3569 = vmatpush1.msra.mxu0 %v70
    %3570 = vmatprep.subr.mxu0 0.0
    %3571 = vmatpush1.msra.mxu0 %v71
    %3572 = vmatprep.subr.mxu0 0.0
    %3573 = vmatpush1.msra.mxu0 %v72
    %3574 = vmatprep.subr.mxu0 0.0
    %3575 = vmatpush1.msra.mxu0 0.0
    %3576 = vmatprep.subr.mxu0 0.0
    %3577 = vmatpush1.msra.mxu0 0.0
    %3578 = vmatprep.subr.mxu0 0.0
    %3579 = vmatpush1.msra.mxu0 0.0
    %3580 = vmatprep.subr.mxu0 0.0
    %3581 = vmatpush1.msra.mxu0 0.0
    %3582 = vmatprep.subr.mxu0 0.0
    %3583 = vmatpush1.msra.mxu0 0.0
    %3584 = vmatprep.subr.mxu0 0.0
    %3585 = vmatpush1.msra.mxu0 0.0
    %3586 = vmatprep.subr.mxu0 0.0
    %3587 = vmatpush1.msra.mxu0 0.0
    %3588 = vmatprep.subr.mxu0 0.0
    %3589 = vmatpush1.msra.mxu0 0.0
    %3590 = vmatprep.subr.mxu0 0.0
    %3591 = vmatpush1.msra.mxu0 0.0
    %3592 = vmatprep.subr.mxu0 0.0
    %3593 = vmatpush1.msra.mxu0 0.0
    %3594 = vmatprep.subr.mxu0 0.0
    %3595 = vmatpush1.msra.mxu0 0.0
    %3596 = vmatprep.subr.mxu0 0.0
    %3597 = vmatpush1.msra.mxu0 0.0
    %3598 = vmatprep.subr.mxu0 0.0
    %3599 = vmatpush1.msra.mxu0 0.0
    %3600 = vmatprep.subr.mxu0 0.0
    %3601 = vmatpush1.msra.mxu0 0.0
    %3602 = vmatprep.subr.mxu0 0.0
    %3603 = vmatpush1.msra.mxu0 0.0
    %3604 = vmatprep.subr.mxu0 0.0
    %3605 = vmatpush1.msra.mxu0 0.0
    %3606 = vmatprep.subr.mxu0 0.0
    %3607 = vmatpush1.msra.mxu0 0.0
    %3608 = vmatprep.subr.mxu0 0.0
    %3609 = vmatpush1.msra.mxu0 0.0
    %3610 = vmatprep.subr.mxu0 0.0
    %3611 = vmatpush1.msra.mxu0 0.0
    %3612 = vmatprep.subr.mxu0 0.0
    %3613 = vmatpush1.msra.mxu0 0.0
    %3614 = vmatprep.subr.mxu0 0.0
    %3615 = vmatpush1.msra.mxu0 0.0
    %3616 = vmatprep.subr.mxu0 0.0
    %3617 = vmatpush1.msra.mxu0 0.0
    %3618 = vmatprep.subr.mxu0 0.0
    %3619 = vmatpush1.msra.mxu0 0.0
    %3620 = vmatprep.subr.mxu0 0.0
    %3621 = vmatpush1.msra.mxu0 0.0
    %3622 = vmatprep.mubr.f32.mxu0 0.0
    %3623 = vmatmul.mubr.f32.gmra.mrb[0].mxu0 %v3556
    %v3624 = vpop.f32.mrb[0].mxu0
    %v3625 = vadd.f32 %v344, %v3624
    %v3626 = vpop.f32.mrb[0].mxu0
    %3627 = vdwg.mxu0
    %v3628 = vsel %vm420, %v3625, -inf
    %3629 = vmax.xlane.f32.xlu0 %v3628
    %v3630 = vpop.xlane.xlu0 %3629
    %v3631 = vsub.f32 %v3625, %v3630
    %v3632 = vmul.f32 %v3631, 1.442695
    %v3633 = vpow.pop %v3632
    %v3634 = vsel %vm420, %v3633, 0.0
    %3635 = vadd.xlane.f32.xlu0 %v3634
    %v3636 = vpop.xlane.xlu0 %3635
    %v3637 = vrcp.pop %v3636
    %v3638 = vmul.f32 %v3633, %v3637
    %v3639 = vxor.u32 %v3480, 2147483648
    %v3640 = vmul.f32 %v3639, 1.442695
    %v3641 = vpow.pop %v3640
    %v3642 = vadd.f32 %v3641, 1.0
    %v3643 = vrcp.pop %v3642
    %v3644 = vmul.f32 1.0, %v3643
    %3646 = vset.pattern.permute.xlu0 15
    %3647 = vperm.xlu0 %3646, %v3644
    %v3648 = vpop.permute.xlu0 %3647
    %v3650 = vmul.f32 %v3638, %v3648
    %v3651 = vsub.f32 1.0, %v3644
    %3653 = vset.pattern.permute.xlu0 15
    %3654 = vperm.xlu0 %3653, %v3651
    %v3655 = vpop.permute.xlu0 %3654
    %v3657 = vmul.f32 %v3200, %v3655
    %v3658 = vadd.f32 %v3650, %v3657
    %3660 = vset.pattern.permute.xlu0 0
    %3661 = vperm.xlu0 %3660, %v3658
    %v3662 = vpop.permute.xlu0 %3661
    %v3664 = vmul.f32 %v3662, %v3326
    %v3665 = vadd.f32 %v3664, 0.0
    %3666 = vset.pattern.permute.xlu0 1
    %3667 = vperm.xlu0 %3666, %v3658
    %v3668 = vpop.permute.xlu0 %3667
    %v3670 = vmul.f32 %v3668, %v3326
    %3672 = vrot.lane.b32.xlu0 %v3670, 120
    %v3673 = vpop.permute.xlu0 %3672
    %v3675 = vadd.f32 %v3665, %v3673
    %3676 = vset.pattern.permute.xlu0 2
    %3677 = vperm.xlu0 %3676, %v3658
    %v3678 = vpop.permute.xlu0 %3677
    %v3680 = vmul.f32 %v3678, %v3326
    %3682 = vrot.lane.b32.xlu0 %v3680, 112
    %v3683 = vpop.permute.xlu0 %3682
    %v3685 = vadd.f32 %v3675, %v3683
    %3686 = vset.pattern.permute.xlu0 3
    %3687 = vperm.xlu0 %3686, %v3658
    %v3688 = vpop.permute.xlu0 %3687
    %v3690 = vmul.f32 %v3688, %v3326
    %3692 = vrot.lane.b32.xlu0 %v3690, 104
    %v3693 = vpop.permute.xlu0 %3692
    %v3695 = vadd.f32 %v3685, %v3693
    %v3696 = vmax.f32 %v3695, 0.0
    %v3697 = vsub.f32 %v3695, 1.0
    %v3698 = vmax.f32 %v3697, 0.0
    %v3699 = vsub.f32 %v3696, %v3698
    %v3700 = vsub.f32 %v3699, %v54
    %v3701 = vmul.f32 %v3700, %v3700
    %v3702 = vsub.f32 1.0, %v3701
    %3704 = vrot.lane.b32.xlu0 %v492, 121
    %v3705 = vpop.permute.xlu0 %3704
    %3708 = vrot.lane.b32.xlu0 %v951, 122
    %v3709 = vpop.permute.xlu0 %3708
    %3712 = vrot.lane.b32.xlu0 %v1409, 123
    %v3713 = vpop.permute.xlu0 %3712
    %3716 = vrot.lane.b32.xlu0 %v1867, 124
    %v3717 = vpop.permute.xlu0 %3716
    %3720 = vrot.lane.b32.xlu0 %v2325, 125
    %v3721 = vpop.permute.xlu0 %3720
    %3724 = vrot.lane.b32.xlu0 %v2783, 126
    %v3725 = vpop.permute.xlu0 %3724
    %3728 = vrot.lane.b32.xlu0 %v3241, 127
    %v3729 = vpop.permute.xlu0 %3728
    %vm3731 = vcmask 7168
    %v3732 = vsel %vm3731, %v3705, %v3709
    %vm3733 = vcmask 15360
    %v3734 = vsel %vm3733, %v3732, %v3713
    %vm3735 = vcmask 23552
    %v3736 = vsel %vm3735, %v3734, %v3717
    %v3737 = vsel %vm420, %v3736, %v3721
    %vm3738 = vcmask 39936
    %v3739 = vsel %vm3738, %v3737, %v3725
    %vm3740 = vcmask 48128
    %v3741 = vsel %vm3740, %v3739, %v3729
    %vm3742 = vcmask 56320
    %v3743 = vsel %vm3742, %v3741, %v3699
    %3744 = vst.msk [vmem:[#allocation2] sm:$0xff] %vm89, %v3743
    %3745 = vrot.lane.b32.xlu0 %v437, 113
    %v3746 = vpop.permute.xlu0 %3745
    %3748 = vrot.lane.b32.xlu0 %v896, 114
    %v3749 = vpop.permute.xlu0 %3748
    %3751 = vrot.lane.b32.xlu0 %v1354, 115
    %v3752 = vpop.permute.xlu0 %3751
    %3754 = vrot.lane.b32.xlu0 %v1812, 116
    %v3755 = vpop.permute.xlu0 %3754
    %3757 = vrot.lane.b32.xlu0 %v2270, 117
    %v3758 = vpop.permute.xlu0 %3757
    %3760 = vrot.lane.b32.xlu0 %v2728, 118
    %v3761 = vpop.permute.xlu0 %3760
    %3763 = vrot.lane.b32.xlu0 %v3186, 119
    %v3764 = vpop.permute.xlu0 %3763
    %3766 = vrot.lane.b32.xlu0 %v3644, 120
    %v3767 = vpop.permute.xlu0 %3766
    %v3769 = vsel %vm3731, %v3746, %v3749
    %v3770 = vsel %vm3733, %v3769, %v3752
    %v3771 = vsel %vm3735, %v3770, %v3755
    %v3772 = vsel %vm420, %v3771, %v3758
    %v3773 = vsel %vm3738, %v3772, %v3761
    %v3774 = vsel %vm3740, %v3773, %v3764
    %v3775 = vsel %vm3742, %v3774, %v3767
    %3777 = vrot.lane.b32.xlu0 %v499, 121
    %v3778 = vpop.permute.xlu0 %3777
    %3781 = vrot.lane.b32.xlu0 %v957, 122
    %v3782 = vpop.permute.xlu0 %3781
    %3785 = vrot.lane.b32.xlu0 %v1415, 123
    %v3786 = vpop.permute.xlu0 %3785
    %3789 = vrot.lane.b32.xlu0 %v1873, 124
    %v3790 = vpop.permute.xlu0 %3789
    %3793 = vrot.lane.b32.xlu0 %v2331, 125
    %v3794 = vpop.permute.xlu0 %3793
    %3797 = vrot.lane.b32.xlu0 %v2789, 126
    %v3798 = vpop.permute.xlu0 %3797
    %3801 = vrot.lane.b32.xlu0 %v3247, 127
    %v3802 = vpop.permute.xlu0 %3801
    %v3804 = vsel %vm3731, %v3778, %v3782
    %v3805 = vsel %vm3733, %v3804, %v3786
    %v3806 = vsel %vm3735, %v3805, %v3790
    %v3807 = vsel %vm420, %v3806, %v3794
    %v3808 = vsel %vm3738, %v3807, %v3798
    %v3809 = vsel %vm3740, %v3808, %v3802
    %v3810 = vsel %vm3742, %v3809, %v3702
    %3811 = vxpose.xlu0.b32.start [1/16] %v3810, 128
    %3812 = vxpose.xlu0.b32.cont [2/16] 0.0, 128
    %3813 = vxpose.xlu0.b32.cont [3/16] 0.0, 128
    %3814 = vxpose.xlu0.b32.cont [4/16] 0.0, 128
    %3815 = vxpose.xlu0.b32.cont [5/16] 0.0, 128
    %3816 = vxpose.xlu0.b32.cont [6/16] 0.0, 128
    %3817 = vxpose.xlu0.b32.cont [7/16] 0.0, 128
    %3818 = vxpose.xlu0.b32.cont [8/16] 0.0, 128
    %3819 = vxpose.xlu0.b32.cont [9/16] 0.0, 128
    %3820 = vxpose.xlu0.b32.cont [10/16] 0.0, 128
    %3821 = vxpose.xlu0.b32.cont [11/16] 0.0, 128
    %3822 = vxpose.xlu0.b32.cont [12/16] 0.0, 128
    %3823 = vxpose.xlu0.b32.cont [13/16] 0.0, 128
    %3824 = vxpose.xlu0.b32.cont [14/16] 0.0, 128
    %3825 = vxpose.xlu0.b32.cont [15/16] 0.0, 128
    %3826 = vxpose.xlu0.b32.end [16/16] 0.0, 128
    %v3827 = vpop.trf.xlu0
    %v3828 = vpop.trf.xlu0
    %v3829 = vpop.trf.xlu0
    %v3830 = vpop.trf.xlu0
    %v3831 = vpop.trf.xlu0
    %v3832 = vpop.trf.xlu0
    %v3833 = vpop.trf.xlu0
    %v3834 = vpop.trf.xlu0
    %v3835 = vpop.trf.xlu0
    %v3836 = vpop.trf.xlu0
    %v3837 = vpop.trf.xlu0
    %v3838 = vpop.trf.xlu0
    %v3839 = vpop.trf.xlu0
    %v3840 = vpop.trf.xlu0
    %v3841 = vpop.trf.xlu0
    %v3842 = vpop.trf.xlu0
    %3844 = vset.pattern.permute.xlu0 0
    %3845 = vperm.xlu0 %3844, %v3775
    %v3846 = vpop.permute.xlu0 %3845
    %v3848 = vlaneseq
    %v3849 = vshrl.u32 %v3848, 7
    %v3850 = vsub.s32 0, %v3849
    %v3851 = vrot.slane %v3827, %v3850
    %v3852 = vmul.f32 %v3846, %v3851
    %3853 = vset.pattern.permute.xlu0 1
    %3854 = vperm.xlu0 %3853, %v3775
    %v3855 = vpop.permute.xlu0 %3854
    %v3857 = vlaneseq
    %v3858 = vshrl.u32 %v3857, 7
    %v3859 = vsub.s32 1, %v3858
    %v3860 = vrot.slane %v3827, %v3859
    %v3861 = vmul.f32 %v3855, %v3860
    %3862 = vset.pattern.permute.xlu0 2
    %3863 = vperm.xlu0 %3862, %v3775
    %v3864 = vpop.permute.xlu0 %3863
    %v3866 = vlaneseq
    %v3867 = vshrl.u32 %v3866, 7
    %v3868 = vsub.s32 2, %v3867
    %v3869 = vrot.slane %v3827, %v3868
    %v3870 = vmul.f32 %v3864, %v3869
    %3871 = vset.pattern.permute.xlu0 3
    %3872 = vperm.xlu0 %3871, %v3775
    %v3873 = vpop.permute.xlu0 %3872
    %v3875 = vlaneseq
    %v3876 = vshrl.u32 %v3875, 7
    %v3877 = vsub.s32 3, %v3876
    %v3878 = vrot.slane %v3827, %v3877
    %v3879 = vmul.f32 %v3873, %v3878
    %3880 = vset.pattern.permute.xlu0 4
    %3881 = vperm.xlu0 %3880, %v3775
    %v3882 = vpop.permute.xlu0 %3881
    %v3884 = vlaneseq
    %v3885 = vshrl.u32 %v3884, 7
    %v3886 = vsub.s32 4, %v3885
    %v3887 = vrot.slane %v3827, %v3886
    %v3888 = vmul.f32 %v3882, %v3887
    %3889 = vset.pattern.permute.xlu0 5
    %3890 = vperm.xlu0 %3889, %v3775
    %v3891 = vpop.permute.xlu0 %3890
    %v3893 = vlaneseq
    %v3894 = vshrl.u32 %v3893, 7
    %v3895 = vsub.s32 5, %v3894
    %v3896 = vrot.slane %v3827, %v3895
    %v3897 = vmul.f32 %v3891, %v3896
    %3898 = vset.pattern.permute.xlu0 6
    %3899 = vperm.xlu0 %3898, %v3775
    %v3900 = vpop.permute.xlu0 %3899
    %v3902 = vlaneseq
    %v3903 = vshrl.u32 %v3902, 7
    %v3904 = vsub.s32 6, %v3903
    %v3905 = vrot.slane %v3827, %v3904
    %v3906 = vmul.f32 %v3900, %v3905
    %3907 = vset.pattern.permute.xlu0 7
    %3908 = vperm.xlu0 %3907, %v3775
    %v3909 = vpop.permute.xlu0 %3908
    %v3911 = vlaneseq
    %v3912 = vshrl.u32 %v3911, 7
    %v3913 = vsub.s32 7, %v3912
    %v3914 = vrot.slane %v3827, %v3913
    %v3915 = vmul.f32 %v3909, %v3914
    %3917 = vrot.lane.b32.xlu0 %v3861, 8
    %v3918 = vpop.permute.xlu0 %3917
    %3921 = vrot.lane.b32.xlu0 %v3870, 16
    %v3922 = vpop.permute.xlu0 %3921
    %3925 = vrot.lane.b32.xlu0 %v3879, 24
    %v3926 = vpop.permute.xlu0 %3925
    %3929 = vrot.lane.b32.xlu0 %v3888, 32
    %v3930 = vpop.permute.xlu0 %3929
    %3933 = vrot.lane.b32.xlu0 %v3897, 40
    %v3934 = vpop.permute.xlu0 %3933
    %3937 = vrot.lane.b32.xlu0 %v3906, 48
    %v3938 = vpop.permute.xlu0 %3937
    %3941 = vrot.lane.b32.xlu0 %v3915, 56
    %v3942 = vpop.permute.xlu0 %3941
    %v3944 = vsel %vm89, %v3852, %v3918
    %v3945 = vsel %vm265, %v3944, %v3922
    %vm3946 = vcmask 195584
    %v3947 = vsel %vm3946, %v3945, %v3926
    %vm3948 = vcmask 261120
    %v3949 = vsel %vm3948, %v3947, %v3930
    %vm3950 = vcmask 326656
    %v3951 = vsel %vm3950, %v3949, %v3934
    %vm3952 = vcmask 392192
    %v3953 = vsel %vm3952, %v3951, %v3938
    %vm3954 = vcmask 457728
    %v3955 = vsel %vm3954, %v3953, %v3942
    %3956 = vst.msk [vmem:[%s16] sm:$0xff] %vm346, %v3955
    // Predicated region
    $region62: #{discmaker2_forward.1} parent=1 // pred_check
      _
    $region63: #{discmaker2_forward.1} parent=1 // pred_check_branch
      %3958 = sbr.rel (0) target = $region65
    $region64: #{discmaker2_forward.1} parent=1 // pred_region
      %s3960 = ssub.s32 128, 128
      %3961 = vsyncadd [#allocation3], %s3960
      %s3963 = sshll.u32 [#allocation2], 4
      %s3964 = int_to_ptr.vmem [resolvable:$true] %s3963
      %3966 = dma.vmem_to_hbm [thread:$0]  %s3964, 128, %s15, [#allocation3]
    $region65: #{discmaker2_forward.1} parent=1 // pred_fallthru
      _
    // Predicated region
    $region66: #{discmaker2_forward.1} parent=1 // pred_check
      _
    $region67: #{discmaker2_forward.1} parent=1 // pred_check_branch
      %3968 = sbr.rel (0) target = $region69
    $region68: #{discmaker2_forward.1} parent=1 // pred_region
      _
    $region69: #{discmaker2_forward.1} parent=1 // pred_fallthru
      _
    // Predicated region
    $region70: #{discmaker2_forward.1} parent=1 // pred_check
      _
    $region71: #{discmaker2_forward.1} parent=1 // pred_check_branch
      %3970 = sbr.rel (0) target = $region73
    $region72: #{discmaker2_forward.1} parent=1 // pred_region
      %3971 = dma.done [#allocation3], 128
    $region73: #{discmaker2_forward.1} parent=1 // pred_fallthru
      _
    // Predicated region
    $region74: #{discmaker2_forward.1} parent=1 // pred_check
      _
    $region75: #{discmaker2_forward.1} parent=1 // pred_check_branch
      %3973 = sbr.rel (0) target = $region77
    $region76: #{discmaker2_forward.1} parent=1 // pred_region
      _
    $region77: #{discmaker2_forward.1} parent=1 // pred_fallthru
      _
    %3974 = vsyncpa [#allocation3], 1

</llo_original>
